<compile_context>
chip_gen: v6e
topology: v6e:2x2x1
jax: 0.10.0
libtpu: 0.0.40
codegen_flags: <defaults>
</compile_context>

<pallas_src>
import jax
import jax.numpy as jnp
from jax.experimental import pallas as pl
from jax.experimental.pallas import tpu as pltpu

# ---------------- small synthetic GPTNeoX config ----------------
VOCAB = 100
HIDDEN = 64
N_HEADS = 4
HEAD_DIM = HIDDEN // N_HEADS
N_LAYERS = 2
INTERMEDIATE = 256
ROTARY_PCT = 0.25
ROT_DIMS = int(HEAD_DIM * ROTARY_PCT)
ROPE_BASE = 10000.0
LN_EPS = 1e-5
BATCH = 2
SEQ = 8
NEG_INF = -1e9  # finite large-negative mask (avoids NaN for fully-masked rows)


# ---------------- single fused Pallas kernel ----------------
def _fused_encoder_kernel(idx_ref,                                    # scalar prefetch (SMEM)
                          x_ref, bias_ref, cosf_ref, sinf_ref, rmat_ref,
                          ln1_g_ref, ln1_b_ref, ln2_g_ref, ln2_b_ref,
                          qkv_w_ref, qkv_b_ref, dense_w_ref, dense_b_ref,
                          fc1_w_ref, fc1_b_ref, fc2_w_ref, fc2_b_ref,
                          fln_g_ref, fln_b_ref,
                          o_ref,                                      # (1, 1, H) output block
                          tmp_ref):                                   # (S, H) VMEM scratch
    """One grid step == one batch element: full GPTNeoX stack + final LN + pooling."""
    b = pl.program_id(0)
    scale = 1.0 / float(HEAD_DIM) ** 0.5

    h = x_ref[0]          # (S, H) embedded tokens for this batch element
    bias = bias_ref[0]    # (S, S) additive causal+padding attention bias
    cosf = cosf_ref[...]  # (S, dH): cos in the rotary dims, 1 in the pass-through dims
    sinf = sinf_ref[...]  # (S, dH): sin in the rotary dims, 0 in the pass-through dims
    rmat = rmat_ref[...]  # (dH, dH): rotate_half as a +/-1 permutation matrix

    def layer_norm(x, g, beta):
        mu = jnp.mean(x, axis=-1, keepdims=True)
        var = jnp.mean((x - mu) ** 2, axis=-1, keepdims=True)
        return (x - mu) * jax.lax.rsqrt(var + LN_EPS) * g + beta

    def rope(t):
        # partial rotary: t * cosf keeps the pass-through dims, (t @ rmat) * sinf
        # contributes rotate_half(t[:, :ROT_DIMS]) only on the rotary dims.
        return t * cosf + jnp.dot(t, rmat, preferred_element_type=jnp.float32) * sinf

    for l in range(N_LAYERS):
        # ---------------- attention branch ----------------
        ln1 = layer_norm(h, ln1_g_ref[l], ln1_b_ref[l])
        qkv = jnp.dot(ln1, qkv_w_ref[l],
                      preferred_element_type=jnp.float32) + qkv_b_ref[l]      # (S, 3H)

        # per-head attention (static loop, everything stays in vregs / VMEM)
        for hh in range(N_HEADS):
            base = hh * 3 * HEAD_DIM
            q = rope(qkv[:, base:base + HEAD_DIM])                            # (S, dH)
            k = rope(qkv[:, base + HEAD_DIM:base + 2 * HEAD_DIM])             # (S, dH)
            v = qkv[:, base + 2 * HEAD_DIM:base + 3 * HEAD_DIM]               # (S, dH)
            s = jax.lax.dot_general(q, k, (((1,), (1,)), ((), ())),
                                    preferred_element_type=jnp.float32)
            s = s * scale + bias                                              # (S, S)
            m = jnp.max(s, axis=-1, keepdims=True)
            p = jnp.exp(s - m)
            p = p * pl.reciprocal(jnp.sum(p, axis=-1, keepdims=True), approx=True)
            tmp_ref[:, hh * HEAD_DIM:(hh + 1) * HEAD_DIM] = jnp.dot(
                p, v, preferred_element_type=jnp.float32)

        ctx = tmp_ref[...]                                                    # (S, H)
        attn_out = (jnp.dot(ctx, dense_w_ref[l], preferred_element_type=jnp.float32)
                    + dense_b_ref[l])

        # ---------------- mlp branch ----------------
        ln2 = layer_norm(h, ln2_g_ref[l], ln2_b_ref[l])
        mh = jnp.dot(ln2, fc1_w_ref[l], preferred_element_type=jnp.float32) + fc1_b_ref[l]
        # TODO(synk): HF GPTNeoX "gelu" is the exact erf GELU; tanh approximation used here.
        mh = 0.5 * mh * (1.0 + jnp.tanh(0.7978845608028654 * (mh + 0.044715 * mh * mh * mh)))
        mlp_out = (jnp.dot(mh, fc2_w_ref[l], preferred_element_type=jnp.float32)
                   + fc2_b_ref[l])

        # GPTNeoX use_parallel_residual=True
        h = h + attn_out + mlp_out

    # final layer norm + last_token_pool (dynamic row gather from VMEM scratch)
    tmp_ref[...] = layer_norm(h, fln_g_ref[...], fln_b_ref[...])
    row = idx_ref[b]
    o_ref[0] = tmp_ref[pl.ds(row, 1), :]


# ---------------- wrapper: plain-JAX glue + the single pallas_call ----------------
def gptneox_encode(params, input_ids, attention_mask):
    B, S = input_ids.shape

    # embedding gather, attention bias, rotary tables, pooling index (cheap glue)
    x = params["embed_in"][input_ids]                                  # (B, S, H)

    mask_f = attention_mask.astype(jnp.float32)
    causal = jnp.tril(jnp.ones((S, S), jnp.float32))
    allowed = causal[None, :, :] * mask_f[:, None, :]
    bias = (1.0 - allowed) * NEG_INF                                   # (B, S, S)

    positions = jnp.arange(S, dtype=jnp.float32)
    inv_freq = 1.0 / (ROPE_BASE ** (jnp.arange(0, ROT_DIMS, 2, dtype=jnp.float32) / ROT_DIMS))
    freqs = positions[:, None] * inv_freq[None, :]                     # (S, rot/2)
    emb = jnp.concatenate([freqs, freqs], axis=-1)                     # (S, rot)
    cosf = jnp.concatenate(
        [jnp.cos(emb), jnp.ones((S, HEAD_DIM - ROT_DIMS), jnp.float32)], axis=-1)
    sinf = jnp.concatenate(
        [jnp.sin(emb), jnp.zeros((S, HEAD_DIM - ROT_DIMS), jnp.float32)], axis=-1)

    half = ROT_DIMS // 2
    rmat = jnp.zeros((HEAD_DIM, HEAD_DIM), jnp.float32)
    rmat = rmat.at[jnp.arange(half) + half, jnp.arange(half)].set(-1.0)
    rmat = rmat.at[jnp.arange(half), jnp.arange(half) + half].set(1.0)

    # last_token_pool semantics (HF style)
    left_padding = jnp.sum(attention_mask[:, -1]) == B
    seq_lengths = jnp.sum(attention_mask, axis=1) - 1
    idx = jnp.where(left_padding, S - 1, seq_lengths).astype(jnp.int32)  # (B,)

    # stack per-layer weights along a leading layer axis (resident in VMEM)
    layers = params["layers"]
    stack_w = lambda name: jnp.stack([lp[name] for lp in layers])                 # (L, K, N)
    stack_b = lambda name: jnp.stack([lp[name].reshape(1, -1) for lp in layers])  # (L, 1, N)

    L = N_LAYERS
    full = lambda *shape: pl.BlockSpec(shape, lambda b, idx_ref: (0,) * len(shape))

    out = pl.pallas_call(
        _fused_encoder_kernel,
        out_shape=jax.ShapeDtypeStruct((B, 1, HIDDEN), jnp.float32),
        grid_spec=pltpu.PrefetchScalarGridSpec(
            num_scalar_prefetch=1,
            grid=(B,),
            in_specs=[
                pl.BlockSpec((1, S, HIDDEN), lambda b, idx_ref: (b, 0, 0)),   # x (per batch)
                pl.BlockSpec((1, S, S), lambda b, idx_ref: (b, 0, 0)),        # bias (per batch)
                full(S, HEAD_DIM),                                            # cosf
                full(S, HEAD_DIM),                                            # sinf
                full(HEAD_DIM, HEAD_DIM),                                     # rmat
                full(L, 1, HIDDEN), full(L, 1, HIDDEN),                       # ln1 g/b
                full(L, 1, HIDDEN), full(L, 1, HIDDEN),                       # ln2 g/b
                full(L, HIDDEN, 3 * HIDDEN), full(L, 1, 3 * HIDDEN),          # qkv w/b
                full(L, HIDDEN, HIDDEN), full(L, 1, HIDDEN),                  # dense w/b
                full(L, HIDDEN, INTERMEDIATE), full(L, 1, INTERMEDIATE),      # fc1 w/b
                full(L, INTERMEDIATE, HIDDEN), full(L, 1, HIDDEN),            # fc2 w/b
                full(1, HIDDEN), full(1, HIDDEN),                             # final ln g/b
            ],
            out_specs=pl.BlockSpec((1, 1, HIDDEN), lambda b, idx_ref: (b, 0, 0)),
            scratch_shapes=[pltpu.VMEM((S, HIDDEN), jnp.float32)],
        ),
        compiler_params=pltpu.CompilerParams(
            dimension_semantics=("parallel",)),   # v7x: each TC takes one batch element
    )(
        idx, x, bias, cosf, sinf, rmat,
        stack_b("ln1_g"), stack_b("ln1_b"), stack_b("ln2_g"), stack_b("ln2_b"),
        stack_w("qkv_w"), stack_b("qkv_b"), stack_w("dense_w"), stack_b("dense_b"),
        stack_w("fc1_w"), stack_b("fc1_b"), stack_w("fc2_w"), stack_b("fc2_b"),
        params["final_ln_g"].reshape(1, HIDDEN), params["final_ln_b"].reshape(1, HIDDEN),
    )
    return out[:, 0, :]


def init_params(key):
    def norm(k, shape, scale=0.02):
        return scale * jax.random.normal(k, shape, jnp.float32)

    keys = jax.random.split(key, 1 + N_LAYERS)
    params = {
        "embed_in": norm(keys[0], (VOCAB, HIDDEN)),
        "final_ln_g": jnp.ones((HIDDEN,), jnp.float32),
        "final_ln_b": jnp.zeros((HIDDEN,), jnp.float32),
        "layers": [],
    }
    for l in range(N_LAYERS):
        lk = jax.random.split(keys[1 + l], 4)
        params["layers"].append(
            {
                "ln1_g": jnp.ones((HIDDEN,), jnp.float32),
                "ln1_b": jnp.zeros((HIDDEN,), jnp.float32),
                "ln2_g": jnp.ones((HIDDEN,), jnp.float32),
                "ln2_b": jnp.zeros((HIDDEN,), jnp.float32),
                "qkv_w": norm(lk[0], (HIDDEN, 3 * HIDDEN)),
                "qkv_b": jnp.zeros((3 * HIDDEN,), jnp.float32),
                "dense_w": norm(lk[1], (HIDDEN, HIDDEN)),
                "dense_b": jnp.zeros((HIDDEN,), jnp.float32),
                "fc1_w": norm(lk[2], (HIDDEN, INTERMEDIATE)),
                "fc1_b": jnp.zeros((INTERMEDIATE,), jnp.float32),
                "fc2_w": norm(lk[3], (INTERMEDIATE, HIDDEN)),
                "fc2_b": jnp.zeros((HIDDEN,), jnp.float32),
            }
        )
    return params


if __name__ == "__main__":
    key = jax.random.PRNGKey(0)
    pkey, ikey = jax.random.split(key)
    params = init_params(pkey)

    input_ids = jax.random.randint(ikey, (BATCH, SEQ), 0, VOCAB, dtype=jnp.int32)
    attention_mask = jnp.array(
        [[1, 1, 1, 1, 1, 1, 0, 0],
         [1, 1, 1, 1, 1, 1, 1, 1]], dtype=jnp.int32
    )

    fwd = jax.jit(lambda ids, m: gptneox_encode(params, ids, m))
    out = fwd(input_ids, attention_mask)
    out = jax.block_until_ready(out)

    assert out.shape == (BATCH, HIDDEN), out.shape
    assert bool(jnp.all(jnp.isfinite(out)))
    print("KERNEL_OK")
</pallas_src>

<mosaic_0001>
module attributes {stable_mosaic.version = 11 : i64} {
  func.func @_fused_encoder_kernel(%arg0: i32, %arg1: memref<2xi32, #tpu.memory_space<smem>>, %arg2: memref<1x8x64xf32, #tpu.memory_space<vmem>>, %arg3: memref<1x8x8xf32, #tpu.memory_space<vmem>>, %arg4: memref<8x16xf32, #tpu.memory_space<vmem>>, %arg5: memref<8x16xf32, #tpu.memory_space<vmem>>, %arg6: memref<16x16xf32, #tpu.memory_space<vmem>>, %arg7: memref<2x1x64xf32, #tpu.memory_space<vmem>>, %arg8: memref<2x1x64xf32, #tpu.memory_space<vmem>>, %arg9: memref<2x1x64xf32, #tpu.memory_space<vmem>>, %arg10: memref<2x1x64xf32, #tpu.memory_space<vmem>>, %arg11: memref<2x64x192xf32, #tpu.memory_space<vmem>>, %arg12: memref<2x1x192xf32, #tpu.memory_space<vmem>>, %arg13: memref<2x64x64xf32, #tpu.memory_space<vmem>>, %arg14: memref<2x1x64xf32, #tpu.memory_space<vmem>>, %arg15: memref<2x64x256xf32, #tpu.memory_space<vmem>>, %arg16: memref<2x1x256xf32, #tpu.memory_space<vmem>>, %arg17: memref<2x256x64xf32, #tpu.memory_space<vmem>>, %arg18: memref<2x1x64xf32, #tpu.memory_space<vmem>>, %arg19: memref<1x64xf32, #tpu.memory_space<vmem>>, %arg20: memref<1x64xf32, #tpu.memory_space<vmem>>, %arg21: memref<1x1x64xf32, #tpu.memory_space<vmem>>, %arg22: memref<8x64xf32, #tpu.memory_space<vmem>>) attributes {dimension_semantics = [#tpu.dimension_semantics<parallel>], iteration_bounds = array<i64: 2>, scalar_prefetch = 1 : i64, scratch_operands = 1 : i64, tpu.core_type = #tpu.core_type<tc>, window_params = [{transform_indices = @transform_0, window_bounds = array<i64: 1, 8, 64>}, {transform_indices = @transform_1, window_bounds = array<i64: 1, 8, 8>}, {pipeline_mode = #tpu.pipeline_mode<synchronous>, transform_indices = @transform_2, window_bounds = array<i64: 8, 16>}, {pipeline_mode = #tpu.pipeline_mode<synchronous>, transform_indices = @transform_3, window_bounds = array<i64: 8, 16>}, {pipeline_mode = #tpu.pipeline_mode<synchronous>, transform_indices = @transform_4, window_bounds = array<i64: 16, 16>}, {pipeline_mode = #tpu.pipeline_mode<synchronous>, transform_indices = @transform_5, window_bounds = array<i64: 2, 1, 64>}, {pipeline_mode = #tpu.pipeline_mode<synchronous>, transform_indices = @transform_6, window_bounds = array<i64: 2, 1, 64>}, {pipeline_mode = #tpu.pipeline_mode<synchronous>, transform_indices = @transform_7, window_bounds = array<i64: 2, 1, 64>}, {pipeline_mode = #tpu.pipeline_mode<synchronous>, transform_indices = @transform_8, window_bounds = array<i64: 2, 1, 64>}, {pipeline_mode = #tpu.pipeline_mode<synchronous>, transform_indices = @transform_9, window_bounds = array<i64: 2, 64, 192>}, {pipeline_mode = #tpu.pipeline_mode<synchronous>, transform_indices = @transform_10, window_bounds = array<i64: 2, 1, 192>}, {pipeline_mode = #tpu.pipeline_mode<synchronous>, transform_indices = @transform_11, window_bounds = array<i64: 2, 64, 64>}, {pipeline_mode = #tpu.pipeline_mode<synchronous>, transform_indices = @transform_12, window_bounds = array<i64: 2, 1, 64>}, {pipeline_mode = #tpu.pipeline_mode<synchronous>, transform_indices = @transform_13, window_bounds = array<i64: 2, 64, 256>}, {pipeline_mode = #tpu.pipeline_mode<synchronous>, transform_indices = @transform_14, window_bounds = array<i64: 2, 1, 256>}, {pipeline_mode = #tpu.pipeline_mode<synchronous>, transform_indices = @transform_15, window_bounds = array<i64: 2, 256, 64>}, {pipeline_mode = #tpu.pipeline_mode<synchronous>, transform_indices = @transform_16, window_bounds = array<i64: 2, 1, 64>}, {pipeline_mode = #tpu.pipeline_mode<synchronous>, transform_indices = @transform_17, window_bounds = array<i64: 1, 64>}, {pipeline_mode = #tpu.pipeline_mode<synchronous>, transform_indices = @transform_18, window_bounds = array<i64: 1, 64>}, {transform_indices = @transform_19, window_bounds = array<i64: 1, 1, 64>}]} {
    %c0 = arith.constant 0 : index
    %c0_0 = arith.constant 0 : index
    %c0_1 = arith.constant 0 : index
    %0 = vector.load %arg2[%c0, %c0_0, %c0_1] : memref<1x8x64xf32, #tpu.memory_space<vmem>>, vector<1x8x64xf32>
    %1 = vector.shape_cast %0 : vector<1x8x64xf32> to vector<8x64xf32>
    %c0_2 = arith.constant 0 : index
    %c0_3 = arith.constant 0 : index
    %c0_4 = arith.constant 0 : index
    %2 = vector.load %arg3[%c0_2, %c0_3, %c0_4] : memref<1x8x8xf32, #tpu.memory_space<vmem>>, vector<1x8x8xf32>
    %3 = vector.shape_cast %2 : vector<1x8x8xf32> to vector<8x8xf32>
    %c0_5 = arith.constant 0 : index
    %c0_6 = arith.constant 0 : index
    %4 = vector.load %arg4[%c0_5, %c0_6] : memref<8x16xf32, #tpu.memory_space<vmem>>, vector<8x16xf32>
    %c0_7 = arith.constant 0 : index
    %c0_8 = arith.constant 0 : index
    %5 = vector.load %arg5[%c0_7, %c0_8] : memref<8x16xf32, #tpu.memory_space<vmem>>, vector<8x16xf32>
    %c0_9 = arith.constant 0 : index
    %c0_10 = arith.constant 0 : index
    %6 = vector.load %arg6[%c0_9, %c0_10] : memref<16x16xf32, #tpu.memory_space<vmem>>, vector<16x16xf32>
    %c0_11 = arith.constant 0 : index
    %c0_12 = arith.constant 0 : index
    %c0_13 = arith.constant 0 : index
    %7 = vector.load %arg7[%c0_11, %c0_12, %c0_13] : memref<2x1x64xf32, #tpu.memory_space<vmem>>, vector<1x1x64xf32>
    %8 = vector.shape_cast %7 : vector<1x1x64xf32> to vector<1x64xf32>
    %c0_14 = arith.constant 0 : index
    %c0_15 = arith.constant 0 : index
    %c0_16 = arith.constant 0 : index
    %9 = vector.load %arg8[%c0_14, %c0_15, %c0_16] : memref<2x1x64xf32, #tpu.memory_space<vmem>>, vector<1x1x64xf32>
    %10 = vector.shape_cast %9 : vector<1x1x64xf32> to vector<1x64xf32>
    %cst = arith.constant dense<0.000000e+00> : vector<8xf32>
    %11 = vector.multi_reduction <add>, %1, %cst [1] : vector<8x64xf32> to vector<8xf32>
    %12 = vector.shape_cast %11 : vector<8xf32> to vector<8x1xf32>
    %cst_17 = arith.constant 6.400000e+01 : f32
    %13 = vector.broadcast %cst_17 : f32 to vector<8x1xf32>
    %14 = arith.divf %12, %13 : vector<8x1xf32>
    %15 = vector.broadcast %14 : vector<8x1xf32> to vector<8x64xf32>
    %16 = arith.subf %1, %15 : vector<8x64xf32>
    %17 = arith.mulf %16, %16 : vector<8x64xf32>
    %cst_18 = arith.constant dense<0.000000e+00> : vector<8xf32>
    %18 = vector.multi_reduction <add>, %17, %cst_18 [1] : vector<8x64xf32> to vector<8xf32>
    %19 = vector.shape_cast %18 : vector<8xf32> to vector<8x1xf32>
    %cst_19 = arith.constant 6.400000e+01 : f32
    %20 = vector.broadcast %cst_19 : f32 to vector<8x1xf32>
    %21 = arith.divf %19, %20 : vector<8x1xf32>
    %22 = vector.broadcast %14 : vector<8x1xf32> to vector<8x64xf32>
    %23 = arith.subf %1, %22 : vector<8x64xf32>
    %cst_20 = arith.constant 9.99999974E-6 : f32
    %24 = vector.broadcast %cst_20 : f32 to vector<8x1xf32>
    %25 = arith.addf %21, %24 : vector<8x1xf32>
    %26 = math.rsqrt %25 : vector<8x1xf32>
    %27 = vector.broadcast %26 : vector<8x1xf32> to vector<8x64xf32>
    %28 = arith.mulf %23, %27 : vector<8x64xf32>
    %29 = vector.broadcast %8 : vector<1x64xf32> to vector<8x64xf32>
    %30 = arith.mulf %28, %29 : vector<8x64xf32>
    %31 = vector.broadcast %10 : vector<1x64xf32> to vector<8x64xf32>
    %32 = arith.addf %30, %31 : vector<8x64xf32>
    %c0_21 = arith.constant 0 : index
    %c0_22 = arith.constant 0 : index
    %c0_23 = arith.constant 0 : index
    %33 = vector.load %arg11[%c0_21, %c0_22, %c0_23] : memref<2x64x192xf32, #tpu.memory_space<vmem>>, vector<1x64x192xf32>
    %34 = vector.shape_cast %33 : vector<1x64x192xf32> to vector<64x192xf32>
    %cst_24 = arith.constant dense<0.000000e+00> : vector<8x192xf32>
    %35 = tpu.matmul %32, %34, %cst_24 {dimension_numbers = #tpu.dot_dimension_numbers<[1], [0], [0], [1], [0, 0, 1, 1], [], []>} : vector<8x64xf32>, vector<64x192xf32>, vector<8x192xf32> -> vector<8x192xf32>
    %c0_25 = arith.constant 0 : index
    %c0_26 = arith.constant 0 : index
    %c0_27 = arith.constant 0 : index
    %36 = vector.load %arg12[%c0_25, %c0_26, %c0_27] : memref<2x1x192xf32, #tpu.memory_space<vmem>>, vector<1x1x192xf32>
    %37 = vector.shape_cast %36 : vector<1x1x192xf32> to vector<1x192xf32>
    %38 = vector.broadcast %37 : vector<1x192xf32> to vector<8x192xf32>
    %39 = arith.addf %35, %38 : vector<8x192xf32>
    %40 = vector.extract_strided_slice %39 {offsets = [0, 0], sizes = [8, 16], strides = [1, 1]} : vector<8x192xf32> to vector<8x16xf32>
    %41 = arith.mulf %40, %4 : vector<8x16xf32>
    %cst_28 = arith.constant dense<0.000000e+00> : vector<8x16xf32>
    %42 = tpu.matmul %40, %6, %cst_28 {dimension_numbers = #tpu.dot_dimension_numbers<[1], [0], [0], [1], [0, 0, 1, 1], [], []>} : vector<8x16xf32>, vector<16x16xf32>, vector<8x16xf32> -> vector<8x16xf32>
    %43 = arith.mulf %42, %5 : vector<8x16xf32>
    %44 = arith.addf %41, %43 : vector<8x16xf32>
    %45 = vector.extract_strided_slice %39 {offsets = [0, 16], sizes = [8, 16], strides = [1, 1]} : vector<8x192xf32> to vector<8x16xf32>
    %46 = arith.mulf %45, %4 : vector<8x16xf32>
    %cst_29 = arith.constant dense<0.000000e+00> : vector<8x16xf32>
    %47 = tpu.matmul %45, %6, %cst_29 {dimension_numbers = #tpu.dot_dimension_numbers<[1], [0], [0], [1], [0, 0, 1, 1], [], []>} : vector<8x16xf32>, vector<16x16xf32>, vector<8x16xf32> -> vector<8x16xf32>
    %48 = arith.mulf %47, %5 : vector<8x16xf32>
    %49 = arith.addf %46, %48 : vector<8x16xf32>
    %50 = vector.extract_strided_slice %39 {offsets = [0, 32], sizes = [8, 16], strides = [1, 1]} : vector<8x192xf32> to vector<8x16xf32>
    %cst_30 = arith.constant dense<0.000000e+00> : vector<8x8xf32>
    %51 = tpu.matmul %44, %49, %cst_30 {dimension_numbers = #tpu.dot_dimension_numbers<[1], [1], [0], [0], [0, 0, 1, 0], [], []>} : vector<8x16xf32>, vector<8x16xf32>, vector<8x8xf32> -> vector<8x8xf32>
    %cst_31 = arith.constant 2.500000e-01 : f32
    %52 = vector.broadcast %cst_31 : f32 to vector<8x8xf32>
    %53 = arith.mulf %51, %52 : vector<8x8xf32>
    %54 = arith.addf %53, %3 : vector<8x8xf32>
    %cst_32 = arith.constant dense<0xFF800000> : vector<8xf32>
    %55 = vector.multi_reduction <maximumf>, %54, %cst_32 [1] : vector<8x8xf32> to vector<8xf32>
    %56 = vector.shape_cast %55 : vector<8xf32> to vector<8x1xf32>
    %57 = vector.broadcast %56 : vector<8x1xf32> to vector<8x8xf32>
    %58 = arith.subf %54, %57 : vector<8x8xf32>
    %59 = math.exp %58 : vector<8x8xf32>
    %cst_33 = arith.constant dense<0.000000e+00> : vector<8xf32>
    %60 = vector.multi_reduction <add>, %59, %cst_33 [1] : vector<8x8xf32> to vector<8xf32>
    %61 = vector.shape_cast %60 : vector<8xf32> to vector<8x1xf32>
    %62 = tpu.reciprocal %61 {approx = true} : vector<8x1xf32> -> vector<8x1xf32>
    %63 = vector.broadcast %62 : vector<8x1xf32> to vector<8x8xf32>
    %64 = arith.mulf %59, %63 : vector<8x8xf32>
    %cst_34 = arith.constant dense<0.000000e+00> : vector<8x16xf32>
    %65 = tpu.matmul %64, %50, %cst_34 {dimension_numbers = #tpu.dot_dimension_numbers<[1], [0], [0], [1], [0, 0, 1, 1], [], []>} : vector<8x8xf32>, vector<8x16xf32>, vector<8x16xf32> -> vector<8x16xf32>
    %c0_35 = arith.constant 0 : index
    %c0_36 = arith.constant 0 : index
    %66 = vector.load %arg22[%c0_35, %c0_36] : memref<8x64xf32, #tpu.memory_space<vmem>>, vector<8x16xf32>
    tpu.vector_store %arg22[%c0_35, %c0_36], %65 {strides = array<i32>} : memref<8x64xf32, #tpu.memory_space<vmem>>, vector<8x16xf32>,
    %67 = vector.extract_strided_slice %39 {offsets = [0, 48], sizes = [8, 16], strides = [1, 1]} : vector<8x192xf32> to vector<8x16xf32>
    %68 = arith.mulf %67, %4 : vector<8x16xf32>
    %cst_37 = arith.constant dense<0.000000e+00> : vector<8x16xf32>
    %69 = tpu.matmul %67, %6, %cst_37 {dimension_numbers = #tpu.dot_dimension_numbers<[1], [0], [0], [1], [0, 0, 1, 1], [], []>} : vector<8x16xf32>, vector<16x16xf32>, vector<8x16xf32> -> vector<8x16xf32>
    %70 = arith.mulf %69, %5 : vector<8x16xf32>
    %71 = arith.addf %68, %70 : vector<8x16xf32>
    %72 = vector.extract_strided_slice %39 {offsets = [0, 64], sizes = [8, 16], strides = [1, 1]} : vector<8x192xf32> to vector<8x16xf32>
    %73 = arith.mulf %72, %4 : vector<8x16xf32>
    %cst_38 = arith.constant dense<0.000000e+00> : vector<8x16xf32>
    %74 = tpu.matmul %72, %6, %cst_38 {dimension_numbers = #tpu.dot_dimension_numbers<[1], [0], [0], [1], [0, 0, 1, 1], [], []>} : vector<8x16xf32>, vector<16x16xf32>, vector<8x16xf32> -> vector<8x16xf32>
    %75 = arith.mulf %74, %5 : vector<8x16xf32>
    %76 = arith.addf %73, %75 : vector<8x16xf32>
    %77 = vector.extract_strided_slice %39 {offsets = [0, 80], sizes = [8, 16], strides = [1, 1]} : vector<8x192xf32> to vector<8x16xf32>
    %cst_39 = arith.constant dense<0.000000e+00> : vector<8x8xf32>
    %78 = tpu.matmul %71, %76, %cst_39 {dimension_numbers = #tpu.dot_dimension_numbers<[1], [1], [0], [0], [0, 0, 1, 0], [], []>} : vector<8x16xf32>, vector<8x16xf32>, vector<8x8xf32> -> vector<8x8xf32>
    %cst_40 = arith.constant 2.500000e-01 : f32
    %79 = vector.broadcast %cst_40 : f32 to vector<8x8xf32>
    %80 = arith.mulf %78, %79 : vector<8x8xf32>
    %81 = arith.addf %80, %3 : vector<8x8xf32>
    %cst_41 = arith.constant dense<0xFF800000> : vector<8xf32>
    %82 = vector.multi_reduction <maximumf>, %81, %cst_41 [1] : vector<8x8xf32> to vector<8xf32>
    %83 = vector.shape_cast %82 : vector<8xf32> to vector<8x1xf32>
    %84 = vector.broadcast %83 : vector<8x1xf32> to vector<8x8xf32>
    %85 = arith.subf %81, %84 : vector<8x8xf32>
    %86 = math.exp %85 : vector<8x8xf32>
    %cst_42 = arith.constant dense<0.000000e+00> : vector<8xf32>
    %87 = vector.multi_reduction <add>, %86, %cst_42 [1] : vector<8x8xf32> to vector<8xf32>
    %88 = vector.shape_cast %87 : vector<8xf32> to vector<8x1xf32>
    %89 = tpu.reciprocal %88 {approx = true} : vector<8x1xf32> -> vector<8x1xf32>
    %90 = vector.broadcast %89 : vector<8x1xf32> to vector<8x8xf32>
    %91 = arith.mulf %86, %90 : vector<8x8xf32>
    %cst_43 = arith.constant dense<0.000000e+00> : vector<8x16xf32>
    %92 = tpu.matmul %91, %77, %cst_43 {dimension_numbers = #tpu.dot_dimension_numbers<[1], [0], [0], [1], [0, 0, 1, 1], [], []>} : vector<8x8xf32>, vector<8x16xf32>, vector<8x16xf32> -> vector<8x16xf32>
    %c0_44 = arith.constant 0 : index
    %c16 = arith.constant 16 : index
    %93 = vector.load %arg22[%c0_44, %c16] : memref<8x64xf32, #tpu.memory_space<vmem>>, vector<8x16xf32>
    tpu.vector_store %arg22[%c0_44, %c16], %92 {strides = array<i32>} : memref<8x64xf32, #tpu.memory_space<vmem>>, vector<8x16xf32>,
    %94 = vector.extract_strided_slice %39 {offsets = [0, 96], sizes = [8, 16], strides = [1, 1]} : vector<8x192xf32> to vector<8x16xf32>
    %95 = arith.mulf %94, %4 : vector<8x16xf32>
    %cst_45 = arith.constant dense<0.000000e+00> : vector<8x16xf32>
    %96 = tpu.matmul %94, %6, %cst_45 {dimension_numbers = #tpu.dot_dimension_numbers<[1], [0], [0], [1], [0, 0, 1, 1], [], []>} : vector<8x16xf32>, vector<16x16xf32>, vector<8x16xf32> -> vector<8x16xf32>
    %97 = arith.mulf %96, %5 : vector<8x16xf32>
    %98 = arith.addf %95, %97 : vector<8x16xf32>
    %99 = vector.extract_strided_slice %39 {offsets = [0, 112], sizes = [8, 16], strides = [1, 1]} : vector<8x192xf32> to vector<8x16xf32>
    %100 = arith.mulf %99, %4 : vector<8x16xf32>
    %cst_46 = arith.constant dense<0.000000e+00> : vector<8x16xf32>
    %101 = tpu.matmul %99, %6, %cst_46 {dimension_numbers = #tpu.dot_dimension_numbers<[1], [0], [0], [1], [0, 0, 1, 1], [], []>} : vector<8x16xf32>, vector<16x16xf32>, vector<8x16xf32> -> vector<8x16xf32>
    %102 = arith.mulf %101, %5 : vector<8x16xf32>
    %103 = arith.addf %100, %102 : vector<8x16xf32>
    %104 = vector.extract_strided_slice %39 {offsets = [0, 128], sizes = [8, 16], strides = [1, 1]} : vector<8x192xf32> to vector<8x16xf32>
    %cst_47 = arith.constant dense<0.000000e+00> : vector<8x8xf32>
    %105 = tpu.matmul %98, %103, %cst_47 {dimension_numbers = #tpu.dot_dimension_numbers<[1], [1], [0], [0], [0, 0, 1, 0], [], []>} : vector<8x16xf32>, vector<8x16xf32>, vector<8x8xf32> -> vector<8x8xf32>
    %cst_48 = arith.constant 2.500000e-01 : f32
    %106 = vector.broadcast %cst_48 : f32 to vector<8x8xf32>
    %107 = arith.mulf %105, %106 : vector<8x8xf32>
    %108 = arith.addf %107, %3 : vector<8x8xf32>
    %cst_49 = arith.constant dense<0xFF800000> : vector<8xf32>
    %109 = vector.multi_reduction <maximumf>, %108, %cst_49 [1] : vector<8x8xf32> to vector<8xf32>
    %110 = vector.shape_cast %109 : vector<8xf32> to vector<8x1xf32>
    %111 = vector.broadcast %110 : vector<8x1xf32> to vector<8x8xf32>
    %112 = arith.subf %108, %111 : vector<8x8xf32>
    %113 = math.exp %112 : vector<8x8xf32>
    %cst_50 = arith.constant dense<0.000000e+00> : vector<8xf32>
    %114 = vector.multi_reduction <add>, %113, %cst_50 [1] : vector<8x8xf32> to vector<8xf32>
    %115 = vector.shape_cast %114 : vector<8xf32> to vector<8x1xf32>
    %116 = tpu.reciprocal %115 {approx = true} : vector<8x1xf32> -> vector<8x1xf32>
    %117 = vector.broadcast %116 : vector<8x1xf32> to vector<8x8xf32>
    %118 = arith.mulf %113, %117 : vector<8x8xf32>
    %cst_51 = arith.constant dense<0.000000e+00> : vector<8x16xf32>
    %119 = tpu.matmul %118, %104, %cst_51 {dimension_numbers = #tpu.dot_dimension_numbers<[1], [0], [0], [1], [0, 0, 1, 1], [], []>} : vector<8x8xf32>, vector<8x16xf32>, vector<8x16xf32> -> vector<8x16xf32>
    %c0_52 = arith.constant 0 : index
    %c32 = arith.constant 32 : index
    %120 = vector.load %arg22[%c0_52, %c32] : memref<8x64xf32, #tpu.memory_space<vmem>>, vector<8x16xf32>
    tpu.vector_store %arg22[%c0_52, %c32], %119 {strides = array<i32>} : memref<8x64xf32, #tpu.memory_space<vmem>>, vector<8x16xf32>,
    %121 = vector.extract_strided_slice %39 {offsets = [0, 144], sizes = [8, 16], strides = [1, 1]} : vector<8x192xf32> to vector<8x16xf32>
    %122 = arith.mulf %121, %4 : vector<8x16xf32>
    %cst_53 = arith.constant dense<0.000000e+00> : vector<8x16xf32>
    %123 = tpu.matmul %121, %6, %cst_53 {dimension_numbers = #tpu.dot_dimension_numbers<[1], [0], [0], [1], [0, 0, 1, 1], [], []>} : vector<8x16xf32>, vector<16x16xf32>, vector<8x16xf32> -> vector<8x16xf32>
    %124 = arith.mulf %123, %5 : vector<8x16xf32>
    %125 = arith.addf %122, %124 : vector<8x16xf32>
    %126 = vector.extract_strided_slice %39 {offsets = [0, 160], sizes = [8, 16], strides = [1, 1]} : vector<8x192xf32> to vector<8x16xf32>
    %127 = arith.mulf %126, %4 : vector<8x16xf32>
    %cst_54 = arith.constant dense<0.000000e+00> : vector<8x16xf32>
    %128 = tpu.matmul %126, %6, %cst_54 {dimension_numbers = #tpu.dot_dimension_numbers<[1], [0], [0], [1], [0, 0, 1, 1], [], []>} : vector<8x16xf32>, vector<16x16xf32>, vector<8x16xf32> -> vector<8x16xf32>
    %129 = arith.mulf %128, %5 : vector<8x16xf32>
    %130 = arith.addf %127, %129 : vector<8x16xf32>
    %131 = vector.extract_strided_slice %39 {offsets = [0, 176], sizes = [8, 16], strides = [1, 1]} : vector<8x192xf32> to vector<8x16xf32>
    %cst_55 = arith.constant dense<0.000000e+00> : vector<8x8xf32>
    %132 = tpu.matmul %125, %130, %cst_55 {dimension_numbers = #tpu.dot_dimension_numbers<[1], [1], [0], [0], [0, 0, 1, 0], [], []>} : vector<8x16xf32>, vector<8x16xf32>, vector<8x8xf32> -> vector<8x8xf32>
    %cst_56 = arith.constant 2.500000e-01 : f32
    %133 = vector.broadcast %cst_56 : f32 to vector<8x8xf32>
    %134 = arith.mulf %132, %133 : vector<8x8xf32>
    %135 = arith.addf %134, %3 : vector<8x8xf32>
    %cst_57 = arith.constant dense<0xFF800000> : vector<8xf32>
    %136 = vector.multi_reduction <maximumf>, %135, %cst_57 [1] : vector<8x8xf32> to vector<8xf32>
    %137 = vector.shape_cast %136 : vector<8xf32> to vector<8x1xf32>
    %138 = vector.broadcast %137 : vector<8x1xf32> to vector<8x8xf32>
    %139 = arith.subf %135, %138 : vector<8x8xf32>
    %140 = math.exp %139 : vector<8x8xf32>
    %cst_58 = arith.constant dense<0.000000e+00> : vector<8xf32>
    %141 = vector.multi_reduction <add>, %140, %cst_58 [1] : vector<8x8xf32> to vector<8xf32>
    %142 = vector.shape_cast %141 : vector<8xf32> to vector<8x1xf32>
    %143 = tpu.reciprocal %142 {approx = true} : vector<8x1xf32> -> vector<8x1xf32>
    %144 = vector.broadcast %143 : vector<8x1xf32> to vector<8x8xf32>
    %145 = arith.mulf %140, %144 : vector<8x8xf32>
    %cst_59 = arith.constant dense<0.000000e+00> : vector<8x16xf32>
    %146 = tpu.matmul %145, %131, %cst_59 {dimension_numbers = #tpu.dot_dimension_numbers<[1], [0], [0], [1], [0, 0, 1, 1], [], []>} : vector<8x8xf32>, vector<8x16xf32>, vector<8x16xf32> -> vector<8x16xf32>
    %c0_60 = arith.constant 0 : index
    %c48 = arith.constant 48 : index
    %147 = vector.load %arg22[%c0_60, %c48] : memref<8x64xf32, #tpu.memory_space<vmem>>, vector<8x16xf32>
    tpu.vector_store %arg22[%c0_60, %c48], %146 {strides = array<i32>} : memref<8x64xf32, #tpu.memory_space<vmem>>, vector<8x16xf32>,
    %c0_61 = arith.constant 0 : index
    %c0_62 = arith.constant 0 : index
    %148 = vector.load %arg22[%c0_61, %c0_62] : memref<8x64xf32, #tpu.memory_space<vmem>>, vector<8x64xf32>
    %c0_63 = arith.constant 0 : index
    %c0_64 = arith.constant 0 : index
    %c0_65 = arith.constant 0 : index
    %149 = vector.load %arg13[%c0_63, %c0_64, %c0_65] : memref<2x64x64xf32, #tpu.memory_space<vmem>>, vector<1x64x64xf32>
    %150 = vector.shape_cast %149 : vector<1x64x64xf32> to vector<64x64xf32>
    %cst_66 = arith.constant dense<0.000000e+00> : vector<8x64xf32>
    %151 = tpu.matmul %148, %150, %cst_66 {dimension_numbers = #tpu.dot_dimension_numbers<[1], [0], [0], [1], [0, 0, 1, 1], [], []>} : vector<8x64xf32>, vector<64x64xf32>, vector<8x64xf32> -> vector<8x64xf32>
    %c0_67 = arith.constant 0 : index
    %c0_68 = arith.constant 0 : index
    %c0_69 = arith.constant 0 : index
    %152 = vector.load %arg14[%c0_67, %c0_68, %c0_69] : memref<2x1x64xf32, #tpu.memory_space<vmem>>, vector<1x1x64xf32>
    %153 = vector.shape_cast %152 : vector<1x1x64xf32> to vector<1x64xf32>
    %154 = vector.broadcast %153 : vector<1x64xf32> to vector<8x64xf32>
    %155 = arith.addf %151, %154 : vector<8x64xf32>
    %c0_70 = arith.constant 0 : index
    %c0_71 = arith.constant 0 : index
    %c0_72 = arith.constant 0 : index
    %156 = vector.load %arg9[%c0_70, %c0_71, %c0_72] : memref<2x1x64xf32, #tpu.memory_space<vmem>>, vector<1x1x64xf32>
    %157 = vector.shape_cast %156 : vector<1x1x64xf32> to vector<1x64xf32>
    %c0_73 = arith.constant 0 : index
    %c0_74 = arith.constant 0 : index
    %c0_75 = arith.constant 0 : index
    %158 = vector.load %arg10[%c0_73, %c0_74, %c0_75] : memref<2x1x64xf32, #tpu.memory_space<vmem>>, vector<1x1x64xf32>
    %159 = vector.shape_cast %158 : vector<1x1x64xf32> to vector<1x64xf32>
    %cst_76 = arith.constant dense<0.000000e+00> : vector<8xf32>
    %160 = vector.multi_reduction <add>, %1, %cst_76 [1] : vector<8x64xf32> to vector<8xf32>
    %161 = vector.shape_cast %160 : vector<8xf32> to vector<8x1xf32>
    %cst_77 = arith.constant 6.400000e+01 : f32
    %162 = vector.broadcast %cst_77 : f32 to vector<8x1xf32>
    %163 = arith.divf %161, %162 : vector<8x1xf32>
    %164 = vector.broadcast %163 : vector<8x1xf32> to vector<8x64xf32>
    %165 = arith.subf %1, %164 : vector<8x64xf32>
    %166 = arith.mulf %165, %165 : vector<8x64xf32>
    %cst_78 = arith.constant dense<0.000000e+00> : vector<8xf32>
    %167 = vector.multi_reduction <add>, %166, %cst_78 [1] : vector<8x64xf32> to vector<8xf32>
    %168 = vector.shape_cast %167 : vector<8xf32> to vector<8x1xf32>
    %cst_79 = arith.constant 6.400000e+01 : f32
    %169 = vector.broadcast %cst_79 : f32 to vector<8x1xf32>
    %170 = arith.divf %168, %169 : vector<8x1xf32>
    %171 = vector.broadcast %163 : vector<8x1xf32> to vector<8x64xf32>
    %172 = arith.subf %1, %171 : vector<8x64xf32>
    %cst_80 = arith.constant 9.99999974E-6 : f32
    %173 = vector.broadcast %cst_80 : f32 to vector<8x1xf32>
    %174 = arith.addf %170, %173 : vector<8x1xf32>
    %175 = math.rsqrt %174 : vector<8x1xf32>
    %176 = vector.broadcast %175 : vector<8x1xf32> to vector<8x64xf32>
    %177 = arith.mulf %172, %176 : vector<8x64xf32>
    %178 = vector.broadcast %157 : vector<1x64xf32> to vector<8x64xf32>
    %179 = arith.mulf %177, %178 : vector<8x64xf32>
    %180 = vector.broadcast %159 : vector<1x64xf32> to vector<8x64xf32>
    %181 = arith.addf %179, %180 : vector<8x64xf32>
    %c0_81 = arith.constant 0 : index
    %c0_82 = arith.constant 0 : index
    %c0_83 = arith.constant 0 : index
    %182 = vector.load %arg15[%c0_81, %c0_82, %c0_83] : memref<2x64x256xf32, #tpu.memory_space<vmem>>, vector<1x64x256xf32>
    %183 = vector.shape_cast %182 : vector<1x64x256xf32> to vector<64x256xf32>
    %cst_84 = arith.constant dense<0.000000e+00> : vector<8x256xf32>
    %184 = tpu.matmul %181, %183, %cst_84 {dimension_numbers = #tpu.dot_dimension_numbers<[1], [0], [0], [1], [0, 0, 1, 1], [], []>} : vector<8x64xf32>, vector<64x256xf32>, vector<8x256xf32> -> vector<8x256xf32>
    %c0_85 = arith.constant 0 : index
    %c0_86 = arith.constant 0 : index
    %c0_87 = arith.constant 0 : index
    %185 = vector.load %arg16[%c0_85, %c0_86, %c0_87] : memref<2x1x256xf32, #tpu.memory_space<vmem>>, vector<1x1x256xf32>
    %186 = vector.shape_cast %185 : vector<1x1x256xf32> to vector<1x256xf32>
    %187 = vector.broadcast %186 : vector<1x256xf32> to vector<8x256xf32>
    %188 = arith.addf %184, %187 : vector<8x256xf32>
    %cst_88 = arith.constant 5.000000e-01 : f32
    %189 = vector.broadcast %cst_88 : f32 to vector<8x256xf32>
    %190 = arith.mulf %189, %188 : vector<8x256xf32>
    %cst_89 = arith.constant 4.471500e-02 : f32
    %191 = vector.broadcast %cst_89 : f32 to vector<8x256xf32>
    %192 = arith.mulf %191, %188 : vector<8x256xf32>
    %193 = arith.mulf %192, %188 : vector<8x256xf32>
    %194 = arith.mulf %193, %188 : vector<8x256xf32>
    %195 = arith.addf %188, %194 : vector<8x256xf32>
    %cst_90 = arith.constant 0.797884583 : f32
    %196 = vector.broadcast %cst_90 : f32 to vector<8x256xf32>
    %197 = arith.mulf %196, %195 : vector<8x256xf32>
    %198 = math.tanh %197 : vector<8x256xf32>
    %cst_91 = arith.constant 1.000000e+00 : f32
    %199 = vector.broadcast %cst_91 : f32 to vector<8x256xf32>
    %200 = arith.addf %199, %198 : vector<8x256xf32>
    %201 = arith.mulf %190, %200 : vector<8x256xf32>
    %c0_92 = arith.constant 0 : index
    %c0_93 = arith.constant 0 : index
    %c0_94 = arith.constant 0 : index
    %202 = vector.load %arg17[%c0_92, %c0_93, %c0_94] : memref<2x256x64xf32, #tpu.memory_space<vmem>>, vector<1x256x64xf32>
    %203 = vector.shape_cast %202 : vector<1x256x64xf32> to vector<256x64xf32>
    %cst_95 = arith.constant dense<0.000000e+00> : vector<8x64xf32>
    %204 = tpu.matmul %201, %203, %cst_95 {dimension_numbers = #tpu.dot_dimension_numbers<[1], [0], [0], [1], [0, 0, 1, 1], [], []>} : vector<8x256xf32>, vector<256x64xf32>, vector<8x64xf32> -> vector<8x64xf32>
    %c0_96 = arith.constant 0 : index
    %c0_97 = arith.constant 0 : index
    %c0_98 = arith.constant 0 : index
    %205 = vector.load %arg18[%c0_96, %c0_97, %c0_98] : memref<2x1x64xf32, #tpu.memory_space<vmem>>, vector<1x1x64xf32>
    %206 = vector.shape_cast %205 : vector<1x1x64xf32> to vector<1x64xf32>
    %207 = vector.broadcast %206 : vector<1x64xf32> to vector<8x64xf32>
    %208 = arith.addf %204, %207 : vector<8x64xf32>
    %209 = arith.addf %1, %155 : vector<8x64xf32>
    %210 = arith.addf %209, %208 : vector<8x64xf32>
    %c1 = arith.constant 1 : index
    %c0_99 = arith.constant 0 : index
    %c0_100 = arith.constant 0 : index
    %211 = vector.load %arg7[%c1, %c0_99, %c0_100] : memref<2x1x64xf32, #tpu.memory_space<vmem>>, vector<1x1x64xf32>
    %212 = vector.shape_cast %211 : vector<1x1x64xf32> to vector<1x64xf32>
    %c1_101 = arith.constant 1 : index
    %c0_102 = arith.constant 0 : index
    %c0_103 = arith.constant 0 : index
    %213 = vector.load %arg8[%c1_101, %c0_102, %c0_103] : memref<2x1x64xf32, #tpu.memory_space<vmem>>, vector<1x1x64xf32>
    %214 = vector.shape_cast %213 : vector<1x1x64xf32> to vector<1x64xf32>
    %cst_104 = arith.constant dense<0.000000e+00> : vector<8xf32>
    %215 = vector.multi_reduction <add>, %210, %cst_104 [1] : vector<8x64xf32> to vector<8xf32>
    %216 = vector.shape_cast %215 : vector<8xf32> to vector<8x1xf32>
    %cst_105 = arith.constant 6.400000e+01 : f32
    %217 = vector.broadcast %cst_105 : f32 to vector<8x1xf32>
    %218 = arith.divf %216, %217 : vector<8x1xf32>
    %219 = vector.broadcast %218 : vector<8x1xf32> to vector<8x64xf32>
    %220 = arith.subf %210, %219 : vector<8x64xf32>
    %221 = arith.mulf %220, %220 : vector<8x64xf32>
    %cst_106 = arith.constant dense<0.000000e+00> : vector<8xf32>
    %222 = vector.multi_reduction <add>, %221, %cst_106 [1] : vector<8x64xf32> to vector<8xf32>
    %223 = vector.shape_cast %222 : vector<8xf32> to vector<8x1xf32>
    %cst_107 = arith.constant 6.400000e+01 : f32
    %224 = vector.broadcast %cst_107 : f32 to vector<8x1xf32>
    %225 = arith.divf %223, %224 : vector<8x1xf32>
    %226 = vector.broadcast %218 : vector<8x1xf32> to vector<8x64xf32>
    %227 = arith.subf %210, %226 : vector<8x64xf32>
    %cst_108 = arith.constant 9.99999974E-6 : f32
    %228 = vector.broadcast %cst_108 : f32 to vector<8x1xf32>
    %229 = arith.addf %225, %228 : vector<8x1xf32>
    %230 = math.rsqrt %229 : vector<8x1xf32>
    %231 = vector.broadcast %230 : vector<8x1xf32> to vector<8x64xf32>
    %232 = arith.mulf %227, %231 : vector<8x64xf32>
    %233 = vector.broadcast %212 : vector<1x64xf32> to vector<8x64xf32>
    %234 = arith.mulf %232, %233 : vector<8x64xf32>
    %235 = vector.broadcast %214 : vector<1x64xf32> to vector<8x64xf32>
    %236 = arith.addf %234, %235 : vector<8x64xf32>
    %c1_109 = arith.constant 1 : index
    %c0_110 = arith.constant 0 : index
    %c0_111 = arith.constant 0 : index
    %237 = vector.load %arg11[%c1_109, %c0_110, %c0_111] : memref<2x64x192xf32, #tpu.memory_space<vmem>>, vector<1x64x192xf32>
    %238 = vector.shape_cast %237 : vector<1x64x192xf32> to vector<64x192xf32>
    %cst_112 = arith.constant dense<0.000000e+00> : vector<8x192xf32>
    %239 = tpu.matmul %236, %238, %cst_112 {dimension_numbers = #tpu.dot_dimension_numbers<[1], [0], [0], [1], [0, 0, 1, 1], [], []>} : vector<8x64xf32>, vector<64x192xf32>, vector<8x192xf32> -> vector<8x192xf32>
    %c1_113 = arith.constant 1 : index
    %c0_114 = arith.constant 0 : index
    %c0_115 = arith.constant 0 : index
    %240 = vector.load %arg12[%c1_113, %c0_114, %c0_115] : memref<2x1x192xf32, #tpu.memory_space<vmem>>, vector<1x1x192xf32>
    %241 = vector.shape_cast %240 : vector<1x1x192xf32> to vector<1x192xf32>
    %242 = vector.broadcast %241 : vector<1x192xf32> to vector<8x192xf32>
    %243 = arith.addf %239, %242 : vector<8x192xf32>
    %244 = vector.extract_strided_slice %243 {offsets = [0, 0], sizes = [8, 16], strides = [1, 1]} : vector<8x192xf32> to vector<8x16xf32>
    %245 = arith.mulf %244, %4 : vector<8x16xf32>
    %cst_116 = arith.constant dense<0.000000e+00> : vector<8x16xf32>
    %246 = tpu.matmul %244, %6, %cst_116 {dimension_numbers = #tpu.dot_dimension_numbers<[1], [0], [0], [1], [0, 0, 1, 1], [], []>} : vector<8x16xf32>, vector<16x16xf32>, vector<8x16xf32> -> vector<8x16xf32>
    %247 = arith.mulf %246, %5 : vector<8x16xf32>
    %248 = arith.addf %245, %247 : vector<8x16xf32>
    %249 = vector.extract_strided_slice %243 {offsets = [0, 16], sizes = [8, 16], strides = [1, 1]} : vector<8x192xf32> to vector<8x16xf32>
    %250 = arith.mulf %249, %4 : vector<8x16xf32>
    %cst_117 = arith.constant dense<0.000000e+00> : vector<8x16xf32>
    %251 = tpu.matmul %249, %6, %cst_117 {dimension_numbers = #tpu.dot_dimension_numbers<[1], [0], [0], [1], [0, 0, 1, 1], [], []>} : vector<8x16xf32>, vector<16x16xf32>, vector<8x16xf32> -> vector<8x16xf32>
    %252 = arith.mulf %251, %5 : vector<8x16xf32>
    %253 = arith.addf %250, %252 : vector<8x16xf32>
    %254 = vector.extract_strided_slice %243 {offsets = [0, 32], sizes = [8, 16], strides = [1, 1]} : vector<8x192xf32> to vector<8x16xf32>
    %cst_118 = arith.constant dense<0.000000e+00> : vector<8x8xf32>
    %255 = tpu.matmul %248, %253, %cst_118 {dimension_numbers = #tpu.dot_dimension_numbers<[1], [1], [0], [0], [0, 0, 1, 0], [], []>} : vector<8x16xf32>, vector<8x16xf32>, vector<8x8xf32> -> vector<8x8xf32>
    %cst_119 = arith.constant 2.500000e-01 : f32
    %256 = vector.broadcast %cst_119 : f32 to vector<8x8xf32>
    %257 = arith.mulf %255, %256 : vector<8x8xf32>
    %258 = arith.addf %257, %3 : vector<8x8xf32>
    %cst_120 = arith.constant dense<0xFF800000> : vector<8xf32>
    %259 = vector.multi_reduction <maximumf>, %258, %cst_120 [1] : vector<8x8xf32> to vector<8xf32>
    %260 = vector.shape_cast %259 : vector<8xf32> to vector<8x1xf32>
    %261 = vector.broadcast %260 : vector<8x1xf32> to vector<8x8xf32>
    %262 = arith.subf %258, %261 : vector<8x8xf32>
    %263 = math.exp %262 : vector<8x8xf32>
    %cst_121 = arith.constant dense<0.000000e+00> : vector<8xf32>
    %264 = vector.multi_reduction <add>, %263, %cst_121 [1] : vector<8x8xf32> to vector<8xf32>
    %265 = vector.shape_cast %264 : vector<8xf32> to vector<8x1xf32>
    %266 = tpu.reciprocal %265 {approx = true} : vector<8x1xf32> -> vector<8x1xf32>
    %267 = vector.broadcast %266 : vector<8x1xf32> to vector<8x8xf32>
    %268 = arith.mulf %263, %267 : vector<8x8xf32>
    %cst_122 = arith.constant dense<0.000000e+00> : vector<8x16xf32>
    %269 = tpu.matmul %268, %254, %cst_122 {dimension_numbers = #tpu.dot_dimension_numbers<[1], [0], [0], [1], [0, 0, 1, 1], [], []>} : vector<8x8xf32>, vector<8x16xf32>, vector<8x16xf32> -> vector<8x16xf32>
    %c0_123 = arith.constant 0 : index
    %c0_124 = arith.constant 0 : index
    %270 = vector.load %arg22[%c0_123, %c0_124] : memref<8x64xf32, #tpu.memory_space<vmem>>, vector<8x16xf32>
    tpu.vector_store %arg22[%c0_123, %c0_124], %269 {strides = array<i32>} : memref<8x64xf32, #tpu.memory_space<vmem>>, vector<8x16xf32>,
    %271 = vector.extract_strided_slice %243 {offsets = [0, 48], sizes = [8, 16], strides = [1, 1]} : vector<8x192xf32> to vector<8x16xf32>
    %272 = arith.mulf %271, %4 : vector<8x16xf32>
    %cst_125 = arith.constant dense<0.000000e+00> : vector<8x16xf32>
    %273 = tpu.matmul %271, %6, %cst_125 {dimension_numbers = #tpu.dot_dimension_numbers<[1], [0], [0], [1], [0, 0, 1, 1], [], []>} : vector<8x16xf32>, vector<16x16xf32>, vector<8x16xf32> -> vector<8x16xf32>
    %274 = arith.mulf %273, %5 : vector<8x16xf32>
    %275 = arith.addf %272, %274 : vector<8x16xf32>
    %276 = vector.extract_strided_slice %243 {offsets = [0, 64], sizes = [8, 16], strides = [1, 1]} : vector<8x192xf32> to vector<8x16xf32>
    %277 = arith.mulf %276, %4 : vector<8x16xf32>
    %cst_126 = arith.constant dense<0.000000e+00> : vector<8x16xf32>
    %278 = tpu.matmul %276, %6, %cst_126 {dimension_numbers = #tpu.dot_dimension_numbers<[1], [0], [0], [1], [0, 0, 1, 1], [], []>} : vector<8x16xf32>, vector<16x16xf32>, vector<8x16xf32> -> vector<8x16xf32>
    %279 = arith.mulf %278, %5 : vector<8x16xf32>
    %280 = arith.addf %277, %279 : vector<8x16xf32>
    %281 = vector.extract_strided_slice %243 {offsets = [0, 80], sizes = [8, 16], strides = [1, 1]} : vector<8x192xf32> to vector<8x16xf32>
    %cst_127 = arith.constant dense<0.000000e+00> : vector<8x8xf32>
    %282 = tpu.matmul %275, %280, %cst_127 {dimension_numbers = #tpu.dot_dimension_numbers<[1], [1], [0], [0], [0, 0, 1, 0], [], []>} : vector<8x16xf32>, vector<8x16xf32>, vector<8x8xf32> -> vector<8x8xf32>
    %cst_128 = arith.constant 2.500000e-01 : f32
    %283 = vector.broadcast %cst_128 : f32 to vector<8x8xf32>
    %284 = arith.mulf %282, %283 : vector<8x8xf32>
    %285 = arith.addf %284, %3 : vector<8x8xf32>
    %cst_129 = arith.constant dense<0xFF800000> : vector<8xf32>
    %286 = vector.multi_reduction <maximumf>, %285, %cst_129 [1] : vector<8x8xf32> to vector<8xf32>
    %287 = vector.shape_cast %286 : vector<8xf32> to vector<8x1xf32>
    %288 = vector.broadcast %287 : vector<8x1xf32> to vector<8x8xf32>
    %289 = arith.subf %285, %288 : vector<8x8xf32>
    %290 = math.exp %289 : vector<8x8xf32>
    %cst_130 = arith.constant dense<0.000000e+00> : vector<8xf32>
    %291 = vector.multi_reduction <add>, %290, %cst_130 [1] : vector<8x8xf32> to vector<8xf32>
    %292 = vector.shape_cast %291 : vector<8xf32> to vector<8x1xf32>
    %293 = tpu.reciprocal %292 {approx = true} : vector<8x1xf32> -> vector<8x1xf32>
    %294 = vector.broadcast %293 : vector<8x1xf32> to vector<8x8xf32>
    %295 = arith.mulf %290, %294 : vector<8x8xf32>
    %cst_131 = arith.constant dense<0.000000e+00> : vector<8x16xf32>
    %296 = tpu.matmul %295, %281, %cst_131 {dimension_numbers = #tpu.dot_dimension_numbers<[1], [0], [0], [1], [0, 0, 1, 1], [], []>} : vector<8x8xf32>, vector<8x16xf32>, vector<8x16xf32> -> vector<8x16xf32>
    %c0_132 = arith.constant 0 : index
    %c16_133 = arith.constant 16 : index
    %297 = vector.load %arg22[%c0_132, %c16_133] : memref<8x64xf32, #tpu.memory_space<vmem>>, vector<8x16xf32>
    tpu.vector_store %arg22[%c0_132, %c16_133], %296 {strides = array<i32>} : memref<8x64xf32, #tpu.memory_space<vmem>>, vector<8x16xf32>,
    %298 = vector.extract_strided_slice %243 {offsets = [0, 96], sizes = [8, 16], strides = [1, 1]} : vector<8x192xf32> to vector<8x16xf32>
    %299 = arith.mulf %298, %4 : vector<8x16xf32>
    %cst_134 = arith.constant dense<0.000000e+00> : vector<8x16xf32>
    %300 = tpu.matmul %298, %6, %cst_134 {dimension_numbers = #tpu.dot_dimension_numbers<[1], [0], [0], [1], [0, 0, 1, 1], [], []>} : vector<8x16xf32>, vector<16x16xf32>, vector<8x16xf32> -> vector<8x16xf32>
    %301 = arith.mulf %300, %5 : vector<8x16xf32>
    %302 = arith.addf %299, %301 : vector<8x16xf32>
    %303 = vector.extract_strided_slice %243 {offsets = [0, 112], sizes = [8, 16], strides = [1, 1]} : vector<8x192xf32> to vector<8x16xf32>
    %304 = arith.mulf %303, %4 : vector<8x16xf32>
    %cst_135 = arith.constant dense<0.000000e+00> : vector<8x16xf32>
    %305 = tpu.matmul %303, %6, %cst_135 {dimension_numbers = #tpu.dot_dimension_numbers<[1], [0], [0], [1], [0, 0, 1, 1], [], []>} : vector<8x16xf32>, vector<16x16xf32>, vector<8x16xf32> -> vector<8x16xf32>
    %306 = arith.mulf %305, %5 : vector<8x16xf32>
    %307 = arith.addf %304, %306 : vector<8x16xf32>
    %308 = vector.extract_strided_slice %243 {offsets = [0, 128], sizes = [8, 16], strides = [1, 1]} : vector<8x192xf32> to vector<8x16xf32>
    %cst_136 = arith.constant dense<0.000000e+00> : vector<8x8xf32>
    %309 = tpu.matmul %302, %307, %cst_136 {dimension_numbers = #tpu.dot_dimension_numbers<[1], [1], [0], [0], [0, 0, 1, 0], [], []>} : vector<8x16xf32>, vector<8x16xf32>, vector<8x8xf32> -> vector<8x8xf32>
    %cst_137 = arith.constant 2.500000e-01 : f32
    %310 = vector.broadcast %cst_137 : f32 to vector<8x8xf32>
    %311 = arith.mulf %309, %310 : vector<8x8xf32>
    %312 = arith.addf %311, %3 : vector<8x8xf32>
    %cst_138 = arith.constant dense<0xFF800000> : vector<8xf32>
    %313 = vector.multi_reduction <maximumf>, %312, %cst_138 [1] : vector<8x8xf32> to vector<8xf32>
    %314 = vector.shape_cast %313 : vector<8xf32> to vector<8x1xf32>
    %315 = vector.broadcast %314 : vector<8x1xf32> to vector<8x8xf32>
    %316 = arith.subf %312, %315 : vector<8x8xf32>
    %317 = math.exp %316 : vector<8x8xf32>
    %cst_139 = arith.constant dense<0.000000e+00> : vector<8xf32>
    %318 = vector.multi_reduction <add>, %317, %cst_139 [1] : vector<8x8xf32> to vector<8xf32>
    %319 = vector.shape_cast %318 : vector<8xf32> to vector<8x1xf32>
    %320 = tpu.reciprocal %319 {approx = true} : vector<8x1xf32> -> vector<8x1xf32>
    %321 = vector.broadcast %320 : vector<8x1xf32> to vector<8x8xf32>
    %322 = arith.mulf %317, %321 : vector<8x8xf32>
    %cst_140 = arith.constant dense<0.000000e+00> : vector<8x16xf32>
    %323 = tpu.matmul %322, %308, %cst_140 {dimension_numbers = #tpu.dot_dimension_numbers<[1], [0], [0], [1], [0, 0, 1, 1], [], []>} : vector<8x8xf32>, vector<8x16xf32>, vector<8x16xf32> -> vector<8x16xf32>
    %c0_141 = arith.constant 0 : index
    %c32_142 = arith.constant 32 : index
    %324 = vector.load %arg22[%c0_141, %c32_142] : memref<8x64xf32, #tpu.memory_space<vmem>>, vector<8x16xf32>
    tpu.vector_store %arg22[%c0_141, %c32_142], %323 {strides = array<i32>} : memref<8x64xf32, #tpu.memory_space<vmem>>, vector<8x16xf32>,
    %325 = vector.extract_strided_slice %243 {offsets = [0, 144], sizes = [8, 16], strides = [1, 1]} : vector<8x192xf32> to vector<8x16xf32>
    %326 = arith.mulf %325, %4 : vector<8x16xf32>
    %cst_143 = arith.constant dense<0.000000e+00> : vector<8x16xf32>
    %327 = tpu.matmul %325, %6, %cst_143 {dimension_numbers = #tpu.dot_dimension_numbers<[1], [0], [0], [1], [0, 0, 1, 1], [], []>} : vector<8x16xf32>, vector<16x16xf32>, vector<8x16xf32> -> vector<8x16xf32>
    %328 = arith.mulf %327, %5 : vector<8x16xf32>
    %329 = arith.addf %326, %328 : vector<8x16xf32>
    %330 = vector.extract_strided_slice %243 {offsets = [0, 160], sizes = [8, 16], strides = [1, 1]} : vector<8x192xf32> to vector<8x16xf32>
    %331 = arith.mulf %330, %4 : vector<8x16xf32>
    %cst_144 = arith.constant dense<0.000000e+00> : vector<8x16xf32>
    %332 = tpu.matmul %330, %6, %cst_144 {dimension_numbers = #tpu.dot_dimension_numbers<[1], [0], [0], [1], [0, 0, 1, 1], [], []>} : vector<8x16xf32>, vector<16x16xf32>, vector<8x16xf32> -> vector<8x16xf32>
    %333 = arith.mulf %332, %5 : vector<8x16xf32>
    %334 = arith.addf %331, %333 : vector<8x16xf32>
    %335 = vector.extract_strided_slice %243 {offsets = [0, 176], sizes = [8, 16], strides = [1, 1]} : vector<8x192xf32> to vector<8x16xf32>
    %cst_145 = arith.constant dense<0.000000e+00> : vector<8x8xf32>
    %336 = tpu.matmul %329, %334, %cst_145 {dimension_numbers = #tpu.dot_dimension_numbers<[1], [1], [0], [0], [0, 0, 1, 0], [], []>} : vector<8x16xf32>, vector<8x16xf32>, vector<8x8xf32> -> vector<8x8xf32>
    %cst_146 = arith.constant 2.500000e-01 : f32
    %337 = vector.broadcast %cst_146 : f32 to vector<8x8xf32>
    %338 = arith.mulf %336, %337 : vector<8x8xf32>
    %339 = arith.addf %338, %3 : vector<8x8xf32>
    %cst_147 = arith.constant dense<0xFF800000> : vector<8xf32>
    %340 = vector.multi_reduction <maximumf>, %339, %cst_147 [1] : vector<8x8xf32> to vector<8xf32>
    %341 = vector.shape_cast %340 : vector<8xf32> to vector<8x1xf32>
    %342 = vector.broadcast %341 : vector<8x1xf32> to vector<8x8xf32>
    %343 = arith.subf %339, %342 : vector<8x8xf32>
    %344 = math.exp %343 : vector<8x8xf32>
    %cst_148 = arith.constant dense<0.000000e+00> : vector<8xf32>
    %345 = vector.multi_reduction <add>, %344, %cst_148 [1] : vector<8x8xf32> to vector<8xf32>
    %346 = vector.shape_cast %345 : vector<8xf32> to vector<8x1xf32>
    %347 = tpu.reciprocal %346 {approx = true} : vector<8x1xf32> -> vector<8x1xf32>
    %348 = vector.broadcast %347 : vector<8x1xf32> to vector<8x8xf32>
    %349 = arith.mulf %344, %348 : vector<8x8xf32>
    %cst_149 = arith.constant dense<0.000000e+00> : vector<8x16xf32>
    %350 = tpu.matmul %349, %335, %cst_149 {dimension_numbers = #tpu.dot_dimension_numbers<[1], [0], [0], [1], [0, 0, 1, 1], [], []>} : vector<8x8xf32>, vector<8x16xf32>, vector<8x16xf32> -> vector<8x16xf32>
    %c0_150 = arith.constant 0 : index
    %c48_151 = arith.constant 48 : index
    %351 = vector.load %arg22[%c0_150, %c48_151] : memref<8x64xf32, #tpu.memory_space<vmem>>, vector<8x16xf32>
    tpu.vector_store %arg22[%c0_150, %c48_151], %350 {strides = array<i32>} : memref<8x64xf32, #tpu.memory_space<vmem>>, vector<8x16xf32>,
    %c0_152 = arith.constant 0 : index
    %c0_153 = arith.constant 0 : index
    %352 = vector.load %arg22[%c0_152, %c0_153] : memref<8x64xf32, #tpu.memory_space<vmem>>, vector<8x64xf32>
    %c1_154 = arith.constant 1 : index
    %c0_155 = arith.constant 0 : index
    %c0_156 = arith.constant 0 : index
    %353 = vector.load %arg13[%c1_154, %c0_155, %c0_156] : memref<2x64x64xf32, #tpu.memory_space<vmem>>, vector<1x64x64xf32>
    %354 = vector.shape_cast %353 : vector<1x64x64xf32> to vector<64x64xf32>
    %cst_157 = arith.constant dense<0.000000e+00> : vector<8x64xf32>
    %355 = tpu.matmul %352, %354, %cst_157 {dimension_numbers = #tpu.dot_dimension_numbers<[1], [0], [0], [1], [0, 0, 1, 1], [], []>} : vector<8x64xf32>, vector<64x64xf32>, vector<8x64xf32> -> vector<8x64xf32>
    %c1_158 = arith.constant 1 : index
    %c0_159 = arith.constant 0 : index
    %c0_160 = arith.constant 0 : index
    %356 = vector.load %arg14[%c1_158, %c0_159, %c0_160] : memref<2x1x64xf32, #tpu.memory_space<vmem>>, vector<1x1x64xf32>
    %357 = vector.shape_cast %356 : vector<1x1x64xf32> to vector<1x64xf32>
    %358 = vector.broadcast %357 : vector<1x64xf32> to vector<8x64xf32>
    %359 = arith.addf %355, %358 : vector<8x64xf32>
    %c1_161 = arith.constant 1 : index
    %c0_162 = arith.constant 0 : index
    %c0_163 = arith.constant 0 : index
    %360 = vector.load %arg9[%c1_161, %c0_162, %c0_163] : memref<2x1x64xf32, #tpu.memory_space<vmem>>, vector<1x1x64xf32>
    %361 = vector.shape_cast %360 : vector<1x1x64xf32> to vector<1x64xf32>
    %c1_164 = arith.constant 1 : index
    %c0_165 = arith.constant 0 : index
    %c0_166 = arith.constant 0 : index
    %362 = vector.load %arg10[%c1_164, %c0_165, %c0_166] : memref<2x1x64xf32, #tpu.memory_space<vmem>>, vector<1x1x64xf32>
    %363 = vector.shape_cast %362 : vector<1x1x64xf32> to vector<1x64xf32>
    %cst_167 = arith.constant dense<0.000000e+00> : vector<8xf32>
    %364 = vector.multi_reduction <add>, %210, %cst_167 [1] : vector<8x64xf32> to vector<8xf32>
    %365 = vector.shape_cast %364 : vector<8xf32> to vector<8x1xf32>
    %cst_168 = arith.constant 6.400000e+01 : f32
    %366 = vector.broadcast %cst_168 : f32 to vector<8x1xf32>
    %367 = arith.divf %365, %366 : vector<8x1xf32>
    %368 = vector.broadcast %367 : vector<8x1xf32> to vector<8x64xf32>
    %369 = arith.subf %210, %368 : vector<8x64xf32>
    %370 = arith.mulf %369, %369 : vector<8x64xf32>
    %cst_169 = arith.constant dense<0.000000e+00> : vector<8xf32>
    %371 = vector.multi_reduction <add>, %370, %cst_169 [1] : vector<8x64xf32> to vector<8xf32>
    %372 = vector.shape_cast %371 : vector<8xf32> to vector<8x1xf32>
    %cst_170 = arith.constant 6.400000e+01 : f32
    %373 = vector.broadcast %cst_170 : f32 to vector<8x1xf32>
    %374 = arith.divf %372, %373 : vector<8x1xf32>
    %375 = vector.broadcast %367 : vector<8x1xf32> to vector<8x64xf32>
    %376 = arith.subf %210, %375 : vector<8x64xf32>
    %cst_171 = arith.constant 9.99999974E-6 : f32
    %377 = vector.broadcast %cst_171 : f32 to vector<8x1xf32>
    %378 = arith.addf %374, %377 : vector<8x1xf32>
    %379 = math.rsqrt %378 : vector<8x1xf32>
    %380 = vector.broadcast %379 : vector<8x1xf32> to vector<8x64xf32>
    %381 = arith.mulf %376, %380 : vector<8x64xf32>
    %382 = vector.broadcast %361 : vector<1x64xf32> to vector<8x64xf32>
    %383 = arith.mulf %381, %382 : vector<8x64xf32>
    %384 = vector.broadcast %363 : vector<1x64xf32> to vector<8x64xf32>
    %385 = arith.addf %383, %384 : vector<8x64xf32>
    %c1_172 = arith.constant 1 : index
    %c0_173 = arith.constant 0 : index
    %c0_174 = arith.constant 0 : index
    %386 = vector.load %arg15[%c1_172, %c0_173, %c0_174] : memref<2x64x256xf32, #tpu.memory_space<vmem>>, vector<1x64x256xf32>
    %387 = vector.shape_cast %386 : vector<1x64x256xf32> to vector<64x256xf32>
    %cst_175 = arith.constant dense<0.000000e+00> : vector<8x256xf32>
    %388 = tpu.matmul %385, %387, %cst_175 {dimension_numbers = #tpu.dot_dimension_numbers<[1], [0], [0], [1], [0, 0, 1, 1], [], []>} : vector<8x64xf32>, vector<64x256xf32>, vector<8x256xf32> -> vector<8x256xf32>
    %c1_176 = arith.constant 1 : index
    %c0_177 = arith.constant 0 : index
    %c0_178 = arith.constant 0 : index
    %389 = vector.load %arg16[%c1_176, %c0_177, %c0_178] : memref<2x1x256xf32, #tpu.memory_space<vmem>>, vector<1x1x256xf32>
    %390 = vector.shape_cast %389 : vector<1x1x256xf32> to vector<1x256xf32>
    %391 = vector.broadcast %390 : vector<1x256xf32> to vector<8x256xf32>
    %392 = arith.addf %388, %391 : vector<8x256xf32>
    %cst_179 = arith.constant 5.000000e-01 : f32
    %393 = vector.broadcast %cst_179 : f32 to vector<8x256xf32>
    %394 = arith.mulf %393, %392 : vector<8x256xf32>
    %cst_180 = arith.constant 4.471500e-02 : f32
    %395 = vector.broadcast %cst_180 : f32 to vector<8x256xf32>
    %396 = arith.mulf %395, %392 : vector<8x256xf32>
    %397 = arith.mulf %396, %392 : vector<8x256xf32>
    %398 = arith.mulf %397, %392 : vector<8x256xf32>
    %399 = arith.addf %392, %398 : vector<8x256xf32>
    %cst_181 = arith.constant 0.797884583 : f32
    %400 = vector.broadcast %cst_181 : f32 to vector<8x256xf32>
    %401 = arith.mulf %400, %399 : vector<8x256xf32>
    %402 = math.tanh %401 : vector<8x256xf32>
    %cst_182 = arith.constant 1.000000e+00 : f32
    %403 = vector.broadcast %cst_182 : f32 to vector<8x256xf32>
    %404 = arith.addf %403, %402 : vector<8x256xf32>
    %405 = arith.mulf %394, %404 : vector<8x256xf32>
    %c1_183 = arith.constant 1 : index
    %c0_184 = arith.constant 0 : index
    %c0_185 = arith.constant 0 : index
    %406 = vector.load %arg17[%c1_183, %c0_184, %c0_185] : memref<2x256x64xf32, #tpu.memory_space<vmem>>, vector<1x256x64xf32>
    %407 = vector.shape_cast %406 : vector<1x256x64xf32> to vector<256x64xf32>
    %cst_186 = arith.constant dense<0.000000e+00> : vector<8x64xf32>
    %408 = tpu.matmul %405, %407, %cst_186 {dimension_numbers = #tpu.dot_dimension_numbers<[1], [0], [0], [1], [0, 0, 1, 1], [], []>} : vector<8x256xf32>, vector<256x64xf32>, vector<8x64xf32> -> vector<8x64xf32>
    %c1_187 = arith.constant 1 : index
    %c0_188 = arith.constant 0 : index
    %c0_189 = arith.constant 0 : index
    %409 = vector.load %arg18[%c1_187, %c0_188, %c0_189] : memref<2x1x64xf32, #tpu.memory_space<vmem>>, vector<1x1x64xf32>
    %410 = vector.shape_cast %409 : vector<1x1x64xf32> to vector<1x64xf32>
    %411 = vector.broadcast %410 : vector<1x64xf32> to vector<8x64xf32>
    %412 = arith.addf %408, %411 : vector<8x64xf32>
    %413 = arith.addf %210, %359 : vector<8x64xf32>
    %414 = arith.addf %413, %412 : vector<8x64xf32>
    %c0_190 = arith.constant 0 : index
    %c0_191 = arith.constant 0 : index
    %415 = vector.load %arg19[%c0_190, %c0_191] : memref<1x64xf32, #tpu.memory_space<vmem>>, vector<1x64xf32>
    %c0_192 = arith.constant 0 : index
    %c0_193 = arith.constant 0 : index
    %416 = vector.load %arg20[%c0_192, %c0_193] : memref<1x64xf32, #tpu.memory_space<vmem>>, vector<1x64xf32>
    %cst_194 = arith.constant dense<0.000000e+00> : vector<8xf32>
    %417 = vector.multi_reduction <add>, %414, %cst_194 [1] : vector<8x64xf32> to vector<8xf32>
    %418 = vector.shape_cast %417 : vector<8xf32> to vector<8x1xf32>
    %cst_195 = arith.constant 6.400000e+01 : f32
    %419 = vector.broadcast %cst_195 : f32 to vector<8x1xf32>
    %420 = arith.divf %418, %419 : vector<8x1xf32>
    %421 = vector.broadcast %420 : vector<8x1xf32> to vector<8x64xf32>
    %422 = arith.subf %414, %421 : vector<8x64xf32>
    %423 = arith.mulf %422, %422 : vector<8x64xf32>
    %cst_196 = arith.constant dense<0.000000e+00> : vector<8xf32>
    %424 = vector.multi_reduction <add>, %423, %cst_196 [1] : vector<8x64xf32> to vector<8xf32>
    %425 = vector.shape_cast %424 : vector<8xf32> to vector<8x1xf32>
    %cst_197 = arith.constant 6.400000e+01 : f32
    %426 = vector.broadcast %cst_197 : f32 to vector<8x1xf32>
    %427 = arith.divf %425, %426 : vector<8x1xf32>
    %428 = vector.broadcast %420 : vector<8x1xf32> to vector<8x64xf32>
    %429 = arith.subf %414, %428 : vector<8x64xf32>
    %cst_198 = arith.constant 9.99999974E-6 : f32
    %430 = vector.broadcast %cst_198 : f32 to vector<8x1xf32>
    %431 = arith.addf %427, %430 : vector<8x1xf32>
    %432 = math.rsqrt %431 : vector<8x1xf32>
    %433 = vector.broadcast %432 : vector<8x1xf32> to vector<8x64xf32>
    %434 = arith.mulf %429, %433 : vector<8x64xf32>
    %435 = vector.broadcast %415 : vector<1x64xf32> to vector<8x64xf32>
    %436 = arith.mulf %434, %435 : vector<8x64xf32>
    %437 = vector.broadcast %416 : vector<1x64xf32> to vector<8x64xf32>
    %438 = arith.addf %436, %437 : vector<8x64xf32>
    %c0_199 = arith.constant 0 : index
    %c0_200 = arith.constant 0 : index
    %439 = vector.load %arg22[%c0_199, %c0_200] : memref<8x64xf32, #tpu.memory_space<vmem>>, vector<8x64xf32>
    tpu.vector_store %arg22[%c0_199, %c0_200], %438 {strides = array<i32>} : memref<8x64xf32, #tpu.memory_space<vmem>>, vector<8x64xf32>,
    %440 = arith.index_cast %arg0 : i32 to index
    %441 = memref.load %arg1[%440] : memref<2xi32, #tpu.memory_space<smem>>
    %442 = arith.index_cast %441 : i32 to index
    %c0_201 = arith.constant 0 : index
    %443 = vector.load %arg22[%442, %c0_201] : memref<8x64xf32, #tpu.memory_space<vmem>>, vector<1x64xf32>
    %c0_202 = arith.constant 0 : index
    %c0_203 = arith.constant 0 : index
    %c0_204 = arith.constant 0 : index
    %444 = vector.load %arg21[%c0_202, %c0_203, %c0_204] : memref<1x1x64xf32, #tpu.memory_space<vmem>>, vector<1x1x64xf32>
    %445 = vector.shape_cast %444 : vector<1x1x64xf32> to vector<1x64xf32>
    %446 = vector.shape_cast %443 : vector<1x64xf32> to vector<1x1x64xf32>
    tpu.vector_store %arg21[%c0_202, %c0_203, %c0_204], %446 {strides = array<i32>} : memref<1x1x64xf32, #tpu.memory_space<vmem>>, vector<1x1x64xf32>,
    return
  }
  func.func @transform_0(%arg0: i32, %arg1: memref<2xi32, #tpu.memory_space<smem>>) -> (i32, i32, i32) {
    %c0_i32 = arith.constant 0 : i32
    %c0_i32_0 = arith.constant 0 : i32
    %c0_i32_1 = arith.constant 0 : i32
    return %arg0, %c0_i32, %c0_i32_0 : i32, i32, i32
  }
  func.func @transform_1(%arg0: i32, %arg1: memref<2xi32, #tpu.memory_space<smem>>) -> (i32, i32, i32) {
    %c0_i32 = arith.constant 0 : i32
    %c0_i32_0 = arith.constant 0 : i32
    %c0_i32_1 = arith.constant 0 : i32
    return %arg0, %c0_i32, %c0_i32_0 : i32, i32, i32
  }
  func.func @transform_2(%arg0: i32, %arg1: memref<2xi32, #tpu.memory_space<smem>>) -> (i32, i32) {
    %c0_i32 = arith.constant 0 : i32
    %c0_i32_0 = arith.constant 0 : i32
    %c0_i32_1 = arith.constant 0 : i32
    return %c0_i32, %c0_i32_0 : i32, i32
  }
  func.func @transform_3(%arg0: i32, %arg1: memref<2xi32, #tpu.memory_space<smem>>) -> (i32, i32) {
    %c0_i32 = arith.constant 0 : i32
    %c0_i32_0 = arith.constant 0 : i32
    %c0_i32_1 = arith.constant 0 : i32
    return %c0_i32, %c0_i32_0 : i32, i32
  }
  func.func @transform_4(%arg0: i32, %arg1: memref<2xi32, #tpu.memory_space<smem>>) -> (i32, i32) {
    %c0_i32 = arith.constant 0 : i32
    %c0_i32_0 = arith.constant 0 : i32
    %c0_i32_1 = arith.constant 0 : i32
    return %c0_i32, %c0_i32_0 : i32, i32
  }
  func.func @transform_5(%arg0: i32, %arg1: memref<2xi32, #tpu.memory_space<smem>>) -> (i32, i32, i32) {
    %c0_i32 = arith.constant 0 : i32
    %c0_i32_0 = arith.constant 0 : i32
    %c0_i32_1 = arith.constant 0 : i32
    %c0_i32_2 = arith.constant 0 : i32
    return %c0_i32, %c0_i32_0, %c0_i32_1 : i32, i32, i32
  }
  func.func @transform_6(%arg0: i32, %arg1: memref<2xi32, #tpu.memory_space<smem>>) -> (i32, i32, i32) {
    %c0_i32 = arith.constant 0 : i32
    %c0_i32_0 = arith.constant 0 : i32
    %c0_i32_1 = arith.constant 0 : i32
    %c0_i32_2 = arith.constant 0 : i32
    return %c0_i32, %c0_i32_0, %c0_i32_1 : i32, i32, i32
  }
  func.func @transform_7(%arg0: i32, %arg1: memref<2xi32, #tpu.memory_space<smem>>) -> (i32, i32, i32) {
    %c0_i32 = arith.constant 0 : i32
    %c0_i32_0 = arith.constant 0 : i32
    %c0_i32_1 = arith.constant 0 : i32
    %c0_i32_2 = arith.constant 0 : i32
    return %c0_i32, %c0_i32_0, %c0_i32_1 : i32, i32, i32
  }
  func.func @transform_8(%arg0: i32, %arg1: memref<2xi32, #tpu.memory_space<smem>>) -> (i32, i32, i32) {
    %c0_i32 = arith.constant 0 : i32
    %c0_i32_0 = arith.constant 0 : i32
    %c0_i32_1 = arith.constant 0 : i32
    %c0_i32_2 = arith.constant 0 : i32
    return %c0_i32, %c0_i32_0, %c0_i32_1 : i32, i32, i32
  }
  func.func @transform_9(%arg0: i32, %arg1: memref<2xi32, #tpu.memory_space<smem>>) -> (i32, i32, i32) {
    %c0_i32 = arith.constant 0 : i32
    %c0_i32_0 = arith.constant 0 : i32
    %c0_i32_1 = arith.constant 0 : i32
    %c0_i32_2 = arith.constant 0 : i32
    return %c0_i32, %c0_i32_0, %c0_i32_1 : i32, i32, i32
  }
  func.func @transform_10(%arg0: i32, %arg1: memref<2xi32, #tpu.memory_space<smem>>) -> (i32, i32, i32) {
    %c0_i32 = arith.constant 0 : i32
    %c0_i32_0 = arith.constant 0 : i32
    %c0_i32_1 = arith.constant 0 : i32
    %c0_i32_2 = arith.constant 0 : i32
    return %c0_i32, %c0_i32_0, %c0_i32_1 : i32, i32, i32
  }
  func.func @transform_11(%arg0: i32, %arg1: memref<2xi32, #tpu.memory_space<smem>>) -> (i32, i32, i32) {
    %c0_i32 = arith.constant 0 : i32
    %c0_i32_0 = arith.constant 0 : i32
    %c0_i32_1 = arith.constant 0 : i32
    %c0_i32_2 = arith.constant 0 : i32
    return %c0_i32, %c0_i32_0, %c0_i32_1 : i32, i32, i32
  }
  func.func @transform_12(%arg0: i32, %arg1: memref<2xi32, #tpu.memory_space<smem>>) -> (i32, i32, i32) {
    %c0_i32 = arith.constant 0 : i32
    %c0_i32_0 = arith.constant 0 : i32
    %c0_i32_1 = arith.constant 0 : i32
    %c0_i32_2 = arith.constant 0 : i32
    return %c0_i32, %c0_i32_0, %c0_i32_1 : i32, i32, i32
  }
  func.func @transform_13(%arg0: i32, %arg1: memref<2xi32, #tpu.memory_space<smem>>) -> (i32, i32, i32) {
    %c0_i32 = arith.constant 0 : i32
    %c0_i32_0 = arith.constant 0 : i32
    %c0_i32_1 = arith.constant 0 : i32
    %c0_i32_2 = arith.constant 0 : i32
    return %c0_i32, %c0_i32_0, %c0_i32_1 : i32, i32, i32
  }
  func.func @transform_14(%arg0: i32, %arg1: memref<2xi32, #tpu.memory_space<smem>>) -> (i32, i32, i32) {
    %c0_i32 = arith.constant 0 : i32
    %c0_i32_0 = arith.constant 0 : i32
    %c0_i32_1 = arith.constant 0 : i32
    %c0_i32_2 = arith.constant 0 : i32
    return %c0_i32, %c0_i32_0, %c0_i32_1 : i32, i32, i32
  }
  func.func @transform_15(%arg0: i32, %arg1: memref<2xi32, #tpu.memory_space<smem>>) -> (i32, i32, i32) {
    %c0_i32 = arith.constant 0 : i32
    %c0_i32_0 = arith.constant 0 : i32
    %c0_i32_1 = arith.constant 0 : i32
    %c0_i32_2 = arith.constant 0 : i32
    return %c0_i32, %c0_i32_0, %c0_i32_1 : i32, i32, i32
  }
  func.func @transform_16(%arg0: i32, %arg1: memref<2xi32, #tpu.memory_space<smem>>) -> (i32, i32, i32) {
    %c0_i32 = arith.constant 0 : i32
    %c0_i32_0 = arith.constant 0 : i32
    %c0_i32_1 = arith.constant 0 : i32
    %c0_i32_2 = arith.constant 0 : i32
    return %c0_i32, %c0_i32_0, %c0_i32_1 : i32, i32, i32
  }
  func.func @transform_17(%arg0: i32, %arg1: memref<2xi32, #tpu.memory_space<smem>>) -> (i32, i32) {
    %c0_i32 = arith.constant 0 : i32
    %c0_i32_0 = arith.constant 0 : i32
    %c0_i32_1 = arith.constant 0 : i32
    return %c0_i32, %c0_i32_0 : i32, i32
  }
  func.func @transform_18(%arg0: i32, %arg1: memref<2xi32, #tpu.memory_space<smem>>) -> (i32, i32) {
    %c0_i32 = arith.constant 0 : i32
    %c0_i32_0 = arith.constant 0 : i32
    %c0_i32_1 = arith.constant 0 : i32
    return %c0_i32, %c0_i32_0 : i32, i32
  }
  func.func @transform_19(%arg0: i32, %arg1: memref<2xi32, #tpu.memory_space<smem>>) -> (i32, i32, i32) {
    %c0_i32 = arith.constant 0 : i32
    %c0_i32_0 = arith.constant 0 : i32
    %c0_i32_1 = arith.constant 0 : i32
    return %arg0, %c0_i32, %c0_i32_0 : i32, i32, i32
  }
}

</mosaic_0001>

<llo_original>
// kernel: _lambda_.1
$region0: #{_lambda_.1}
  #allocation0 [shape = 'u32[]', space=smem, size = 0x4, offset = 0x4, fixed_abs, tag = 'smem constant byte address 0x4 - core index']
  #allocation1 [shape = 'u32[144,128]{1,0:T(1,128)}', space=vmem, size = 0x12000, scoped, tag = 'internal scratch']
  #allocation2 [shape = 'f32[8,64]{1,0:T(8,128)}', space=vmem, size = 0x1000, scoped, tag = 'scratch operand']
  #allocation3 [shape = 's32[1]{0}', space=sflag, size = 0x4, scoped, tag = 'scoped memory for _lambda_.1']
  #allocation4 [shape = 'u8[512]{0}', space=smem, size = 0x200, scoped, tag = 'prefetched SMEM operand 0']
  %s0 = inlined_call_operand.vmem [shape: s32[2], index: 0, kind: input, shape index: {}]
  %s1 = inlined_call_operand.vmem [shape: f32[2,8,64], index: 1, kind: input, shape index: {}]
  %s2 = inlined_call_operand.vmem [shape: f32[2,8,8], index: 2, kind: input, shape index: {}]
  %s3 = inlined_call_operand.vmem [shape: f32[8,16], index: 3, kind: input, shape index: {}]
  %s4 = inlined_call_operand.vmem [shape: f32[8,16], index: 4, kind: input, shape index: {}]
  %s5 = inlined_call_operand.vmem [shape: f32[16,16], index: 5, kind: input, shape index: {}]
  %s6 = inlined_call_operand.vmem [shape: f32[2,1,64], index: 6, kind: input, shape index: {}, may-alias: {6,8}]
  %s7 = inlined_call_operand.vmem [shape: f32[2,1,64], index: 7, kind: input, shape index: {}, may-alias: {7,9,13,17}]
  %s8 = inlined_call_operand.vmem [shape: f32[2,1,64], index: 8, kind: input, shape index: {}, may-alias: {6,8}]
  %s9 = inlined_call_operand.vmem [shape: f32[2,1,64], index: 9, kind: input, shape index: {}, may-alias: {7,9,13,17}]
  %s10 = inlined_call_operand.vmem [shape: f32[2,64,192], index: 10, kind: input, shape index: {}]
  %s11 = inlined_call_operand.vmem [shape: f32[2,1,192], index: 11, kind: input, shape index: {}]
  %s12 = inlined_call_operand.vmem [shape: f32[2,64,64], index: 12, kind: input, shape index: {}]
  %s13 = inlined_call_operand.vmem [shape: f32[2,1,64], index: 13, kind: input, shape index: {}, may-alias: {7,9,13,17}]
  %s14 = inlined_call_operand.vmem [shape: f32[2,64,256], index: 14, kind: input, shape index: {}]
  %s15 = inlined_call_operand.vmem [shape: f32[2,1,256], index: 15, kind: input, shape index: {}]
  %s16 = inlined_call_operand.vmem [shape: f32[2,256,64], index: 16, kind: input, shape index: {}]
  %s17 = inlined_call_operand.vmem [shape: f32[2,1,64], index: 17, kind: input, shape index: {}, may-alias: {7,9,13,17}]
  %s18 = inlined_call_operand.vmem [shape: f32[1,64], index: 18, kind: input, shape index: {}]
  %s19 = inlined_call_operand.vmem [shape: f32[1,64], index: 19, kind: input, shape index: {}]
  %s20 = inlined_call_operand.hbm [shape: f32[2,1,64], index: 20, kind: output, shape index: {}]
  %s21 = sld [smem:[#allocation0]]
  $region109: #{_lambda_.1} parent=0
    _
  %s23 = ssub.s32 1, %s21
  %s24 = scalar_select 0, %s23, %s21
  %s25 = sshll.u32 %s0, 4
  %s26 = int_to_ptr.vmem [resolvable:$true] %s25
  %28 = dma.vmem_to_smem %s26, 16, [#allocation4], [#allocation3]
  %29 = dma.done [#allocation3], 16
  %30 = sfence
  $region1: #{_lambda_.1} parent=0
    #allocation5 [shape = 'u8[1024]{0}', space=vmem, size = 0x400, scoped, tag = 'output window, operand 0']
    #allocation6 [shape = 's32[2]{0}', space=sflag, size = 0x8, scoped, tag = 'scoped memory for _lambda_.1']
    %31 = vsyncpa [#allocation6], 0
    %s32 = scalar_lea.sflag [#allocation6], 1
    %33 = vsyncpa %s32, 0
    loop: start=0, step=1, limit=4
    $region2: #{_lambda_.1} parent=1 // loop_pre_header
      _
    $region3: #{_lambda_.1} parent=1 // loop_header
      %s35 = sphi 0, %s39
      %p36 = scmp.ge.s32.totalorder %s35, 4
      %s45 = sphi 0, %s47
      %s48 = sphi 0, %s45
      %s49 = sphi 0, %s48
      %s65 = sphi 0, %s49
      %s71 = sphi 0, %s73
      %s74 = sphi 0, %s71
      %s75 = sphi 0, %s74
      %s91 = sphi 0, %s75
      %s95 = sphi 0, %s95
      %s97 = sphi 0, %s95
      %s98 = sphi 0, %s97
      %s112 = sphi 0, %s98
      %s116 = sphi 0, %s116
      %s118 = sphi 0, %s116
      %s119 = sphi 0, %s118
      %s133 = sphi 0, %s119
      %s137 = sphi 0, %s137
      %s139 = sphi 0, %s137
      %s140 = sphi 0, %s139
      %s154 = sphi 0, %s140
      %s158 = sphi 0, %s158
      %s160 = sphi 0, %s158
      %s161 = sphi 0, %s160
      %s175 = sphi 0, %s161
      %s179 = sphi 0, %s179
      %s181 = sphi 0, %s179
      %s182 = sphi 0, %s181
      %s196 = sphi 0, %s182
      %s200 = sphi 0, %s200
      %s202 = sphi 0, %s200
      %s203 = sphi 0, %s202
      %s217 = sphi 0, %s203
      %s221 = sphi 0, %s221
      %s223 = sphi 0, %s221
      %s224 = sphi 0, %s223
      %s238 = sphi 0, %s224
      %s242 = sphi 0, %s242
      %s244 = sphi 0, %s242
      %s245 = sphi 0, %s244
      %s259 = sphi 0, %s245
      %s263 = sphi 0, %s263
      %s265 = sphi 0, %s263
      %s266 = sphi 0, %s265
      %s280 = sphi 0, %s266
      %s284 = sphi 0, %s284
      %s286 = sphi 0, %s284
      %s287 = sphi 0, %s286
      %s301 = sphi 0, %s287
      %s305 = sphi 0, %s305
      %s307 = sphi 0, %s305
      %s308 = sphi 0, %s307
      %s322 = sphi 0, %s308
      %s326 = sphi 0, %s326
      %s328 = sphi 0, %s326
      %s329 = sphi 0, %s328
      %s343 = sphi 0, %s329
      %s347 = sphi 0, %s347
      %s349 = sphi 0, %s347
      %s350 = sphi 0, %s349
      %s364 = sphi 0, %s350
      %s368 = sphi 0, %s368
      %s370 = sphi 0, %s368
      %s371 = sphi 0, %s370
      %s385 = sphi 0, %s371
      %s389 = sphi 0, %s389
      %s391 = sphi 0, %s389
      %s392 = sphi 0, %s391
      %s406 = sphi 0, %s392
      %s410 = sphi 0, %s410
      %s412 = sphi 0, %s410
      %s413 = sphi 0, %s412
      %s427 = sphi 0, %s413
      %s431 = sphi 0, %s431
      %s433 = sphi 0, %s431
      %s434 = sphi 0, %s433
      %s448 = sphi 0, %s434
      %s454 = sphi 0, %s456
      %s457 = sphi 0, %s454
      %s458 = sphi 0, %s457
      %s474 = sphi 0, %s458
    $region4: #{_lambda_.1} parent=1 // loop_header_branch
      %38 = sbr.rel (%p36) target = $region8
    $region5: #{_lambda_.1} parent=1 // loop_body
      %s40 = ssub.s32 %s35, 1
      %s41 = ssub.s32 %s35, 2
      %s42 = sadd.s32 %s35, 1
      %s43 = ssub.s32 %s35, %s42
      %p44 = scmp.eq.s32.totalorder %s43, 0
      %s46 = sadd.s32 %s45, 1
      %s47 = scalar_select %p44, %s45, %s46
      %p50 = pneg %p44
      %p51 = scmp.eq.s32.totalorder %s35, 1
      %p52 = por %p50, %p51
      %p53 = scmp.ne.s32.totalorder %s45, %s48
      %p54 = scmp.eq.s32.totalorder %s35, 0
      %p55 = por %p53, %p54
      %p56 = scmp.ne.s32.totalorder %s45, %s48
      %p57 = scmp.eq.s32.totalorder %s40, 1
      %p58 = por %p56, %p57
      %p59 = scmp.ne.s32.totalorder %s48, %s49
      %p60 = scmp.eq.s32.totalorder %s40, 0
      %p61 = por %p59, %p60
      %p62 = scmp.ne.s32.totalorder %s48, %s49
      %p63 = scmp.eq.s32.totalorder %s41, 1
      %p64 = por %p62, %p63
      %p66 = scmp.ne.s32.totalorder %s49, %s65
      %p67 = scmp.eq.s32.totalorder %s41, 0
      %p68 = por %p66, %p67
      %s69 = ssub.s32 %s35, %s42
      %p70 = scmp.eq.s32.totalorder %s69, 0
      %s72 = sadd.s32 %s71, 1
      %s73 = scalar_select %p70, %s71, %s72
      %p76 = pneg %p70
      %p77 = scmp.eq.s32.totalorder %s35, 1
      %p78 = por %p76, %p77
      %p79 = scmp.ne.s32.totalorder %s71, %s74
      %p80 = scmp.eq.s32.totalorder %s35, 0
      %p81 = por %p79, %p80
      %p82 = scmp.ne.s32.totalorder %s71, %s74
      %p83 = scmp.eq.s32.totalorder %s40, 1
      %p84 = por %p82, %p83
      %p85 = scmp.ne.s32.totalorder %s74, %s75
      %p86 = scmp.eq.s32.totalorder %s40, 0
      %p87 = por %p85, %p86
      %p88 = scmp.ne.s32.totalorder %s74, %s75
      %p89 = scmp.eq.s32.totalorder %s41, 1
      %p90 = por %p88, %p89
      %p92 = scmp.ne.s32.totalorder %s75, %s91
      %p93 = scmp.eq.s32.totalorder %s41, 0
      %p94 = por %p92, %p93
      %s96 = sadd.s32 %s95, 1
      %p99 = scmp.eq.s32.totalorder %s35, 1
      %p100 = scmp.ne.s32.totalorder %s95, %s97
      %p101 = scmp.eq.s32.totalorder %s35, 0
      %p102 = por %p100, %p101
      %p103 = scmp.ne.s32.totalorder %s95, %s97
      %p104 = scmp.eq.s32.totalorder %s40, 1
      %p105 = por %p103, %p104
      %p106 = scmp.ne.s32.totalorder %s97, %s98
      %p107 = scmp.eq.s32.totalorder %s40, 0
      %p108 = por %p106, %p107
      %p109 = scmp.ne.s32.totalorder %s97, %s98
      %p110 = scmp.eq.s32.totalorder %s41, 1
      %p111 = por %p109, %p110
      %p113 = scmp.ne.s32.totalorder %s98, %s112
      %p114 = scmp.eq.s32.totalorder %s41, 0
      %p115 = por %p113, %p114
      %s117 = sadd.s32 %s116, 1
      %p120 = scmp.eq.s32.totalorder %s35, 1
      %p121 = scmp.ne.s32.totalorder %s116, %s118
      %p122 = scmp.eq.s32.totalorder %s35, 0
      %p123 = por %p121, %p122
      %p124 = scmp.ne.s32.totalorder %s116, %s118
      %p125 = scmp.eq.s32.totalorder %s40, 1
      %p126 = por %p124, %p125
      %p127 = scmp.ne.s32.totalorder %s118, %s119
      %p128 = scmp.eq.s32.totalorder %s40, 0
      %p129 = por %p127, %p128
      %p130 = scmp.ne.s32.totalorder %s118, %s119
      %p131 = scmp.eq.s32.totalorder %s41, 1
      %p132 = por %p130, %p131
      %p134 = scmp.ne.s32.totalorder %s119, %s133
      %p135 = scmp.eq.s32.totalorder %s41, 0
      %p136 = por %p134, %p135
      %s138 = sadd.s32 %s137, 1
      %p141 = scmp.eq.s32.totalorder %s35, 1
      %p142 = scmp.ne.s32.totalorder %s137, %s139
      %p143 = scmp.eq.s32.totalorder %s35, 0
      %p144 = por %p142, %p143
      %p145 = scmp.ne.s32.totalorder %s137, %s139
      %p146 = scmp.eq.s32.totalorder %s40, 1
      %p147 = por %p145, %p146
      %p148 = scmp.ne.s32.totalorder %s139, %s140
      %p149 = scmp.eq.s32.totalorder %s40, 0
      %p150 = por %p148, %p149
      %p151 = scmp.ne.s32.totalorder %s139, %s140
      %p152 = scmp.eq.s32.totalorder %s41, 1
      %p153 = por %p151, %p152
      %p155 = scmp.ne.s32.totalorder %s140, %s154
      %p156 = scmp.eq.s32.totalorder %s41, 0
      %p157 = por %p155, %p156
      %s159 = sadd.s32 %s158, 1
      %p162 = scmp.eq.s32.totalorder %s35, 1
      %p163 = scmp.ne.s32.totalorder %s158, %s160
      %p164 = scmp.eq.s32.totalorder %s35, 0
      %p165 = por %p163, %p164
      %p166 = scmp.ne.s32.totalorder %s158, %s160
      %p167 = scmp.eq.s32.totalorder %s40, 1
      %p168 = por %p166, %p167
      %p169 = scmp.ne.s32.totalorder %s160, %s161
      %p170 = scmp.eq.s32.totalorder %s40, 0
      %p171 = por %p169, %p170
      %p172 = scmp.ne.s32.totalorder %s160, %s161
      %p173 = scmp.eq.s32.totalorder %s41, 1
      %p174 = por %p172, %p173
      %p176 = scmp.ne.s32.totalorder %s161, %s175
      %p177 = scmp.eq.s32.totalorder %s41, 0
      %p178 = por %p176, %p177
      %s180 = sadd.s32 %s179, 1
      %p183 = scmp.eq.s32.totalorder %s35, 1
      %p184 = scmp.ne.s32.totalorder %s179, %s181
      %p185 = scmp.eq.s32.totalorder %s35, 0
      %p186 = por %p184, %p185
      %p187 = scmp.ne.s32.totalorder %s179, %s181
      %p188 = scmp.eq.s32.totalorder %s40, 1
      %p189 = por %p187, %p188
      %p190 = scmp.ne.s32.totalorder %s181, %s182
      %p191 = scmp.eq.s32.totalorder %s40, 0
      %p192 = por %p190, %p191
      %p193 = scmp.ne.s32.totalorder %s181, %s182
      %p194 = scmp.eq.s32.totalorder %s41, 1
      %p195 = por %p193, %p194
      %p197 = scmp.ne.s32.totalorder %s182, %s196
      %p198 = scmp.eq.s32.totalorder %s41, 0
      %p199 = por %p197, %p198
      %s201 = sadd.s32 %s200, 1
      %p204 = scmp.eq.s32.totalorder %s35, 1
      %p205 = scmp.ne.s32.totalorder %s200, %s202
      %p206 = scmp.eq.s32.totalorder %s35, 0
      %p207 = por %p205, %p206
      %p208 = scmp.ne.s32.totalorder %s200, %s202
      %p209 = scmp.eq.s32.totalorder %s40, 1
      %p210 = por %p208, %p209
      %p211 = scmp.ne.s32.totalorder %s202, %s203
      %p212 = scmp.eq.s32.totalorder %s40, 0
      %p213 = por %p211, %p212
      %p214 = scmp.ne.s32.totalorder %s202, %s203
      %p215 = scmp.eq.s32.totalorder %s41, 1
      %p216 = por %p214, %p215
      %p218 = scmp.ne.s32.totalorder %s203, %s217
      %p219 = scmp.eq.s32.totalorder %s41, 0
      %p220 = por %p218, %p219
      %s222 = sadd.s32 %s221, 1
      %p225 = scmp.eq.s32.totalorder %s35, 1
      %p226 = scmp.ne.s32.totalorder %s221, %s223
      %p227 = scmp.eq.s32.totalorder %s35, 0
      %p228 = por %p226, %p227
      %p229 = scmp.ne.s32.totalorder %s221, %s223
      %p230 = scmp.eq.s32.totalorder %s40, 1
      %p231 = por %p229, %p230
      %p232 = scmp.ne.s32.totalorder %s223, %s224
      %p233 = scmp.eq.s32.totalorder %s40, 0
      %p234 = por %p232, %p233
      %p235 = scmp.ne.s32.totalorder %s223, %s224
      %p236 = scmp.eq.s32.totalorder %s41, 1
      %p237 = por %p235, %p236
      %p239 = scmp.ne.s32.totalorder %s224, %s238
      %p240 = scmp.eq.s32.totalorder %s41, 0
      %p241 = por %p239, %p240
      %s243 = sadd.s32 %s242, 1
      %p246 = scmp.eq.s32.totalorder %s35, 1
      %p247 = scmp.ne.s32.totalorder %s242, %s244
      %p248 = scmp.eq.s32.totalorder %s35, 0
      %p249 = por %p247, %p248
      %p250 = scmp.ne.s32.totalorder %s242, %s244
      %p251 = scmp.eq.s32.totalorder %s40, 1
      %p252 = por %p250, %p251
      %p253 = scmp.ne.s32.totalorder %s244, %s245
      %p254 = scmp.eq.s32.totalorder %s40, 0
      %p255 = por %p253, %p254
      %p256 = scmp.ne.s32.totalorder %s244, %s245
      %p257 = scmp.eq.s32.totalorder %s41, 1
      %p258 = por %p256, %p257
      %p260 = scmp.ne.s32.totalorder %s245, %s259
      %p261 = scmp.eq.s32.totalorder %s41, 0
      %p262 = por %p260, %p261
      %s264 = sadd.s32 %s263, 1
      %p267 = scmp.eq.s32.totalorder %s35, 1
      %p268 = scmp.ne.s32.totalorder %s263, %s265
      %p269 = scmp.eq.s32.totalorder %s35, 0
      %p270 = por %p268, %p269
      %p271 = scmp.ne.s32.totalorder %s263, %s265
      %p272 = scmp.eq.s32.totalorder %s40, 1
      %p273 = por %p271, %p272
      %p274 = scmp.ne.s32.totalorder %s265, %s266
      %p275 = scmp.eq.s32.totalorder %s40, 0
      %p276 = por %p274, %p275
      %p277 = scmp.ne.s32.totalorder %s265, %s266
      %p278 = scmp.eq.s32.totalorder %s41, 1
      %p279 = por %p277, %p278
      %p281 = scmp.ne.s32.totalorder %s266, %s280
      %p282 = scmp.eq.s32.totalorder %s41, 0
      %p283 = por %p281, %p282
      %s285 = sadd.s32 %s284, 1
      %p288 = scmp.eq.s32.totalorder %s35, 1
      %p289 = scmp.ne.s32.totalorder %s284, %s286
      %p290 = scmp.eq.s32.totalorder %s35, 0
      %p291 = por %p289, %p290
      %p292 = scmp.ne.s32.totalorder %s284, %s286
      %p293 = scmp.eq.s32.totalorder %s40, 1
      %p294 = por %p292, %p293
      %p295 = scmp.ne.s32.totalorder %s286, %s287
      %p296 = scmp.eq.s32.totalorder %s40, 0
      %p297 = por %p295, %p296
      %p298 = scmp.ne.s32.totalorder %s286, %s287
      %p299 = scmp.eq.s32.totalorder %s41, 1
      %p300 = por %p298, %p299
      %p302 = scmp.ne.s32.totalorder %s287, %s301
      %p303 = scmp.eq.s32.totalorder %s41, 0
      %p304 = por %p302, %p303
      %s306 = sadd.s32 %s305, 1
      %p309 = scmp.eq.s32.totalorder %s35, 1
      %p310 = scmp.ne.s32.totalorder %s305, %s307
      %p311 = scmp.eq.s32.totalorder %s35, 0
      %p312 = por %p310, %p311
      %p313 = scmp.ne.s32.totalorder %s305, %s307
      %p314 = scmp.eq.s32.totalorder %s40, 1
      %p315 = por %p313, %p314
      %p316 = scmp.ne.s32.totalorder %s307, %s308
      %p317 = scmp.eq.s32.totalorder %s40, 0
      %p318 = por %p316, %p317
      %p319 = scmp.ne.s32.totalorder %s307, %s308
      %p320 = scmp.eq.s32.totalorder %s41, 1
      %p321 = por %p319, %p320
      %p323 = scmp.ne.s32.totalorder %s308, %s322
      %p324 = scmp.eq.s32.totalorder %s41, 0
      %p325 = por %p323, %p324
      %s327 = sadd.s32 %s326, 1
      %p330 = scmp.eq.s32.totalorder %s35, 1
      %p331 = scmp.ne.s32.totalorder %s326, %s328
      %p332 = scmp.eq.s32.totalorder %s35, 0
      %p333 = por %p331, %p332
      %p334 = scmp.ne.s32.totalorder %s326, %s328
      %p335 = scmp.eq.s32.totalorder %s40, 1
      %p336 = por %p334, %p335
      %p337 = scmp.ne.s32.totalorder %s328, %s329
      %p338 = scmp.eq.s32.totalorder %s40, 0
      %p339 = por %p337, %p338
      %p340 = scmp.ne.s32.totalorder %s328, %s329
      %p341 = scmp.eq.s32.totalorder %s41, 1
      %p342 = por %p340, %p341
      %p344 = scmp.ne.s32.totalorder %s329, %s343
      %p345 = scmp.eq.s32.totalorder %s41, 0
      %p346 = por %p344, %p345
      %s348 = sadd.s32 %s347, 1
      %p351 = scmp.eq.s32.totalorder %s35, 1
      %p352 = scmp.ne.s32.totalorder %s347, %s349
      %p353 = scmp.eq.s32.totalorder %s35, 0
      %p354 = por %p352, %p353
      %p355 = scmp.ne.s32.totalorder %s347, %s349
      %p356 = scmp.eq.s32.totalorder %s40, 1
      %p357 = por %p355, %p356
      %p358 = scmp.ne.s32.totalorder %s349, %s350
      %p359 = scmp.eq.s32.totalorder %s40, 0
      %p360 = por %p358, %p359
      %p361 = scmp.ne.s32.totalorder %s349, %s350
      %p362 = scmp.eq.s32.totalorder %s41, 1
      %p363 = por %p361, %p362
      %p365 = scmp.ne.s32.totalorder %s350, %s364
      %p366 = scmp.eq.s32.totalorder %s41, 0
      %p367 = por %p365, %p366
      %s369 = sadd.s32 %s368, 1
      %p372 = scmp.eq.s32.totalorder %s35, 1
      %p373 = scmp.ne.s32.totalorder %s368, %s370
      %p374 = scmp.eq.s32.totalorder %s35, 0
      %p375 = por %p373, %p374
      %p376 = scmp.ne.s32.totalorder %s368, %s370
      %p377 = scmp.eq.s32.totalorder %s40, 1
      %p378 = por %p376, %p377
      %p379 = scmp.ne.s32.totalorder %s370, %s371
      %p380 = scmp.eq.s32.totalorder %s40, 0
      %p381 = por %p379, %p380
      %p382 = scmp.ne.s32.totalorder %s370, %s371
      %p383 = scmp.eq.s32.totalorder %s41, 1
      %p384 = por %p382, %p383
      %p386 = scmp.ne.s32.totalorder %s371, %s385
      %p387 = scmp.eq.s32.totalorder %s41, 0
      %p388 = por %p386, %p387
      %s390 = sadd.s32 %s389, 1
      %p393 = scmp.eq.s32.totalorder %s35, 1
      %p394 = scmp.ne.s32.totalorder %s389, %s391
      %p395 = scmp.eq.s32.totalorder %s35, 0
      %p396 = por %p394, %p395
      %p397 = scmp.ne.s32.totalorder %s389, %s391
      %p398 = scmp.eq.s32.totalorder %s40, 1
      %p399 = por %p397, %p398
      %p400 = scmp.ne.s32.totalorder %s391, %s392
      %p401 = scmp.eq.s32.totalorder %s40, 0
      %p402 = por %p400, %p401
      %p403 = scmp.ne.s32.totalorder %s391, %s392
      %p404 = scmp.eq.s32.totalorder %s41, 1
      %p405 = por %p403, %p404
      %p407 = scmp.ne.s32.totalorder %s392, %s406
      %p408 = scmp.eq.s32.totalorder %s41, 0
      %p409 = por %p407, %p408
      %s411 = sadd.s32 %s410, 1
      %p414 = scmp.eq.s32.totalorder %s35, 1
      %p415 = scmp.ne.s32.totalorder %s410, %s412
      %p416 = scmp.eq.s32.totalorder %s35, 0
      %p417 = por %p415, %p416
      %p418 = scmp.ne.s32.totalorder %s410, %s412
      %p419 = scmp.eq.s32.totalorder %s40, 1
      %p420 = por %p418, %p419
      %p421 = scmp.ne.s32.totalorder %s412, %s413
      %p422 = scmp.eq.s32.totalorder %s40, 0
      %p423 = por %p421, %p422
      %p424 = scmp.ne.s32.totalorder %s412, %s413
      %p425 = scmp.eq.s32.totalorder %s41, 1
      %p426 = por %p424, %p425
      %p428 = scmp.ne.s32.totalorder %s413, %s427
      %p429 = scmp.eq.s32.totalorder %s41, 0
      %p430 = por %p428, %p429
      %s432 = sadd.s32 %s431, 1
      %p435 = scmp.eq.s32.totalorder %s35, 1
      %p436 = scmp.ne.s32.totalorder %s431, %s433
      %p437 = scmp.eq.s32.totalorder %s35, 0
      %p438 = por %p436, %p437
      %p439 = scmp.ne.s32.totalorder %s431, %s433
      %p440 = scmp.eq.s32.totalorder %s40, 1
      %p441 = por %p439, %p440
      %p442 = scmp.ne.s32.totalorder %s433, %s434
      %p443 = scmp.eq.s32.totalorder %s40, 0
      %p444 = por %p442, %p443
      %p445 = scmp.ne.s32.totalorder %s433, %s434
      %p446 = scmp.eq.s32.totalorder %s41, 1
      %p447 = por %p445, %p446
      %p449 = scmp.ne.s32.totalorder %s434, %s448
      %p450 = scmp.eq.s32.totalorder %s41, 0
      %p451 = por %p449, %p450
      %s452 = ssub.s32 %s35, %s42
      %p453 = scmp.eq.s32.totalorder %s452, 0
      %s455 = sadd.s32 %s454, 1
      %s456 = scalar_select %p453, %s454, %s455
      %p459 = pneg %p453
      %p460 = scmp.eq.s32.totalorder %s35, 1
      %p461 = por %p459, %p460
      %p462 = scmp.ne.s32.totalorder %s454, %s457
      %p463 = scmp.eq.s32.totalorder %s35, 0
      %p464 = por %p462, %p463
      %p465 = scmp.ne.s32.totalorder %s454, %s457
      %p466 = scmp.eq.s32.totalorder %s40, 1
      %p467 = por %p465, %p466
      %p468 = scmp.ne.s32.totalorder %s457, %s458
      %p469 = scmp.eq.s32.totalorder %s40, 0
      %p470 = por %p468, %p469
      %p471 = scmp.ne.s32.totalorder %s457, %s458
      %p472 = scmp.eq.s32.totalorder %s41, 1
      %p473 = por %p471, %p472
      %p475 = scmp.ne.s32.totalorder %s458, %s474
      %p476 = scmp.eq.s32.totalorder %s41, 0
      %p477 = por %p475, %p476
      %p478 = scmp.le.s32.totalorder 1, %s35
      %p479 = scmp.lt.s32.totalorder %s35, 3
      %p480 = pnand %p478, %p479
      %p481 = pneg %p480
      // Predicated region
      $region9: #{_lambda_.1} parent=5 // pred_check
        _
      $region10: #{_lambda_.1} parent=5 // pred_check_branch
        %483 = sbr.rel (%p480) target = $region12
      $region11: #{_lambda_.1} parent=5 // pred_region
        %s484 = ssub.s32 %s35, 1
        // Predicated region
        $region13: #{_lambda_.1} parent=11 // pred_check
          %p485 = pneg %p108
        $region14: #{_lambda_.1} parent=11 // pred_check_branch
          %487 = sbr.rel (%p485) target = $region16
        $region15: #{_lambda_.1} parent=11 // pred_region
          _
        $region16: #{_lambda_.1} parent=11 // pred_fallthru
          _
        // Predicated region
        $region17: #{_lambda_.1} parent=11 // pred_check
          %p488 = pneg %p129
        $region18: #{_lambda_.1} parent=11 // pred_check_branch
          %490 = sbr.rel (%p488) target = $region20
        $region19: #{_lambda_.1} parent=11 // pred_region
          _
        $region20: #{_lambda_.1} parent=11 // pred_fallthru
          _
        // Predicated region
        $region21: #{_lambda_.1} parent=11 // pred_check
          %p491 = pneg %p150
        $region22: #{_lambda_.1} parent=11 // pred_check_branch
          %493 = sbr.rel (%p491) target = $region24
        $region23: #{_lambda_.1} parent=11 // pred_region
          _
        $region24: #{_lambda_.1} parent=11 // pred_fallthru
          _
        // Predicated region
        $region25: #{_lambda_.1} parent=11 // pred_check
          %p494 = pneg %p171
        $region26: #{_lambda_.1} parent=11 // pred_check_branch
          %496 = sbr.rel (%p494) target = $region28
        $region27: #{_lambda_.1} parent=11 // pred_region
          _
        $region28: #{_lambda_.1} parent=11 // pred_fallthru
          _
        // Predicated region
        $region29: #{_lambda_.1} parent=11 // pred_check
          %p497 = pneg %p192
        $region30: #{_lambda_.1} parent=11 // pred_check_branch
          %499 = sbr.rel (%p497) target = $region32
        $region31: #{_lambda_.1} parent=11 // pred_region
          _
        $region32: #{_lambda_.1} parent=11 // pred_fallthru
          _
        // Predicated region
        $region33: #{_lambda_.1} parent=11 // pred_check
          %p500 = pneg %p213
        $region34: #{_lambda_.1} parent=11 // pred_check_branch
          %502 = sbr.rel (%p500) target = $region36
        $region35: #{_lambda_.1} parent=11 // pred_region
          _
        $region36: #{_lambda_.1} parent=11 // pred_fallthru
          _
        // Predicated region
        $region37: #{_lambda_.1} parent=11 // pred_check
          %p503 = pneg %p234
        $region38: #{_lambda_.1} parent=11 // pred_check_branch
          %505 = sbr.rel (%p503) target = $region40
        $region39: #{_lambda_.1} parent=11 // pred_region
          _
        $region40: #{_lambda_.1} parent=11 // pred_fallthru
          _
        // Predicated region
        $region41: #{_lambda_.1} parent=11 // pred_check
          %p506 = pneg %p255
        $region42: #{_lambda_.1} parent=11 // pred_check_branch
          %508 = sbr.rel (%p506) target = $region44
        $region43: #{_lambda_.1} parent=11 // pred_region
          _
        $region44: #{_lambda_.1} parent=11 // pred_fallthru
          _
        // Predicated region
        $region45: #{_lambda_.1} parent=11 // pred_check
          %p509 = pneg %p276
        $region46: #{_lambda_.1} parent=11 // pred_check_branch
          %511 = sbr.rel (%p509) target = $region48
        $region47: #{_lambda_.1} parent=11 // pred_region
          _
        $region48: #{_lambda_.1} parent=11 // pred_fallthru
          _
        // Predicated region
        $region49: #{_lambda_.1} parent=11 // pred_check
          %p512 = pneg %p297
        $region50: #{_lambda_.1} parent=11 // pred_check_branch
          %514 = sbr.rel (%p512) target = $region52
        $region51: #{_lambda_.1} parent=11 // pred_region
          _
        $region52: #{_lambda_.1} parent=11 // pred_fallthru
          _
        // Predicated region
        $region53: #{_lambda_.1} parent=11 // pred_check
          %p515 = pneg %p318
        $region54: #{_lambda_.1} parent=11 // pred_check_branch
          %517 = sbr.rel (%p515) target = $region56
        $region55: #{_lambda_.1} parent=11 // pred_region
          _
        $region56: #{_lambda_.1} parent=11 // pred_fallthru
          _
        // Predicated region
        $region57: #{_lambda_.1} parent=11 // pred_check
          %p518 = pneg %p339
        $region58: #{_lambda_.1} parent=11 // pred_check_branch
          %520 = sbr.rel (%p518) target = $region60
        $region59: #{_lambda_.1} parent=11 // pred_region
          _
        $region60: #{_lambda_.1} parent=11 // pred_fallthru
          _
        // Predicated region
        $region61: #{_lambda_.1} parent=11 // pred_check
          %p521 = pneg %p360
        $region62: #{_lambda_.1} parent=11 // pred_check_branch
          %523 = sbr.rel (%p521) target = $region64
        $region63: #{_lambda_.1} parent=11 // pred_region
          _
        $region64: #{_lambda_.1} parent=11 // pred_fallthru
          _
        // Predicated region
        $region65: #{_lambda_.1} parent=11 // pred_check
          %p524 = pneg %p381
        $region66: #{_lambda_.1} parent=11 // pred_check_branch
          %526 = sbr.rel (%p524) target = $region68
        $region67: #{_lambda_.1} parent=11 // pred_region
          _
        $region68: #{_lambda_.1} parent=11 // pred_fallthru
          _
        // Predicated region
        $region69: #{_lambda_.1} parent=11 // pred_check
          %p527 = pneg %p402
        $region70: #{_lambda_.1} parent=11 // pred_check_branch
          %529 = sbr.rel (%p527) target = $region72
        $region71: #{_lambda_.1} parent=11 // pred_region
          _
        $region72: #{_lambda_.1} parent=11 // pred_fallthru
          _
        // Predicated region
        $region73: #{_lambda_.1} parent=11 // pred_check
          %p530 = pneg %p423
        $region74: #{_lambda_.1} parent=11 // pred_check_branch
          %532 = sbr.rel (%p530) target = $region76
        $region75: #{_lambda_.1} parent=11 // pred_region
          _
        $region76: #{_lambda_.1} parent=11 // pred_fallthru
          _
        // Predicated region
        $region77: #{_lambda_.1} parent=11 // pred_check
          %p533 = pneg %p444
        $region78: #{_lambda_.1} parent=11 // pred_check_branch
          %535 = sbr.rel (%p533) target = $region80
        $region79: #{_lambda_.1} parent=11 // pred_region
          _
        $region80: #{_lambda_.1} parent=11 // pred_fallthru
          _
      $region12: #{_lambda_.1} parent=5 // pred_fallthru
        _
      %p536 = scmp.lt.s32.totalorder %s35, 2
      // Predicated region
      $region81: #{_lambda_.1} parent=5 // pred_check
        %p537 = pneg %p536
      $region82: #{_lambda_.1} parent=5 // pred_check_branch
        %539 = sbr.rel (%p537) target = $region84
      $region83: #{_lambda_.1} parent=5 // pred_region
        // Predicated region
        $region85: #{_lambda_.1} parent=83 // pred_check
          %p540 = pneg %p55
        $region86: #{_lambda_.1} parent=83 // pred_check_branch
          %542 = sbr.rel (%p540) target = $region88
        $region87: #{_lambda_.1} parent=83 // pred_region
          %p543 = scmp.lt.s32.totalorder %s35, 1
          %s544 = scalar_select %p543, %s35, 1
          %s545 = smul.addr %s544, 8
          %s546 = scalar_lea.vmem %s1, %s545
        $region88: #{_lambda_.1} parent=83 // pred_fallthru
          _
        // Predicated region
        $region89: #{_lambda_.1} parent=83 // pred_check
          %p547 = pneg %p81
        $region90: #{_lambda_.1} parent=83 // pred_check_branch
          %549 = sbr.rel (%p547) target = $region92
        $region91: #{_lambda_.1} parent=83 // pred_region
          %p550 = scmp.lt.s32.totalorder %s35, 1
          %s551 = scalar_select %p550, %s35, 1
          %s552 = smul.addr %s551, 8
          %s553 = scalar_lea.vmem %s2, %s552
        $region92: #{_lambda_.1} parent=83 // pred_fallthru
          _
      $region84: #{_lambda_.1} parent=5 // pred_fallthru
        _
      %p554 = scmp.le.s32.totalorder 1, %s35
      %p555 = scmp.lt.s32.totalorder %s35, 3
      %p556 = pnand %p554, %p555
      %p557 = pneg %p556
      // Predicated region
      $region93: #{_lambda_.1} parent=5 // pred_check
        _
      $region94: #{_lambda_.1} parent=5 // pred_check_branch
        %559 = sbr.rel (%p556) target = $region96
      $region95: #{_lambda_.1} parent=5 // pred_region
        %s560 = ssub.s32 %s35, 1
        %p561 = scmp.lt.s32.totalorder %s40, 1
        %s562 = scalar_select %p561, %s40, 1
        %s563 = smul.addr %s562, 8
        %s564 = scalar_lea.vmem %s1, %s563
        %p565 = pneg %p61
        %p566 = pneg %p58
        %p567 = scmp.lt.s32.totalorder %s40, 1
        %s568 = scalar_select %p567, %s40, 1
        %s569 = smul.addr %s568, 8
        %s570 = scalar_lea.vmem %s2, %s569
        %p571 = pneg %p87
        %p572 = pneg %p84
        %p573 = pneg %p108
        %p574 = pneg %p105
        %p575 = pneg %p129
        %p576 = pneg %p126
        %p577 = pneg %p150
        %p578 = pneg %p147
        %p579 = pneg %p171
        %p580 = pneg %p168
        %p581 = pneg %p192
        %p582 = pneg %p189
        %p583 = pneg %p213
        %p584 = pneg %p210
        %p585 = pneg %p234
        %p586 = pneg %p231
        %p587 = pneg %p255
        %p588 = pneg %p252
        %p589 = pneg %p276
        %p590 = pneg %p273
        %p591 = pneg %p297
        %p592 = pneg %p294
        %p593 = pneg %p318
        %p594 = pneg %p315
        %p595 = pneg %p339
        %p596 = pneg %p336
        %p597 = pneg %p360
        %p598 = pneg %p357
        %p599 = pneg %p381
        %p600 = pneg %p378
        %p601 = pneg %p402
        %p602 = pneg %p399
        %p603 = pneg %p423
        %p604 = pneg %p420
        %p605 = pneg %p444
        %p606 = pneg %p441
        %p607 = pneg %p470
        %p608 = pneg %p467
        %s609 = sand.u32 %s457, 1
        %s610 = scalar_lea.sflag [#allocation6], %s609
        %s611 = sand.u32 %s457, 1
        %s612 = scalar_lea.vmem [#allocation5], %s611
        %p613 = scmp.lt.s32.totalorder %s40, 1
        %s614 = scalar_select %p613, %s40, 1
        %s615 = smul.addr %s614, 8
        %s616 = scalar_lea.vmem %s1, %s615
        %p617 = scmp.lt.s32.totalorder %s40, 1
        %s618 = scalar_select %p617, %s40, 1
        %s619 = smul.addr %s618, 8
        %s620 = scalar_lea.vmem %s2, %s619
        %v621 = vld [vmem:[%s616] sm:$0xff]
        %v622 = vld [vmem:[%s620] sm:$0xff]
        %v623 = vld [vmem:[%s3] sm:$0xff]
        %v624 = vld [vmem:[%s4] sm:$0xff]
        %v625 = vld [vmem:[%s5] sm:$0xff]
        %v626 = vld [vmem:[%s5 + $0x8] sm:$0xff]
        %v627 = vld [vmem:[%s6] sm:$0x1]
        %v628 = vld [vmem:[%s7] sm:$0x1]
        %vm629 = vcmask 523264
        %v630 = vsel %vm629, %v621, 0.0
        %631 = vadd.xlane.f32.xlu0 %v630
        %v632 = vpop.xlane.xlu0 %631
        %v633 = vrcp.pop 64.0
        %v634 = vmul.f32 %v632, %v633
        %v635 = vsub.f32 %v621, %v634
        %v636 = vmul.f32 %v635, %v635
        %v637 = vsel %vm629, %v636, 0.0
        %638 = vadd.xlane.f32.xlu0 %v637
        %v639 = vpop.xlane.xlu0 %638
        %v640 = vmul.f32 %v639, %v633
        %v641 = vadd.f32 %v640, 1e-05
        %v642 = vrsqrt.pop %v641
        %v643 = vmul.f32 %v635, %v642
        %v645 = vlaneseq
        %v646 = vshrl.u32 %v645, 7
        %v647 = vsub.s32 0, %v646
        %v648 = vrot.slane %v627, %v647
        %v650 = vmul.f32 %v643, %v648
        %v652 = vlaneseq
        %v653 = vshrl.u32 %v652, 7
        %v654 = vsub.s32 0, %v653
        %v655 = vrot.slane %v628, %v654
        %v657 = vadd.f32 %v650, %v655
        %v658 = vld [vmem:[%s10] sm:$0xff]
        %v659 = vld [vmem:[%s10 + $0x8] sm:$0xff]
        %v660 = vld [vmem:[%s10 + $0x10] sm:$0xff]
        %v661 = vld [vmem:[%s10 + $0x18] sm:$0xff]
        %v662 = vld [vmem:[%s10 + $0x20] sm:$0xff]
        %v663 = vld [vmem:[%s10 + $0x28] sm:$0xff]
        %v664 = vld [vmem:[%s10 + $0x30] sm:$0xff]
        %v665 = vld [vmem:[%s10 + $0x38] sm:$0xff]
        %v666 = vld [vmem:[%s10 + $0x40] sm:$0xff]
        %v667 = vld [vmem:[%s10 + $0x48] sm:$0xff]
        %v668 = vld [vmem:[%s10 + $0x50] sm:$0xff]
        %v669 = vld [vmem:[%s10 + $0x58] sm:$0xff]
        %v670 = vld [vmem:[%s10 + $0x60] sm:$0xff]
        %v671 = vld [vmem:[%s10 + $0x68] sm:$0xff]
        %v672 = vld [vmem:[%s10 + $0x70] sm:$0xff]
        %v673 = vld [vmem:[%s10 + $0x78] sm:$0xff]
        %v674 = vld [vmem:[%s11] sm:$0x3]
        %v676 = vlaneseq
        %v677 = vshrl.u32 %v676, 7
        %v678 = vsub.s32 0, %v677
        %v679 = vrot.slane %v674, %v678
        %v680 = vlaneseq
        %v681 = vshrl.u32 %v680, 7
        %v682 = vsub.s32 1, %v681
        %v683 = vrot.slane %v674, %v682
        %v687 = vsel %vm629, %v657, 0
        %689 = vmatprep.subr.mxu0 0.0
        %690 = vmatpush1.msra.mxu0 0.0
        %691 = vmatprep.subr.mxu0 0.0
        %692 = vmatpush1.msra.mxu0 0.0
        %693 = vmatprep.subr.mxu0 0.0
        %694 = vmatpush1.msra.mxu0 0.0
        %695 = vmatprep.subr.mxu0 0.0
        %696 = vmatpush1.msra.mxu0 0.0
        %697 = vmatprep.subr.mxu0 0.0
        %698 = vmatpush1.msra.mxu0 0.0
        %699 = vmatprep.subr.mxu0 0.0
        %700 = vmatpush1.msra.mxu0 0.0
        %701 = vmatprep.subr.mxu0 0.0
        %702 = vmatpush1.msra.mxu0 0.0
        %703 = vmatprep.subr.mxu0 0.0
        %704 = vmatpush1.msra.mxu0 0.0
        %705 = vmatprep.subr.mxu0 %v673
        %706 = vmatpush1.msra.mxu0 %v672
        %707 = vmatprep.subr.mxu0 %v671
        %708 = vmatpush1.msra.mxu0 %v670
        %709 = vmatprep.subr.mxu0 %v669
        %710 = vmatpush1.msra.mxu0 %v668
        %711 = vmatprep.subr.mxu0 %v667
        %712 = vmatpush1.msra.mxu0 %v666
        %713 = vmatprep.subr.mxu0 %v665
        %714 = vmatpush1.msra.mxu0 %v664
        %715 = vmatprep.subr.mxu0 %v663
        %716 = vmatpush1.msra.mxu0 %v662
        %717 = vmatprep.subr.mxu0 %v661
        %718 = vmatpush1.msra.mxu0 %v660
        %719 = vmatprep.subr.mxu0 %v659
        %720 = vmatpush1.msra.mxu0 %v658
        %721 = vmatprep.subr.mxu0 0.0
        %722 = vmatpush2.msra.mxu0 0.0
        %723 = vmatprep.subr.mxu0 0.0
        %724 = vmatpush2.msra.mxu0 0.0
        %725 = vmatprep.subr.mxu0 0.0
        %726 = vmatpush2.msra.mxu0 0.0
        %727 = vmatprep.subr.mxu0 0.0
        %728 = vmatpush2.msra.mxu0 0.0
        %729 = vmatprep.subr.mxu0 0.0
        %730 = vmatpush2.msra.mxu0 0.0
        %731 = vmatprep.subr.mxu0 0.0
        %732 = vmatpush2.msra.mxu0 0.0
        %733 = vmatprep.subr.mxu0 0.0
        %734 = vmatpush2.msra.mxu0 0.0
        %735 = vmatprep.subr.mxu0 0.0
        %736 = vmatpush2.msra.mxu0 0.0
        %737 = vmatprep.subr.mxu0 0.0
        %738 = vmatpush2.msra.mxu0 0.0
        %739 = vmatprep.subr.mxu0 0.0
        %740 = vmatpush2.msra.mxu0 0.0
        %741 = vmatprep.subr.mxu0 0.0
        %742 = vmatpush2.msra.mxu0 0.0
        %743 = vmatprep.subr.mxu0 0.0
        %744 = vmatpush2.msra.mxu0 0.0
        %745 = vmatprep.subr.mxu0 0.0
        %746 = vmatpush2.msra.mxu0 0.0
        %747 = vmatprep.subr.mxu0 0.0
        %748 = vmatpush2.msra.mxu0 0.0
        %749 = vmatprep.subr.mxu0 0.0
        %750 = vmatpush2.msra.mxu0 0.0
        %751 = vmatprep.subr.mxu0 0.0
        %752 = vmatpush2.msra.mxu0 0.0
        %753 = vmatprep.mubr.f32.mxu0 0.0
        %754 = vmatmul.mubr.f32.gmra.mxu0 %v687
        %v755 = vpop.f32.mrf.mxu0
        %v756 = vadd.f32 %v679, %v755
        %v757 = vpop.f32.mrf.mxu0
        %v758 = vadd.f32 %v683, %v757
        %759 = vdwg.mxu0
        %v760 = vmul.f32 %v756, %v623
        %vm761 = vcmask 130048
        %v763 = vsel %vm761, %v756, 0
        %765 = vmatprep.subr.mxu0 0.0
        %766 = vmatpush1.msra.mxu0 0.0
        %767 = vmatprep.subr.mxu0 0.0
        %768 = vmatpush1.msra.mxu0 0.0
        %769 = vmatprep.subr.mxu0 0.0
        %770 = vmatpush1.msra.mxu0 0.0
        %771 = vmatprep.subr.mxu0 0.0
        %772 = vmatpush1.msra.mxu0 0.0
        %773 = vmatprep.subr.mxu0 0.0
        %774 = vmatpush1.msra.mxu0 0.0
        %775 = vmatprep.subr.mxu0 0.0
        %776 = vmatpush1.msra.mxu0 0.0
        %777 = vmatprep.subr.mxu0 0.0
        %778 = vmatpush1.msra.mxu0 0.0
        %779 = vmatprep.subr.mxu0 0.0
        %780 = vmatpush1.msra.mxu0 0.0
        %781 = vmatprep.subr.mxu0 0.0
        %782 = vmatpush1.msra.mxu0 0.0
        %783 = vmatprep.subr.mxu0 0.0
        %784 = vmatpush1.msra.mxu0 0.0
        %785 = vmatprep.subr.mxu0 0.0
        %786 = vmatpush1.msra.mxu0 0.0
        %787 = vmatprep.subr.mxu0 0.0
        %788 = vmatpush1.msra.mxu0 0.0
        %789 = vmatprep.subr.mxu0 0.0
        %790 = vmatpush1.msra.mxu0 0.0
        %791 = vmatprep.subr.mxu0 0.0
        %792 = vmatpush1.msra.mxu0 0.0
        %793 = vmatprep.subr.mxu0 0.0
        %794 = vmatpush1.msra.mxu0 %v626
        %795 = vmatprep.subr.mxu0 0.0
        %796 = vmatpush1.msra.mxu0 %v625
        %797 = vmatprep.subr.mxu0 0.0
        %798 = vmatpush2.msra.mxu0 0.0
        %799 = vmatprep.subr.mxu0 0.0
        %800 = vmatpush2.msra.mxu0 0.0
        %801 = vmatprep.subr.mxu0 0.0
        %802 = vmatpush2.msra.mxu0 0.0
        %803 = vmatprep.subr.mxu0 0.0
        %804 = vmatpush2.msra.mxu0 0.0
        %805 = vmatprep.subr.mxu0 0.0
        %806 = vmatpush2.msra.mxu0 0.0
        %807 = vmatprep.subr.mxu0 0.0
        %808 = vmatpush2.msra.mxu0 0.0
        %809 = vmatprep.subr.mxu0 0.0
        %810 = vmatpush2.msra.mxu0 0.0
        %811 = vmatprep.subr.mxu0 0.0
        %812 = vmatpush2.msra.mxu0 0.0
        %813 = vmatprep.subr.mxu0 0.0
        %814 = vmatpush2.msra.mxu0 0.0
        %815 = vmatprep.subr.mxu0 0.0
        %816 = vmatpush2.msra.mxu0 0.0
        %817 = vmatprep.subr.mxu0 0.0
        %818 = vmatpush2.msra.mxu0 0.0
        %819 = vmatprep.subr.mxu0 0.0
        %820 = vmatpush2.msra.mxu0 0.0
        %821 = vmatprep.subr.mxu0 0.0
        %822 = vmatpush2.msra.mxu0 0.0
        %823 = vmatprep.subr.mxu0 0.0
        %824 = vmatpush2.msra.mxu0 0.0
        %825 = vmatprep.subr.mxu0 0.0
        %826 = vmatpush2.msra.mxu0 0.0
        %827 = vmatprep.subr.mxu0 0.0
        %828 = vmatpush2.msra.mxu0 0.0
        %829 = vmatprep.mubr.f32.mxu0 0.0
        %830 = vmatmul.mubr.f32.gmra.mxu0 %v763
        %v831 = vpop.f32.mrf.mxu0
        %v832 = vadd.f32 0.0, %v831
        %v833 = vpop.f32.mrf.mxu0
        %834 = vdwg.mxu0
        %v835 = vmul.f32 %v832, %v624
        %v836 = vadd.f32 %v760, %v835
        %838 = vrot.lane.b32.xlu0 %v623, 16
        %v839 = vpop.permute.xlu0 %838
        %v841 = vmul.f32 %v756, %v839
        %842 = vrot.lane.b32.xlu0 %v756, 112
        %v843 = vpop.permute.xlu0 %842
        %v844 = vsel %vm761, %v843, 0
        %846 = vmatprep.subr.mxu0 0.0
        %847 = vmatpush1.msra.mxu0 0.0
        %848 = vmatprep.subr.mxu0 0.0
        %849 = vmatpush1.msra.mxu0 0.0
        %850 = vmatprep.subr.mxu0 0.0
        %851 = vmatpush1.msra.mxu0 0.0
        %852 = vmatprep.subr.mxu0 0.0
        %853 = vmatpush1.msra.mxu0 0.0
        %854 = vmatprep.subr.mxu0 0.0
        %855 = vmatpush1.msra.mxu0 0.0
        %856 = vmatprep.subr.mxu0 0.0
        %857 = vmatpush1.msra.mxu0 0.0
        %858 = vmatprep.subr.mxu0 0.0
        %859 = vmatpush1.msra.mxu0 0.0
        %860 = vmatprep.subr.mxu0 0.0
        %861 = vmatpush1.msra.mxu0 0.0
        %862 = vmatprep.subr.mxu0 0.0
        %863 = vmatpush1.msra.mxu0 0.0
        %864 = vmatprep.subr.mxu0 0.0
        %865 = vmatpush1.msra.mxu0 0.0
        %866 = vmatprep.subr.mxu0 0.0
        %867 = vmatpush1.msra.mxu0 0.0
        %868 = vmatprep.subr.mxu0 0.0
        %869 = vmatpush1.msra.mxu0 0.0
        %870 = vmatprep.subr.mxu0 0.0
        %871 = vmatpush1.msra.mxu0 0.0
        %872 = vmatprep.subr.mxu0 0.0
        %873 = vmatpush1.msra.mxu0 0.0
        %874 = vmatprep.subr.mxu0 0.0
        %875 = vmatpush1.msra.mxu0 %v626
        %876 = vmatprep.subr.mxu0 0.0
        %877 = vmatpush1.msra.mxu0 %v625
        %878 = vmatprep.subr.mxu0 0.0
        %879 = vmatpush2.msra.mxu0 0.0
        %880 = vmatprep.subr.mxu0 0.0
        %881 = vmatpush2.msra.mxu0 0.0
        %882 = vmatprep.subr.mxu0 0.0
        %883 = vmatpush2.msra.mxu0 0.0
        %884 = vmatprep.subr.mxu0 0.0
        %885 = vmatpush2.msra.mxu0 0.0
        %886 = vmatprep.subr.mxu0 0.0
        %887 = vmatpush2.msra.mxu0 0.0
        %888 = vmatprep.subr.mxu0 0.0
        %889 = vmatpush2.msra.mxu0 0.0
        %890 = vmatprep.subr.mxu0 0.0
        %891 = vmatpush2.msra.mxu0 0.0
        %892 = vmatprep.subr.mxu0 0.0
        %893 = vmatpush2.msra.mxu0 0.0
        %894 = vmatprep.subr.mxu0 0.0
        %895 = vmatpush2.msra.mxu0 0.0
        %896 = vmatprep.subr.mxu0 0.0
        %897 = vmatpush2.msra.mxu0 0.0
        %898 = vmatprep.subr.mxu0 0.0
        %899 = vmatpush2.msra.mxu0 0.0
        %900 = vmatprep.subr.mxu0 0.0
        %901 = vmatpush2.msra.mxu0 0.0
        %902 = vmatprep.subr.mxu0 0.0
        %903 = vmatpush2.msra.mxu0 0.0
        %904 = vmatprep.subr.mxu0 0.0
        %905 = vmatpush2.msra.mxu0 0.0
        %906 = vmatprep.subr.mxu0 0.0
        %907 = vmatpush2.msra.mxu0 0.0
        %908 = vmatprep.subr.mxu0 0.0
        %909 = vmatpush2.msra.mxu0 0.0
        %910 = vmatprep.mubr.f32.mxu0 0.0
        %911 = vmatmul.mubr.f32.gmra.mxu0 %v844
        %v912 = vpop.f32.mrf.mxu0
        %v913 = vadd.f32 0.0, %v912
        %v914 = vpop.f32.mrf.mxu0
        %915 = vdwg.mxu0
        %v916 = vmul.f32 %v913, %v624
        %918 = vrot.lane.b32.xlu0 %v916, 16
        %v919 = vpop.permute.xlu0 %918
        %v921 = vadd.f32 %v841, %v919
        %923 = vrot.lane.b32.xlu0 %v921, 112
        %v924 = vpop.permute.xlu0 %923
        %v926 = vsel %vm761, %v836, 0
        %v928 = vsel %vm761, %v924, 0
        %930 = vmatprep.subr.mxu0 0.0
        %931 = vmatpush1.xpose.msra.mxu0 0.0
        %932 = vmatprep.subr.mxu0 0.0
        %933 = vmatpush1.xpose.msra.mxu0 0.0
        %934 = vmatprep.subr.mxu0 0.0
        %935 = vmatpush1.xpose.msra.mxu0 0.0
        %936 = vmatprep.subr.mxu0 0.0
        %937 = vmatpush1.xpose.msra.mxu0 0.0
        %938 = vmatprep.subr.mxu0 0.0
        %939 = vmatpush1.xpose.msra.mxu0 0.0
        %940 = vmatprep.subr.mxu0 0.0
        %941 = vmatpush1.xpose.msra.mxu0 0.0
        %942 = vmatprep.subr.mxu0 0.0
        %943 = vmatpush1.xpose.msra.mxu0 0.0
        %944 = vmatprep.subr.mxu0 0.0
        %945 = vmatpush1.xpose.msra.mxu0 0.0
        %946 = vmatprep.subr.mxu0 0.0
        %947 = vmatpush1.xpose.msra.mxu0 0.0
        %948 = vmatprep.subr.mxu0 0.0
        %949 = vmatpush1.xpose.msra.mxu0 0.0
        %950 = vmatprep.subr.mxu0 0.0
        %951 = vmatpush1.xpose.msra.mxu0 0.0
        %952 = vmatprep.subr.mxu0 0.0
        %953 = vmatpush1.xpose.msra.mxu0 0.0
        %954 = vmatprep.subr.mxu0 0.0
        %955 = vmatpush1.xpose.msra.mxu0 0.0
        %956 = vmatprep.subr.mxu0 0.0
        %957 = vmatpush1.xpose.msra.mxu0 0.0
        %958 = vmatprep.subr.mxu0 0.0
        %959 = vmatpush1.xpose.msra.mxu0 0.0
        %960 = vmatprep.subr.mxu0 0.0
        %961 = vmatpush1.xpose.msra.mxu0 %v928
        %962 = vmatprep.subr.mxu0 0.0
        %963 = vmatpush2.xpose.msra.mxu0 0.0
        %964 = vmatprep.subr.mxu0 0.0
        %965 = vmatpush2.xpose.msra.mxu0 0.0
        %966 = vmatprep.subr.mxu0 0.0
        %967 = vmatpush2.xpose.msra.mxu0 0.0
        %968 = vmatprep.subr.mxu0 0.0
        %969 = vmatpush2.xpose.msra.mxu0 0.0
        %970 = vmatprep.subr.mxu0 0.0
        %971 = vmatpush2.xpose.msra.mxu0 0.0
        %972 = vmatprep.subr.mxu0 0.0
        %973 = vmatpush2.xpose.msra.mxu0 0.0
        %974 = vmatprep.subr.mxu0 0.0
        %975 = vmatpush2.xpose.msra.mxu0 0.0
        %976 = vmatprep.subr.mxu0 0.0
        %977 = vmatpush2.xpose.msra.mxu0 0.0
        %978 = vmatprep.subr.mxu0 0.0
        %979 = vmatpush2.xpose.msra.mxu0 0.0
        %980 = vmatprep.subr.mxu0 0.0
        %981 = vmatpush2.xpose.msra.mxu0 0.0
        %982 = vmatprep.subr.mxu0 0.0
        %983 = vmatpush2.xpose.msra.mxu0 0.0
        %984 = vmatprep.subr.mxu0 0.0
        %985 = vmatpush2.xpose.msra.mxu0 0.0
        %986 = vmatprep.subr.mxu0 0.0
        %987 = vmatpush2.xpose.msra.mxu0 0.0
        %988 = vmatprep.subr.mxu0 0.0
        %989 = vmatpush2.xpose.msra.mxu0 0.0
        %990 = vmatprep.subr.mxu0 0.0
        %991 = vmatpush2.xpose.msra.mxu0 0.0
        %992 = vmatprep.subr.mxu0 0.0
        %993 = vmatpush2.xpose.msra.mxu0 0.0
        %994 = vmatprep.mubr.f32.mxu0 0.0
        %995 = vmatmul.mubr.f32.gmra.mxu0 %v926
        %v996 = vpop.f32.mrf.mxu0
        %v997 = vadd.f32 0.0, %v996
        %v998 = vpop.f32.mrf.mxu0
        %999 = vdwg.mxu0
        %v1000 = vmul.f32 %v997, 0.25
        %v1001 = vadd.f32 %v1000, %v622
        %vm1002 = vcmask 64512
        %v1003 = vsel %vm1002, %v1001, -inf
        %1004 = vmax.xlane.f32.xlu0 %v1003
        %v1005 = vpop.xlane.xlu0 %1004
        %v1006 = vsub.f32 %v1001, %v1005
        %v1007 = vmul.f32 %v1006, 1.442695
        %v1008 = vpow.pop %v1007
        %v1009 = vsel %vm1002, %v1008, 0.0
        %1010 = vadd.xlane.f32.xlu0 %v1009
        %v1011 = vpop.xlane.xlu0 %1010
        %v1012 = vrcp.pop %v1011
        %v1013 = vmul.f32 %v1008, %v1012
        %1014 = vrot.lane.b32.xlu0 %v756, 96
        %v1015 = vpop.permute.xlu0 %1014
        %v1018 = vsel %vm1002, %v1013, 0
        %1020 = vmatprep.subr.mxu0 0.0
        %1021 = vmatpush1.msra.mxu0 0.0
        %1022 = vmatprep.subr.mxu0 0.0
        %1023 = vmatpush1.msra.mxu0 0.0
        %1024 = vmatprep.subr.mxu0 0.0
        %1025 = vmatpush1.msra.mxu0 0.0
        %1026 = vmatprep.subr.mxu0 0.0
        %1027 = vmatpush1.msra.mxu0 0.0
        %1028 = vmatprep.subr.mxu0 0.0
        %1029 = vmatpush1.msra.mxu0 0.0
        %1030 = vmatprep.subr.mxu0 0.0
        %1031 = vmatpush1.msra.mxu0 0.0
        %1032 = vmatprep.subr.mxu0 0.0
        %1033 = vmatpush1.msra.mxu0 0.0
        %1034 = vmatprep.subr.mxu0 0.0
        %1035 = vmatpush1.msra.mxu0 0.0
        %1036 = vmatprep.subr.mxu0 0.0
        %1037 = vmatpush1.msra.mxu0 0.0
        %1038 = vmatprep.subr.mxu0 0.0
        %1039 = vmatpush1.msra.mxu0 0.0
        %1040 = vmatprep.subr.mxu0 0.0
        %1041 = vmatpush1.msra.mxu0 0.0
        %1042 = vmatprep.subr.mxu0 0.0
        %1043 = vmatpush1.msra.mxu0 0.0
        %1044 = vmatprep.subr.mxu0 0.0
        %1045 = vmatpush1.msra.mxu0 0.0
        %1046 = vmatprep.subr.mxu0 0.0
        %1047 = vmatpush1.msra.mxu0 0.0
        %1048 = vmatprep.subr.mxu0 0.0
        %1049 = vmatpush1.msra.mxu0 0.0
        %1050 = vmatprep.subr.mxu0 0.0
        %1051 = vmatpush1.msra.mxu0 %v1015
        %1052 = vmatprep.subr.mxu0 0.0
        %1053 = vmatpush2.msra.mxu0 0.0
        %1054 = vmatprep.subr.mxu0 0.0
        %1055 = vmatpush2.msra.mxu0 0.0
        %1056 = vmatprep.subr.mxu0 0.0
        %1057 = vmatpush2.msra.mxu0 0.0
        %1058 = vmatprep.subr.mxu0 0.0
        %1059 = vmatpush2.msra.mxu0 0.0
        %1060 = vmatprep.subr.mxu0 0.0
        %1061 = vmatpush2.msra.mxu0 0.0
        %1062 = vmatprep.subr.mxu0 0.0
        %1063 = vmatpush2.msra.mxu0 0.0
        %1064 = vmatprep.subr.mxu0 0.0
        %1065 = vmatpush2.msra.mxu0 0.0
        %1066 = vmatprep.subr.mxu0 0.0
        %1067 = vmatpush2.msra.mxu0 0.0
        %1068 = vmatprep.subr.mxu0 0.0
        %1069 = vmatpush2.msra.mxu0 0.0
        %1070 = vmatprep.subr.mxu0 0.0
        %1071 = vmatpush2.msra.mxu0 0.0
        %1072 = vmatprep.subr.mxu0 0.0
        %1073 = vmatpush2.msra.mxu0 0.0
        %1074 = vmatprep.subr.mxu0 0.0
        %1075 = vmatpush2.msra.mxu0 0.0
        %1076 = vmatprep.subr.mxu0 0.0
        %1077 = vmatpush2.msra.mxu0 0.0
        %1078 = vmatprep.subr.mxu0 0.0
        %1079 = vmatpush2.msra.mxu0 0.0
        %1080 = vmatprep.subr.mxu0 0.0
        %1081 = vmatpush2.msra.mxu0 0.0
        %1082 = vmatprep.subr.mxu0 0.0
        %1083 = vmatpush2.msra.mxu0 0.0
        %1084 = vmatprep.mubr.f32.mxu0 0.0
        %1085 = vmatmul.mubr.f32.gmra.mxu0 %v1018
        %v1086 = vpop.f32.mrf.mxu0
        %v1087 = vadd.f32 0.0, %v1086
        %v1088 = vpop.f32.mrf.mxu0
        %1089 = vdwg.mxu0
        %1090 = vst.msk [vmem:[#allocation2] sm:$0xff] %vm761, %v1087
        %1091 = vrot.lane.b32.xlu0 %v623, 48
        %v1092 = vpop.permute.xlu0 %1091
        %v1094 = vmul.f32 %v756, %v1092
        %1095 = vrot.lane.b32.xlu0 %v756, 80
        %v1096 = vpop.permute.xlu0 %1095
        %v1097 = vsel %vm761, %v1096, 0
        %1099 = vmatprep.subr.mxu0 0.0
        %1100 = vmatpush1.msra.mxu0 0.0
        %1101 = vmatprep.subr.mxu0 0.0
        %1102 = vmatpush1.msra.mxu0 0.0
        %1103 = vmatprep.subr.mxu0 0.0
        %1104 = vmatpush1.msra.mxu0 0.0
        %1105 = vmatprep.subr.mxu0 0.0
        %1106 = vmatpush1.msra.mxu0 0.0
        %1107 = vmatprep.subr.mxu0 0.0
        %1108 = vmatpush1.msra.mxu0 0.0
        %1109 = vmatprep.subr.mxu0 0.0
        %1110 = vmatpush1.msra.mxu0 0.0
        %1111 = vmatprep.subr.mxu0 0.0
        %1112 = vmatpush1.msra.mxu0 0.0
        %1113 = vmatprep.subr.mxu0 0.0
        %1114 = vmatpush1.msra.mxu0 0.0
        %1115 = vmatprep.subr.mxu0 0.0
        %1116 = vmatpush1.msra.mxu0 0.0
        %1117 = vmatprep.subr.mxu0 0.0
        %1118 = vmatpush1.msra.mxu0 0.0
        %1119 = vmatprep.subr.mxu0 0.0
        %1120 = vmatpush1.msra.mxu0 0.0
        %1121 = vmatprep.subr.mxu0 0.0
        %1122 = vmatpush1.msra.mxu0 0.0
        %1123 = vmatprep.subr.mxu0 0.0
        %1124 = vmatpush1.msra.mxu0 0.0
        %1125 = vmatprep.subr.mxu0 0.0
        %1126 = vmatpush1.msra.mxu0 0.0
        %1127 = vmatprep.subr.mxu0 0.0
        %1128 = vmatpush1.msra.mxu0 %v626
        %1129 = vmatprep.subr.mxu0 0.0
        %1130 = vmatpush1.msra.mxu0 %v625
        %1131 = vmatprep.subr.mxu0 0.0
        %1132 = vmatpush2.msra.mxu0 0.0
        %1133 = vmatprep.subr.mxu0 0.0
        %1134 = vmatpush2.msra.mxu0 0.0
        %1135 = vmatprep.subr.mxu0 0.0
        %1136 = vmatpush2.msra.mxu0 0.0
        %1137 = vmatprep.subr.mxu0 0.0
        %1138 = vmatpush2.msra.mxu0 0.0
        %1139 = vmatprep.subr.mxu0 0.0
        %1140 = vmatpush2.msra.mxu0 0.0
        %1141 = vmatprep.subr.mxu0 0.0
        %1142 = vmatpush2.msra.mxu0 0.0
        %1143 = vmatprep.subr.mxu0 0.0
        %1144 = vmatpush2.msra.mxu0 0.0
        %1145 = vmatprep.subr.mxu0 0.0
        %1146 = vmatpush2.msra.mxu0 0.0
        %1147 = vmatprep.subr.mxu0 0.0
        %1148 = vmatpush2.msra.mxu0 0.0
        %1149 = vmatprep.subr.mxu0 0.0
        %1150 = vmatpush2.msra.mxu0 0.0
        %1151 = vmatprep.subr.mxu0 0.0
        %1152 = vmatpush2.msra.mxu0 0.0
        %1153 = vmatprep.subr.mxu0 0.0
        %1154 = vmatpush2.msra.mxu0 0.0
        %1155 = vmatprep.subr.mxu0 0.0
        %1156 = vmatpush2.msra.mxu0 0.0
        %1157 = vmatprep.subr.mxu0 0.0
        %1158 = vmatpush2.msra.mxu0 0.0
        %1159 = vmatprep.subr.mxu0 0.0
        %1160 = vmatpush2.msra.mxu0 0.0
        %1161 = vmatprep.subr.mxu0 0.0
        %1162 = vmatpush2.msra.mxu0 0.0
        %1163 = vmatprep.mubr.f32.mxu0 0.0
        %1164 = vmatmul.mubr.f32.gmra.mxu0 %v1097
        %v1165 = vpop.f32.mrf.mxu0
        %v1166 = vadd.f32 0.0, %v1165
        %v1167 = vpop.f32.mrf.mxu0
        %1168 = vdwg.mxu0
        %v1169 = vmul.f32 %v1166, %v624
        %1171 = vrot.lane.b32.xlu0 %v1169, 48
        %v1172 = vpop.permute.xlu0 %1171
        %v1174 = vadd.f32 %v1094, %v1172
        %1175 = vrot.lane.b32.xlu0 %v623, 64
        %v1176 = vpop.permute.xlu0 %1175
        %v1178 = vmul.f32 %v756, %v1176
        %1179 = vrot.lane.b32.xlu0 %v756, 64
        %v1180 = vpop.permute.xlu0 %1179
        %v1181 = vsel %vm761, %v1180, 0
        %1183 = vmatprep.subr.mxu0 0.0
        %1184 = vmatpush1.msra.mxu0 0.0
        %1185 = vmatprep.subr.mxu0 0.0
        %1186 = vmatpush1.msra.mxu0 0.0
        %1187 = vmatprep.subr.mxu0 0.0
        %1188 = vmatpush1.msra.mxu0 0.0
        %1189 = vmatprep.subr.mxu0 0.0
        %1190 = vmatpush1.msra.mxu0 0.0
        %1191 = vmatprep.subr.mxu0 0.0
        %1192 = vmatpush1.msra.mxu0 0.0
        %1193 = vmatprep.subr.mxu0 0.0
        %1194 = vmatpush1.msra.mxu0 0.0
        %1195 = vmatprep.subr.mxu0 0.0
        %1196 = vmatpush1.msra.mxu0 0.0
        %1197 = vmatprep.subr.mxu0 0.0
        %1198 = vmatpush1.msra.mxu0 0.0
        %1199 = vmatprep.subr.mxu0 0.0
        %1200 = vmatpush1.msra.mxu0 0.0
        %1201 = vmatprep.subr.mxu0 0.0
        %1202 = vmatpush1.msra.mxu0 0.0
        %1203 = vmatprep.subr.mxu0 0.0
        %1204 = vmatpush1.msra.mxu0 0.0
        %1205 = vmatprep.subr.mxu0 0.0
        %1206 = vmatpush1.msra.mxu0 0.0
        %1207 = vmatprep.subr.mxu0 0.0
        %1208 = vmatpush1.msra.mxu0 0.0
        %1209 = vmatprep.subr.mxu0 0.0
        %1210 = vmatpush1.msra.mxu0 0.0
        %1211 = vmatprep.subr.mxu0 0.0
        %1212 = vmatpush1.msra.mxu0 %v626
        %1213 = vmatprep.subr.mxu0 0.0
        %1214 = vmatpush1.msra.mxu0 %v625
        %1215 = vmatprep.subr.mxu0 0.0
        %1216 = vmatpush2.msra.mxu0 0.0
        %1217 = vmatprep.subr.mxu0 0.0
        %1218 = vmatpush2.msra.mxu0 0.0
        %1219 = vmatprep.subr.mxu0 0.0
        %1220 = vmatpush2.msra.mxu0 0.0
        %1221 = vmatprep.subr.mxu0 0.0
        %1222 = vmatpush2.msra.mxu0 0.0
        %1223 = vmatprep.subr.mxu0 0.0
        %1224 = vmatpush2.msra.mxu0 0.0
        %1225 = vmatprep.subr.mxu0 0.0
        %1226 = vmatpush2.msra.mxu0 0.0
        %1227 = vmatprep.subr.mxu0 0.0
        %1228 = vmatpush2.msra.mxu0 0.0
        %1229 = vmatprep.subr.mxu0 0.0
        %1230 = vmatpush2.msra.mxu0 0.0
        %1231 = vmatprep.subr.mxu0 0.0
        %1232 = vmatpush2.msra.mxu0 0.0
        %1233 = vmatprep.subr.mxu0 0.0
        %1234 = vmatpush2.msra.mxu0 0.0
        %1235 = vmatprep.subr.mxu0 0.0
        %1236 = vmatpush2.msra.mxu0 0.0
        %1237 = vmatprep.subr.mxu0 0.0
        %1238 = vmatpush2.msra.mxu0 0.0
        %1239 = vmatprep.subr.mxu0 0.0
        %1240 = vmatpush2.msra.mxu0 0.0
        %1241 = vmatprep.subr.mxu0 0.0
        %1242 = vmatpush2.msra.mxu0 0.0
        %1243 = vmatprep.subr.mxu0 0.0
        %1244 = vmatpush2.msra.mxu0 0.0
        %1245 = vmatprep.subr.mxu0 0.0
        %1246 = vmatpush2.msra.mxu0 0.0
        %1247 = vmatprep.mubr.f32.mxu0 0.0
        %1248 = vmatmul.mubr.f32.gmra.mxu0 %v1181
        %v1249 = vpop.f32.mrf.mxu0
        %v1250 = vadd.f32 0.0, %v1249
        %v1251 = vpop.f32.mrf.mxu0
        %1252 = vdwg.mxu0
        %v1253 = vmul.f32 %v1250, %v624
        %1255 = vrot.lane.b32.xlu0 %v1253, 64
        %v1256 = vpop.permute.xlu0 %1255
        %v1258 = vadd.f32 %v1178, %v1256
        %1260 = vrot.lane.b32.xlu0 %v1174, 80
        %v1261 = vpop.permute.xlu0 %1260
        %1263 = vrot.lane.b32.xlu0 %v1258, 64
        %v1264 = vpop.permute.xlu0 %1263
        %v1265 = vsel %vm761, %v1261, 0
        %v1267 = vsel %vm761, %v1264, 0
        %1269 = vmatprep.subr.mxu0 0.0
        %1270 = vmatpush1.xpose.msra.mxu0 0.0
        %1271 = vmatprep.subr.mxu0 0.0
        %1272 = vmatpush1.xpose.msra.mxu0 0.0
        %1273 = vmatprep.subr.mxu0 0.0
        %1274 = vmatpush1.xpose.msra.mxu0 0.0
        %1275 = vmatprep.subr.mxu0 0.0
        %1276 = vmatpush1.xpose.msra.mxu0 0.0
        %1277 = vmatprep.subr.mxu0 0.0
        %1278 = vmatpush1.xpose.msra.mxu0 0.0
        %1279 = vmatprep.subr.mxu0 0.0
        %1280 = vmatpush1.xpose.msra.mxu0 0.0
        %1281 = vmatprep.subr.mxu0 0.0
        %1282 = vmatpush1.xpose.msra.mxu0 0.0
        %1283 = vmatprep.subr.mxu0 0.0
        %1284 = vmatpush1.xpose.msra.mxu0 0.0
        %1285 = vmatprep.subr.mxu0 0.0
        %1286 = vmatpush1.xpose.msra.mxu0 0.0
        %1287 = vmatprep.subr.mxu0 0.0
        %1288 = vmatpush1.xpose.msra.mxu0 0.0
        %1289 = vmatprep.subr.mxu0 0.0
        %1290 = vmatpush1.xpose.msra.mxu0 0.0
        %1291 = vmatprep.subr.mxu0 0.0
        %1292 = vmatpush1.xpose.msra.mxu0 0.0
        %1293 = vmatprep.subr.mxu0 0.0
        %1294 = vmatpush1.xpose.msra.mxu0 0.0
        %1295 = vmatprep.subr.mxu0 0.0
        %1296 = vmatpush1.xpose.msra.mxu0 0.0
        %1297 = vmatprep.subr.mxu0 0.0
        %1298 = vmatpush1.xpose.msra.mxu0 0.0
        %1299 = vmatprep.subr.mxu0 0.0
        %1300 = vmatpush1.xpose.msra.mxu0 %v1267
        %1301 = vmatprep.subr.mxu0 0.0
        %1302 = vmatpush2.xpose.msra.mxu0 0.0
        %1303 = vmatprep.subr.mxu0 0.0
        %1304 = vmatpush2.xpose.msra.mxu0 0.0
        %1305 = vmatprep.subr.mxu0 0.0
        %1306 = vmatpush2.xpose.msra.mxu0 0.0
        %1307 = vmatprep.subr.mxu0 0.0
        %1308 = vmatpush2.xpose.msra.mxu0 0.0
        %1309 = vmatprep.subr.mxu0 0.0
        %1310 = vmatpush2.xpose.msra.mxu0 0.0
        %1311 = vmatprep.subr.mxu0 0.0
        %1312 = vmatpush2.xpose.msra.mxu0 0.0
        %1313 = vmatprep.subr.mxu0 0.0
        %1314 = vmatpush2.xpose.msra.mxu0 0.0
        %1315 = vmatprep.subr.mxu0 0.0
        %1316 = vmatpush2.xpose.msra.mxu0 0.0
        %1317 = vmatprep.subr.mxu0 0.0
        %1318 = vmatpush2.xpose.msra.mxu0 0.0
        %1319 = vmatprep.subr.mxu0 0.0
        %1320 = vmatpush2.xpose.msra.mxu0 0.0
        %1321 = vmatprep.subr.mxu0 0.0
        %1322 = vmatpush2.xpose.msra.mxu0 0.0
        %1323 = vmatprep.subr.mxu0 0.0
        %1324 = vmatpush2.xpose.msra.mxu0 0.0
        %1325 = vmatprep.subr.mxu0 0.0
        %1326 = vmatpush2.xpose.msra.mxu0 0.0
        %1327 = vmatprep.subr.mxu0 0.0
        %1328 = vmatpush2.xpose.msra.mxu0 0.0
        %1329 = vmatprep.subr.mxu0 0.0
        %1330 = vmatpush2.xpose.msra.mxu0 0.0
        %1331 = vmatprep.subr.mxu0 0.0
        %1332 = vmatpush2.xpose.msra.mxu0 0.0
        %1333 = vmatprep.mubr.f32.mxu0 0.0
        %1334 = vmatmul.mubr.f32.gmra.mxu0 %v1265
        %v1335 = vpop.f32.mrf.mxu0
        %v1336 = vadd.f32 0.0, %v1335
        %v1337 = vpop.f32.mrf.mxu0
        %1338 = vdwg.mxu0
        %v1339 = vmul.f32 %v1336, 0.25
        %v1340 = vadd.f32 %v1339, %v622
        %v1341 = vsel %vm1002, %v1340, -inf
        %1342 = vmax.xlane.f32.xlu0 %v1341
        %v1343 = vpop.xlane.xlu0 %1342
        %v1344 = vsub.f32 %v1340, %v1343
        %v1345 = vmul.f32 %v1344, 1.442695
        %v1346 = vpow.pop %v1345
        %v1347 = vsel %vm1002, %v1346, 0.0
        %1348 = vadd.xlane.f32.xlu0 %v1347
        %v1349 = vpop.xlane.xlu0 %1348
        %v1350 = vrcp.pop %v1349
        %v1351 = vmul.f32 %v1346, %v1350
        %1352 = vrot.lane.b32.xlu0 %v756, 48
        %v1353 = vpop.permute.xlu0 %1352
        %v1356 = vsel %vm1002, %v1351, 0
        %1358 = vmatprep.subr.mxu0 0.0
        %1359 = vmatpush1.msra.mxu0 0.0
        %1360 = vmatprep.subr.mxu0 0.0
        %1361 = vmatpush1.msra.mxu0 0.0
        %1362 = vmatprep.subr.mxu0 0.0
        %1363 = vmatpush1.msra.mxu0 0.0
        %1364 = vmatprep.subr.mxu0 0.0
        %1365 = vmatpush1.msra.mxu0 0.0
        %1366 = vmatprep.subr.mxu0 0.0
        %1367 = vmatpush1.msra.mxu0 0.0
        %1368 = vmatprep.subr.mxu0 0.0
        %1369 = vmatpush1.msra.mxu0 0.0
        %1370 = vmatprep.subr.mxu0 0.0
        %1371 = vmatpush1.msra.mxu0 0.0
        %1372 = vmatprep.subr.mxu0 0.0
        %1373 = vmatpush1.msra.mxu0 0.0
        %1374 = vmatprep.subr.mxu0 0.0
        %1375 = vmatpush1.msra.mxu0 0.0
        %1376 = vmatprep.subr.mxu0 0.0
        %1377 = vmatpush1.msra.mxu0 0.0
        %1378 = vmatprep.subr.mxu0 0.0
        %1379 = vmatpush1.msra.mxu0 0.0
        %1380 = vmatprep.subr.mxu0 0.0
        %1381 = vmatpush1.msra.mxu0 0.0
        %1382 = vmatprep.subr.mxu0 0.0
        %1383 = vmatpush1.msra.mxu0 0.0
        %1384 = vmatprep.subr.mxu0 0.0
        %1385 = vmatpush1.msra.mxu0 0.0
        %1386 = vmatprep.subr.mxu0 0.0
        %1387 = vmatpush1.msra.mxu0 0.0
        %1388 = vmatprep.subr.mxu0 0.0
        %1389 = vmatpush1.msra.mxu0 %v1353
        %1390 = vmatprep.subr.mxu0 0.0
        %1391 = vmatpush2.msra.mxu0 0.0
        %1392 = vmatprep.subr.mxu0 0.0
        %1393 = vmatpush2.msra.mxu0 0.0
        %1394 = vmatprep.subr.mxu0 0.0
        %1395 = vmatpush2.msra.mxu0 0.0
        %1396 = vmatprep.subr.mxu0 0.0
        %1397 = vmatpush2.msra.mxu0 0.0
        %1398 = vmatprep.subr.mxu0 0.0
        %1399 = vmatpush2.msra.mxu0 0.0
        %1400 = vmatprep.subr.mxu0 0.0
        %1401 = vmatpush2.msra.mxu0 0.0
        %1402 = vmatprep.subr.mxu0 0.0
        %1403 = vmatpush2.msra.mxu0 0.0
        %1404 = vmatprep.subr.mxu0 0.0
        %1405 = vmatpush2.msra.mxu0 0.0
        %1406 = vmatprep.subr.mxu0 0.0
        %1407 = vmatpush2.msra.mxu0 0.0
        %1408 = vmatprep.subr.mxu0 0.0
        %1409 = vmatpush2.msra.mxu0 0.0
        %1410 = vmatprep.subr.mxu0 0.0
        %1411 = vmatpush2.msra.mxu0 0.0
        %1412 = vmatprep.subr.mxu0 0.0
        %1413 = vmatpush2.msra.mxu0 0.0
        %1414 = vmatprep.subr.mxu0 0.0
        %1415 = vmatpush2.msra.mxu0 0.0
        %1416 = vmatprep.subr.mxu0 0.0
        %1417 = vmatpush2.msra.mxu0 0.0
        %1418 = vmatprep.subr.mxu0 0.0
        %1419 = vmatpush2.msra.mxu0 0.0
        %1420 = vmatprep.subr.mxu0 0.0
        %1421 = vmatpush2.msra.mxu0 0.0
        %1422 = vmatprep.mubr.f32.mxu0 0.0
        %1423 = vmatmul.mubr.f32.gmra.mxu0 %v1356
        %v1424 = vpop.f32.mrf.mxu0
        %v1425 = vadd.f32 0.0, %v1424
        %v1426 = vpop.f32.mrf.mxu0
        %1427 = vdwg.mxu0
        %1429 = vrot.lane.b32.xlu0 %v1425, 16
        %v1430 = vpop.permute.xlu0 %1429
        %vm1432 = vcmask 261248
        %1433 = vst.msk [vmem:[#allocation2] sm:$0xff] %vm1432, %v1430
        %1434 = vrot.lane.b32.xlu0 %v623, 96
        %v1435 = vpop.permute.xlu0 %1434
        %v1437 = vmul.f32 %v756, %v1435
        %1438 = vrot.lane.b32.xlu0 %v756, 32
        %v1439 = vpop.permute.xlu0 %1438
        %v1440 = vsel %vm761, %v1439, 0
        %1442 = vmatprep.subr.mxu0 0.0
        %1443 = vmatpush1.msra.mxu0 0.0
        %1444 = vmatprep.subr.mxu0 0.0
        %1445 = vmatpush1.msra.mxu0 0.0
        %1446 = vmatprep.subr.mxu0 0.0
        %1447 = vmatpush1.msra.mxu0 0.0
        %1448 = vmatprep.subr.mxu0 0.0
        %1449 = vmatpush1.msra.mxu0 0.0
        %1450 = vmatprep.subr.mxu0 0.0
        %1451 = vmatpush1.msra.mxu0 0.0
        %1452 = vmatprep.subr.mxu0 0.0
        %1453 = vmatpush1.msra.mxu0 0.0
        %1454 = vmatprep.subr.mxu0 0.0
        %1455 = vmatpush1.msra.mxu0 0.0
        %1456 = vmatprep.subr.mxu0 0.0
        %1457 = vmatpush1.msra.mxu0 0.0
        %1458 = vmatprep.subr.mxu0 0.0
        %1459 = vmatpush1.msra.mxu0 0.0
        %1460 = vmatprep.subr.mxu0 0.0
        %1461 = vmatpush1.msra.mxu0 0.0
        %1462 = vmatprep.subr.mxu0 0.0
        %1463 = vmatpush1.msra.mxu0 0.0
        %1464 = vmatprep.subr.mxu0 0.0
        %1465 = vmatpush1.msra.mxu0 0.0
        %1466 = vmatprep.subr.mxu0 0.0
        %1467 = vmatpush1.msra.mxu0 0.0
        %1468 = vmatprep.subr.mxu0 0.0
        %1469 = vmatpush1.msra.mxu0 0.0
        %1470 = vmatprep.subr.mxu0 0.0
        %1471 = vmatpush1.msra.mxu0 %v626
        %1472 = vmatprep.subr.mxu0 0.0
        %1473 = vmatpush1.msra.mxu0 %v625
        %1474 = vmatprep.subr.mxu0 0.0
        %1475 = vmatpush2.msra.mxu0 0.0
        %1476 = vmatprep.subr.mxu0 0.0
        %1477 = vmatpush2.msra.mxu0 0.0
        %1478 = vmatprep.subr.mxu0 0.0
        %1479 = vmatpush2.msra.mxu0 0.0
        %1480 = vmatprep.subr.mxu0 0.0
        %1481 = vmatpush2.msra.mxu0 0.0
        %1482 = vmatprep.subr.mxu0 0.0
        %1483 = vmatpush2.msra.mxu0 0.0
        %1484 = vmatprep.subr.mxu0 0.0
        %1485 = vmatpush2.msra.mxu0 0.0
        %1486 = vmatprep.subr.mxu0 0.0
        %1487 = vmatpush2.msra.mxu0 0.0
        %1488 = vmatprep.subr.mxu0 0.0
        %1489 = vmatpush2.msra.mxu0 0.0
        %1490 = vmatprep.subr.mxu0 0.0
        %1491 = vmatpush2.msra.mxu0 0.0
        %1492 = vmatprep.subr.mxu0 0.0
        %1493 = vmatpush2.msra.mxu0 0.0
        %1494 = vmatprep.subr.mxu0 0.0
        %1495 = vmatpush2.msra.mxu0 0.0
        %1496 = vmatprep.subr.mxu0 0.0
        %1497 = vmatpush2.msra.mxu0 0.0
        %1498 = vmatprep.subr.mxu0 0.0
        %1499 = vmatpush2.msra.mxu0 0.0
        %1500 = vmatprep.subr.mxu0 0.0
        %1501 = vmatpush2.msra.mxu0 0.0
        %1502 = vmatprep.subr.mxu0 0.0
        %1503 = vmatpush2.msra.mxu0 0.0
        %1504 = vmatprep.subr.mxu0 0.0
        %1505 = vmatpush2.msra.mxu0 0.0
        %1506 = vmatprep.mubr.f32.mxu0 0.0
        %1507 = vmatmul.mubr.f32.gmra.mxu0 %v1440
        %v1508 = vpop.f32.mrf.mxu0
        %v1509 = vadd.f32 0.0, %v1508
        %v1510 = vpop.f32.mrf.mxu0
        %1511 = vdwg.mxu0
        %v1512 = vmul.f32 %v1509, %v624
        %1514 = vrot.lane.b32.xlu0 %v1512, 96
        %v1515 = vpop.permute.xlu0 %1514
        %v1517 = vadd.f32 %v1437, %v1515
        %1518 = vrot.lane.b32.xlu0 %v623, 112
        %v1519 = vpop.permute.xlu0 %1518
        %v1521 = vmul.f32 %v756, %v1519
        %1522 = vrot.lane.b32.xlu0 %v756, 16
        %v1523 = vpop.permute.xlu0 %1522
        %v1524 = vsel %vm761, %v1523, 0
        %1526 = vmatprep.subr.mxu0 0.0
        %1527 = vmatpush1.msra.mxu0 0.0
        %1528 = vmatprep.subr.mxu0 0.0
        %1529 = vmatpush1.msra.mxu0 0.0
        %1530 = vmatprep.subr.mxu0 0.0
        %1531 = vmatpush1.msra.mxu0 0.0
        %1532 = vmatprep.subr.mxu0 0.0
        %1533 = vmatpush1.msra.mxu0 0.0
        %1534 = vmatprep.subr.mxu0 0.0
        %1535 = vmatpush1.msra.mxu0 0.0
        %1536 = vmatprep.subr.mxu0 0.0
        %1537 = vmatpush1.msra.mxu0 0.0
        %1538 = vmatprep.subr.mxu0 0.0
        %1539 = vmatpush1.msra.mxu0 0.0
        %1540 = vmatprep.subr.mxu0 0.0
        %1541 = vmatpush1.msra.mxu0 0.0
        %1542 = vmatprep.subr.mxu0 0.0
        %1543 = vmatpush1.msra.mxu0 0.0
        %1544 = vmatprep.subr.mxu0 0.0
        %1545 = vmatpush1.msra.mxu0 0.0
        %1546 = vmatprep.subr.mxu0 0.0
        %1547 = vmatpush1.msra.mxu0 0.0
        %1548 = vmatprep.subr.mxu0 0.0
        %1549 = vmatpush1.msra.mxu0 0.0
        %1550 = vmatprep.subr.mxu0 0.0
        %1551 = vmatpush1.msra.mxu0 0.0
        %1552 = vmatprep.subr.mxu0 0.0
        %1553 = vmatpush1.msra.mxu0 0.0
        %1554 = vmatprep.subr.mxu0 0.0
        %1555 = vmatpush1.msra.mxu0 %v626
        %1556 = vmatprep.subr.mxu0 0.0
        %1557 = vmatpush1.msra.mxu0 %v625
        %1558 = vmatprep.subr.mxu0 0.0
        %1559 = vmatpush2.msra.mxu0 0.0
        %1560 = vmatprep.subr.mxu0 0.0
        %1561 = vmatpush2.msra.mxu0 0.0
        %1562 = vmatprep.subr.mxu0 0.0
        %1563 = vmatpush2.msra.mxu0 0.0
        %1564 = vmatprep.subr.mxu0 0.0
        %1565 = vmatpush2.msra.mxu0 0.0
        %1566 = vmatprep.subr.mxu0 0.0
        %1567 = vmatpush2.msra.mxu0 0.0
        %1568 = vmatprep.subr.mxu0 0.0
        %1569 = vmatpush2.msra.mxu0 0.0
        %1570 = vmatprep.subr.mxu0 0.0
        %1571 = vmatpush2.msra.mxu0 0.0
        %1572 = vmatprep.subr.mxu0 0.0
        %1573 = vmatpush2.msra.mxu0 0.0
        %1574 = vmatprep.subr.mxu0 0.0
        %1575 = vmatpush2.msra.mxu0 0.0
        %1576 = vmatprep.subr.mxu0 0.0
        %1577 = vmatpush2.msra.mxu0 0.0
        %1578 = vmatprep.subr.mxu0 0.0
        %1579 = vmatpush2.msra.mxu0 0.0
        %1580 = vmatprep.subr.mxu0 0.0
        %1581 = vmatpush2.msra.mxu0 0.0
        %1582 = vmatprep.subr.mxu0 0.0
        %1583 = vmatpush2.msra.mxu0 0.0
        %1584 = vmatprep.subr.mxu0 0.0
        %1585 = vmatpush2.msra.mxu0 0.0
        %1586 = vmatprep.subr.mxu0 0.0
        %1587 = vmatpush2.msra.mxu0 0.0
        %1588 = vmatprep.subr.mxu0 0.0
        %1589 = vmatpush2.msra.mxu0 0.0
        %1590 = vmatprep.mubr.f32.mxu0 0.0
        %1591 = vmatmul.mubr.f32.gmra.mxu0 %v1524
        %v1592 = vpop.f32.mrf.mxu0
        %v1593 = vadd.f32 0.0, %v1592
        %v1594 = vpop.f32.mrf.mxu0
        %1595 = vdwg.mxu0
        %v1596 = vmul.f32 %v1593, %v624
        %1598 = vrot.lane.b32.xlu0 %v1596, 112
        %v1599 = vpop.permute.xlu0 %1598
        %v1601 = vadd.f32 %v1521, %v1599
        %1603 = vrot.lane.b32.xlu0 %v1517, 32
        %v1604 = vpop.permute.xlu0 %1603
        %1606 = vrot.lane.b32.xlu0 %v1601, 16
        %v1607 = vpop.permute.xlu0 %1606
        %v1608 = vsel %vm761, %v1604, 0
        %v1610 = vsel %vm761, %v1607, 0
        %1612 = vmatprep.subr.mxu0 0.0
        %1613 = vmatpush1.xpose.msra.mxu0 0.0
        %1614 = vmatprep.subr.mxu0 0.0
        %1615 = vmatpush1.xpose.msra.mxu0 0.0
        %1616 = vmatprep.subr.mxu0 0.0
        %1617 = vmatpush1.xpose.msra.mxu0 0.0
        %1618 = vmatprep.subr.mxu0 0.0
        %1619 = vmatpush1.xpose.msra.mxu0 0.0
        %1620 = vmatprep.subr.mxu0 0.0
        %1621 = vmatpush1.xpose.msra.mxu0 0.0
        %1622 = vmatprep.subr.mxu0 0.0
        %1623 = vmatpush1.xpose.msra.mxu0 0.0
        %1624 = vmatprep.subr.mxu0 0.0
        %1625 = vmatpush1.xpose.msra.mxu0 0.0
        %1626 = vmatprep.subr.mxu0 0.0
        %1627 = vmatpush1.xpose.msra.mxu0 0.0
        %1628 = vmatprep.subr.mxu0 0.0
        %1629 = vmatpush1.xpose.msra.mxu0 0.0
        %1630 = vmatprep.subr.mxu0 0.0
        %1631 = vmatpush1.xpose.msra.mxu0 0.0
        %1632 = vmatprep.subr.mxu0 0.0
        %1633 = vmatpush1.xpose.msra.mxu0 0.0
        %1634 = vmatprep.subr.mxu0 0.0
        %1635 = vmatpush1.xpose.msra.mxu0 0.0
        %1636 = vmatprep.subr.mxu0 0.0
        %1637 = vmatpush1.xpose.msra.mxu0 0.0
        %1638 = vmatprep.subr.mxu0 0.0
        %1639 = vmatpush1.xpose.msra.mxu0 0.0
        %1640 = vmatprep.subr.mxu0 0.0
        %1641 = vmatpush1.xpose.msra.mxu0 0.0
        %1642 = vmatprep.subr.mxu0 0.0
        %1643 = vmatpush1.xpose.msra.mxu0 %v1610
        %1644 = vmatprep.subr.mxu0 0.0
        %1645 = vmatpush2.xpose.msra.mxu0 0.0
        %1646 = vmatprep.subr.mxu0 0.0
        %1647 = vmatpush2.xpose.msra.mxu0 0.0
        %1648 = vmatprep.subr.mxu0 0.0
        %1649 = vmatpush2.xpose.msra.mxu0 0.0
        %1650 = vmatprep.subr.mxu0 0.0
        %1651 = vmatpush2.xpose.msra.mxu0 0.0
        %1652 = vmatprep.subr.mxu0 0.0
        %1653 = vmatpush2.xpose.msra.mxu0 0.0
        %1654 = vmatprep.subr.mxu0 0.0
        %1655 = vmatpush2.xpose.msra.mxu0 0.0
        %1656 = vmatprep.subr.mxu0 0.0
        %1657 = vmatpush2.xpose.msra.mxu0 0.0
        %1658 = vmatprep.subr.mxu0 0.0
        %1659 = vmatpush2.xpose.msra.mxu0 0.0
        %1660 = vmatprep.subr.mxu0 0.0
        %1661 = vmatpush2.xpose.msra.mxu0 0.0
        %1662 = vmatprep.subr.mxu0 0.0
        %1663 = vmatpush2.xpose.msra.mxu0 0.0
        %1664 = vmatprep.subr.mxu0 0.0
        %1665 = vmatpush2.xpose.msra.mxu0 0.0
        %1666 = vmatprep.subr.mxu0 0.0
        %1667 = vmatpush2.xpose.msra.mxu0 0.0
        %1668 = vmatprep.subr.mxu0 0.0
        %1669 = vmatpush2.xpose.msra.mxu0 0.0
        %1670 = vmatprep.subr.mxu0 0.0
        %1671 = vmatpush2.xpose.msra.mxu0 0.0
        %1672 = vmatprep.subr.mxu0 0.0
        %1673 = vmatpush2.xpose.msra.mxu0 0.0
        %1674 = vmatprep.subr.mxu0 0.0
        %1675 = vmatpush2.xpose.msra.mxu0 0.0
        %1676 = vmatprep.mubr.f32.mxu0 0.0
        %1677 = vmatmul.mubr.f32.gmra.mxu0 %v1608
        %v1678 = vpop.f32.mrf.mxu0
        %v1679 = vadd.f32 0.0, %v1678
        %v1680 = vpop.f32.mrf.mxu0
        %1681 = vdwg.mxu0
        %v1682 = vmul.f32 %v1679, 0.25
        %v1683 = vadd.f32 %v1682, %v622
        %v1684 = vsel %vm1002, %v1683, -inf
        %1685 = vmax.xlane.f32.xlu0 %v1684
        %v1686 = vpop.xlane.xlu0 %1685
        %v1687 = vsub.f32 %v1683, %v1686
        %v1688 = vmul.f32 %v1687, 1.442695
        %v1689 = vpow.pop %v1688
        %v1690 = vsel %vm1002, %v1689, 0.0
        %1691 = vadd.xlane.f32.xlu0 %v1690
        %v1692 = vpop.xlane.xlu0 %1691
        %v1693 = vrcp.pop %v1692
        %v1694 = vmul.f32 %v1689, %v1693
        %v1696 = vsel %vm1002, %v1694, 0
        %1698 = vmatprep.subr.mxu0 0.0
        %1699 = vmatpush1.msra.mxu0 0.0
        %1700 = vmatprep.subr.mxu0 0.0
        %1701 = vmatpush1.msra.mxu0 0.0
        %1702 = vmatprep.subr.mxu0 0.0
        %1703 = vmatpush1.msra.mxu0 0.0
        %1704 = vmatprep.subr.mxu0 0.0
        %1705 = vmatpush1.msra.mxu0 0.0
        %1706 = vmatprep.subr.mxu0 0.0
        %1707 = vmatpush1.msra.mxu0 0.0
        %1708 = vmatprep.subr.mxu0 0.0
        %1709 = vmatpush1.msra.mxu0 0.0
        %1710 = vmatprep.subr.mxu0 0.0
        %1711 = vmatpush1.msra.mxu0 0.0
        %1712 = vmatprep.subr.mxu0 0.0
        %1713 = vmatpush1.msra.mxu0 0.0
        %1714 = vmatprep.subr.mxu0 0.0
        %1715 = vmatpush1.msra.mxu0 0.0
        %1716 = vmatprep.subr.mxu0 0.0
        %1717 = vmatpush1.msra.mxu0 0.0
        %1718 = vmatprep.subr.mxu0 0.0
        %1719 = vmatpush1.msra.mxu0 0.0
        %1720 = vmatprep.subr.mxu0 0.0
        %1721 = vmatpush1.msra.mxu0 0.0
        %1722 = vmatprep.subr.mxu0 0.0
        %1723 = vmatpush1.msra.mxu0 0.0
        %1724 = vmatprep.subr.mxu0 0.0
        %1725 = vmatpush1.msra.mxu0 0.0
        %1726 = vmatprep.subr.mxu0 0.0
        %1727 = vmatpush1.msra.mxu0 0.0
        %1728 = vmatprep.subr.mxu0 0.0
        %1729 = vmatpush1.msra.mxu0 %v758
        %1730 = vmatprep.subr.mxu0 0.0
        %1731 = vmatpush2.msra.mxu0 0.0
        %1732 = vmatprep.subr.mxu0 0.0
        %1733 = vmatpush2.msra.mxu0 0.0
        %1734 = vmatprep.subr.mxu0 0.0
        %1735 = vmatpush2.msra.mxu0 0.0
        %1736 = vmatprep.subr.mxu0 0.0
        %1737 = vmatpush2.msra.mxu0 0.0
        %1738 = vmatprep.subr.mxu0 0.0
        %1739 = vmatpush2.msra.mxu0 0.0
        %1740 = vmatprep.subr.mxu0 0.0
        %1741 = vmatpush2.msra.mxu0 0.0
        %1742 = vmatprep.subr.mxu0 0.0
        %1743 = vmatpush2.msra.mxu0 0.0
        %1744 = vmatprep.subr.mxu0 0.0
        %1745 = vmatpush2.msra.mxu0 0.0
        %1746 = vmatprep.subr.mxu0 0.0
        %1747 = vmatpush2.msra.mxu0 0.0
        %1748 = vmatprep.subr.mxu0 0.0
        %1749 = vmatpush2.msra.mxu0 0.0
        %1750 = vmatprep.subr.mxu0 0.0
        %1751 = vmatpush2.msra.mxu0 0.0
        %1752 = vmatprep.subr.mxu0 0.0
        %1753 = vmatpush2.msra.mxu0 0.0
        %1754 = vmatprep.subr.mxu0 0.0
        %1755 = vmatpush2.msra.mxu0 0.0
        %1756 = vmatprep.subr.mxu0 0.0
        %1757 = vmatpush2.msra.mxu0 0.0
        %1758 = vmatprep.subr.mxu0 0.0
        %1759 = vmatpush2.msra.mxu0 0.0
        %1760 = vmatprep.subr.mxu0 0.0
        %1761 = vmatpush2.msra.mxu0 0.0
        %1762 = vmatprep.mubr.f32.mxu0 0.0
        %1763 = vmatmul.mubr.f32.gmra.mxu0 %v1696
        %v1764 = vpop.f32.mrf.mxu0
        %v1765 = vadd.f32 0.0, %v1764
        %v1766 = vpop.f32.mrf.mxu0
        %1767 = vdwg.mxu0
        %1769 = vrot.lane.b32.xlu0 %v1765, 32
        %v1770 = vpop.permute.xlu0 %1769
        %vm1772 = vcmask 392448
        %1773 = vst.msk [vmem:[#allocation2] sm:$0xff] %vm1772, %v1770
        %v1774 = vmul.f32 %v758, %v839
        %1776 = vrot.lane.b32.xlu0 %v758, 112
        %v1777 = vpop.permute.xlu0 %1776
        %v1778 = vsel %vm761, %v1777, 0
        %1780 = vmatprep.subr.mxu0 0.0
        %1781 = vmatpush1.msra.mxu0 0.0
        %1782 = vmatprep.subr.mxu0 0.0
        %1783 = vmatpush1.msra.mxu0 0.0
        %1784 = vmatprep.subr.mxu0 0.0
        %1785 = vmatpush1.msra.mxu0 0.0
        %1786 = vmatprep.subr.mxu0 0.0
        %1787 = vmatpush1.msra.mxu0 0.0
        %1788 = vmatprep.subr.mxu0 0.0
        %1789 = vmatpush1.msra.mxu0 0.0
        %1790 = vmatprep.subr.mxu0 0.0
        %1791 = vmatpush1.msra.mxu0 0.0
        %1792 = vmatprep.subr.mxu0 0.0
        %1793 = vmatpush1.msra.mxu0 0.0
        %1794 = vmatprep.subr.mxu0 0.0
        %1795 = vmatpush1.msra.mxu0 0.0
        %1796 = vmatprep.subr.mxu0 0.0
        %1797 = vmatpush1.msra.mxu0 0.0
        %1798 = vmatprep.subr.mxu0 0.0
        %1799 = vmatpush1.msra.mxu0 0.0
        %1800 = vmatprep.subr.mxu0 0.0
        %1801 = vmatpush1.msra.mxu0 0.0
        %1802 = vmatprep.subr.mxu0 0.0
        %1803 = vmatpush1.msra.mxu0 0.0
        %1804 = vmatprep.subr.mxu0 0.0
        %1805 = vmatpush1.msra.mxu0 0.0
        %1806 = vmatprep.subr.mxu0 0.0
        %1807 = vmatpush1.msra.mxu0 0.0
        %1808 = vmatprep.subr.mxu0 0.0
        %1809 = vmatpush1.msra.mxu0 %v626
        %1810 = vmatprep.subr.mxu0 0.0
        %1811 = vmatpush1.msra.mxu0 %v625
        %1812 = vmatprep.subr.mxu0 0.0
        %1813 = vmatpush2.msra.mxu0 0.0
        %1814 = vmatprep.subr.mxu0 0.0
        %1815 = vmatpush2.msra.mxu0 0.0
        %1816 = vmatprep.subr.mxu0 0.0
        %1817 = vmatpush2.msra.mxu0 0.0
        %1818 = vmatprep.subr.mxu0 0.0
        %1819 = vmatpush2.msra.mxu0 0.0
        %1820 = vmatprep.subr.mxu0 0.0
        %1821 = vmatpush2.msra.mxu0 0.0
        %1822 = vmatprep.subr.mxu0 0.0
        %1823 = vmatpush2.msra.mxu0 0.0
        %1824 = vmatprep.subr.mxu0 0.0
        %1825 = vmatpush2.msra.mxu0 0.0
        %1826 = vmatprep.subr.mxu0 0.0
        %1827 = vmatpush2.msra.mxu0 0.0
        %1828 = vmatprep.subr.mxu0 0.0
        %1829 = vmatpush2.msra.mxu0 0.0
        %1830 = vmatprep.subr.mxu0 0.0
        %1831 = vmatpush2.msra.mxu0 0.0
        %1832 = vmatprep.subr.mxu0 0.0
        %1833 = vmatpush2.msra.mxu0 0.0
        %1834 = vmatprep.subr.mxu0 0.0
        %1835 = vmatpush2.msra.mxu0 0.0
        %1836 = vmatprep.subr.mxu0 0.0
        %1837 = vmatpush2.msra.mxu0 0.0
        %1838 = vmatprep.subr.mxu0 0.0
        %1839 = vmatpush2.msra.mxu0 0.0
        %1840 = vmatprep.subr.mxu0 0.0
        %1841 = vmatpush2.msra.mxu0 0.0
        %1842 = vmatprep.subr.mxu0 0.0
        %1843 = vmatpush2.msra.mxu0 0.0
        %1844 = vmatprep.mubr.f32.mxu0 0.0
        %1845 = vmatmul.mubr.f32.gmra.mxu0 %v1778
        %v1846 = vpop.f32.mrf.mxu0
        %v1847 = vadd.f32 0.0, %v1846
        %v1848 = vpop.f32.mrf.mxu0
        %1849 = vdwg.mxu0
        %v1850 = vmul.f32 %v1847, %v624
        %1852 = vrot.lane.b32.xlu0 %v1850, 16
        %v1853 = vpop.permute.xlu0 %1852
        %v1855 = vadd.f32 %v1774, %v1853
        %1856 = vrot.lane.b32.xlu0 %v623, 32
        %v1857 = vpop.permute.xlu0 %1856
        %v1859 = vmul.f32 %v758, %v1857
        %1860 = vrot.lane.b32.xlu0 %v758, 96
        %v1861 = vpop.permute.xlu0 %1860
        %v1862 = vsel %vm761, %v1861, 0
        %1864 = vmatprep.subr.mxu0 0.0
        %1865 = vmatpush1.msra.mxu0 0.0
        %1866 = vmatprep.subr.mxu0 0.0
        %1867 = vmatpush1.msra.mxu0 0.0
        %1868 = vmatprep.subr.mxu0 0.0
        %1869 = vmatpush1.msra.mxu0 0.0
        %1870 = vmatprep.subr.mxu0 0.0
        %1871 = vmatpush1.msra.mxu0 0.0
        %1872 = vmatprep.subr.mxu0 0.0
        %1873 = vmatpush1.msra.mxu0 0.0
        %1874 = vmatprep.subr.mxu0 0.0
        %1875 = vmatpush1.msra.mxu0 0.0
        %1876 = vmatprep.subr.mxu0 0.0
        %1877 = vmatpush1.msra.mxu0 0.0
        %1878 = vmatprep.subr.mxu0 0.0
        %1879 = vmatpush1.msra.mxu0 0.0
        %1880 = vmatprep.subr.mxu0 0.0
        %1881 = vmatpush1.msra.mxu0 0.0
        %1882 = vmatprep.subr.mxu0 0.0
        %1883 = vmatpush1.msra.mxu0 0.0
        %1884 = vmatprep.subr.mxu0 0.0
        %1885 = vmatpush1.msra.mxu0 0.0
        %1886 = vmatprep.subr.mxu0 0.0
        %1887 = vmatpush1.msra.mxu0 0.0
        %1888 = vmatprep.subr.mxu0 0.0
        %1889 = vmatpush1.msra.mxu0 0.0
        %1890 = vmatprep.subr.mxu0 0.0
        %1891 = vmatpush1.msra.mxu0 0.0
        %1892 = vmatprep.subr.mxu0 0.0
        %1893 = vmatpush1.msra.mxu0 %v626
        %1894 = vmatprep.subr.mxu0 0.0
        %1895 = vmatpush1.msra.mxu0 %v625
        %1896 = vmatprep.subr.mxu0 0.0
        %1897 = vmatpush2.msra.mxu0 0.0
        %1898 = vmatprep.subr.mxu0 0.0
        %1899 = vmatpush2.msra.mxu0 0.0
        %1900 = vmatprep.subr.mxu0 0.0
        %1901 = vmatpush2.msra.mxu0 0.0
        %1902 = vmatprep.subr.mxu0 0.0
        %1903 = vmatpush2.msra.mxu0 0.0
        %1904 = vmatprep.subr.mxu0 0.0
        %1905 = vmatpush2.msra.mxu0 0.0
        %1906 = vmatprep.subr.mxu0 0.0
        %1907 = vmatpush2.msra.mxu0 0.0
        %1908 = vmatprep.subr.mxu0 0.0
        %1909 = vmatpush2.msra.mxu0 0.0
        %1910 = vmatprep.subr.mxu0 0.0
        %1911 = vmatpush2.msra.mxu0 0.0
        %1912 = vmatprep.subr.mxu0 0.0
        %1913 = vmatpush2.msra.mxu0 0.0
        %1914 = vmatprep.subr.mxu0 0.0
        %1915 = vmatpush2.msra.mxu0 0.0
        %1916 = vmatprep.subr.mxu0 0.0
        %1917 = vmatpush2.msra.mxu0 0.0
        %1918 = vmatprep.subr.mxu0 0.0
        %1919 = vmatpush2.msra.mxu0 0.0
        %1920 = vmatprep.subr.mxu0 0.0
        %1921 = vmatpush2.msra.mxu0 0.0
        %1922 = vmatprep.subr.mxu0 0.0
        %1923 = vmatpush2.msra.mxu0 0.0
        %1924 = vmatprep.subr.mxu0 0.0
        %1925 = vmatpush2.msra.mxu0 0.0
        %1926 = vmatprep.subr.mxu0 0.0
        %1927 = vmatpush2.msra.mxu0 0.0
        %1928 = vmatprep.mubr.f32.mxu0 0.0
        %1929 = vmatmul.mubr.f32.gmra.mxu0 %v1862
        %v1930 = vpop.f32.mrf.mxu0
        %v1931 = vadd.f32 0.0, %v1930
        %v1932 = vpop.f32.mrf.mxu0
        %1933 = vdwg.mxu0
        %v1934 = vmul.f32 %v1931, %v624
        %1936 = vrot.lane.b32.xlu0 %v1934, 32
        %v1937 = vpop.permute.xlu0 %1936
        %v1939 = vadd.f32 %v1859, %v1937
        %1941 = vrot.lane.b32.xlu0 %v1855, 112
        %v1942 = vpop.permute.xlu0 %1941
        %1944 = vrot.lane.b32.xlu0 %v1939, 96
        %v1945 = vpop.permute.xlu0 %1944
        %v1946 = vsel %vm761, %v1942, 0
        %v1948 = vsel %vm761, %v1945, 0
        %1950 = vmatprep.subr.mxu0 0.0
        %1951 = vmatpush1.xpose.msra.mxu0 0.0
        %1952 = vmatprep.subr.mxu0 0.0
        %1953 = vmatpush1.xpose.msra.mxu0 0.0
        %1954 = vmatprep.subr.mxu0 0.0
        %1955 = vmatpush1.xpose.msra.mxu0 0.0
        %1956 = vmatprep.subr.mxu0 0.0
        %1957 = vmatpush1.xpose.msra.mxu0 0.0
        %1958 = vmatprep.subr.mxu0 0.0
        %1959 = vmatpush1.xpose.msra.mxu0 0.0
        %1960 = vmatprep.subr.mxu0 0.0
        %1961 = vmatpush1.xpose.msra.mxu0 0.0
        %1962 = vmatprep.subr.mxu0 0.0
        %1963 = vmatpush1.xpose.msra.mxu0 0.0
        %1964 = vmatprep.subr.mxu0 0.0
        %1965 = vmatpush1.xpose.msra.mxu0 0.0
        %1966 = vmatprep.subr.mxu0 0.0
        %1967 = vmatpush1.xpose.msra.mxu0 0.0
        %1968 = vmatprep.subr.mxu0 0.0
        %1969 = vmatpush1.xpose.msra.mxu0 0.0
        %1970 = vmatprep.subr.mxu0 0.0
        %1971 = vmatpush1.xpose.msra.mxu0 0.0
        %1972 = vmatprep.subr.mxu0 0.0
        %1973 = vmatpush1.xpose.msra.mxu0 0.0
        %1974 = vmatprep.subr.mxu0 0.0
        %1975 = vmatpush1.xpose.msra.mxu0 0.0
        %1976 = vmatprep.subr.mxu0 0.0
        %1977 = vmatpush1.xpose.msra.mxu0 0.0
        %1978 = vmatprep.subr.mxu0 0.0
        %1979 = vmatpush1.xpose.msra.mxu0 0.0
        %1980 = vmatprep.subr.mxu0 0.0
        %1981 = vmatpush1.xpose.msra.mxu0 %v1948
        %1982 = vmatprep.subr.mxu0 0.0
        %1983 = vmatpush2.xpose.msra.mxu0 0.0
        %1984 = vmatprep.subr.mxu0 0.0
        %1985 = vmatpush2.xpose.msra.mxu0 0.0
        %1986 = vmatprep.subr.mxu0 0.0
        %1987 = vmatpush2.xpose.msra.mxu0 0.0
        %1988 = vmatprep.subr.mxu0 0.0
        %1989 = vmatpush2.xpose.msra.mxu0 0.0
        %1990 = vmatprep.subr.mxu0 0.0
        %1991 = vmatpush2.xpose.msra.mxu0 0.0
        %1992 = vmatprep.subr.mxu0 0.0
        %1993 = vmatpush2.xpose.msra.mxu0 0.0
        %1994 = vmatprep.subr.mxu0 0.0
        %1995 = vmatpush2.xpose.msra.mxu0 0.0
        %1996 = vmatprep.subr.mxu0 0.0
        %1997 = vmatpush2.xpose.msra.mxu0 0.0
        %1998 = vmatprep.subr.mxu0 0.0
        %1999 = vmatpush2.xpose.msra.mxu0 0.0
        %2000 = vmatprep.subr.mxu0 0.0
        %2001 = vmatpush2.xpose.msra.mxu0 0.0
        %2002 = vmatprep.subr.mxu0 0.0
        %2003 = vmatpush2.xpose.msra.mxu0 0.0
        %2004 = vmatprep.subr.mxu0 0.0
        %2005 = vmatpush2.xpose.msra.mxu0 0.0
        %2006 = vmatprep.subr.mxu0 0.0
        %2007 = vmatpush2.xpose.msra.mxu0 0.0
        %2008 = vmatprep.subr.mxu0 0.0
        %2009 = vmatpush2.xpose.msra.mxu0 0.0
        %2010 = vmatprep.subr.mxu0 0.0
        %2011 = vmatpush2.xpose.msra.mxu0 0.0
        %2012 = vmatprep.subr.mxu0 0.0
        %2013 = vmatpush2.xpose.msra.mxu0 0.0
        %2014 = vmatprep.mubr.f32.mxu0 0.0
        %2015 = vmatmul.mubr.f32.gmra.mxu0 %v1946
        %v2016 = vpop.f32.mrf.mxu0
        %v2017 = vadd.f32 0.0, %v2016
        %v2018 = vpop.f32.mrf.mxu0
        %2019 = vdwg.mxu0
        %v2020 = vmul.f32 %v2017, 0.25
        %v2021 = vadd.f32 %v2020, %v622
        %v2022 = vsel %vm1002, %v2021, -inf
        %2023 = vmax.xlane.f32.xlu0 %v2022
        %v2024 = vpop.xlane.xlu0 %2023
        %v2025 = vsub.f32 %v2021, %v2024
        %v2026 = vmul.f32 %v2025, 1.442695
        %v2027 = vpow.pop %v2026
        %v2028 = vsel %vm1002, %v2027, 0.0
        %2029 = vadd.xlane.f32.xlu0 %v2028
        %v2030 = vpop.xlane.xlu0 %2029
        %v2031 = vrcp.pop %v2030
        %v2032 = vmul.f32 %v2027, %v2031
        %2033 = vrot.lane.b32.xlu0 %v758, 80
        %v2034 = vpop.permute.xlu0 %2033
        %v2037 = vsel %vm1002, %v2032, 0
        %2039 = vmatprep.subr.mxu0 0.0
        %2040 = vmatpush1.msra.mxu0 0.0
        %2041 = vmatprep.subr.mxu0 0.0
        %2042 = vmatpush1.msra.mxu0 0.0
        %2043 = vmatprep.subr.mxu0 0.0
        %2044 = vmatpush1.msra.mxu0 0.0
        %2045 = vmatprep.subr.mxu0 0.0
        %2046 = vmatpush1.msra.mxu0 0.0
        %2047 = vmatprep.subr.mxu0 0.0
        %2048 = vmatpush1.msra.mxu0 0.0
        %2049 = vmatprep.subr.mxu0 0.0
        %2050 = vmatpush1.msra.mxu0 0.0
        %2051 = vmatprep.subr.mxu0 0.0
        %2052 = vmatpush1.msra.mxu0 0.0
        %2053 = vmatprep.subr.mxu0 0.0
        %2054 = vmatpush1.msra.mxu0 0.0
        %2055 = vmatprep.subr.mxu0 0.0
        %2056 = vmatpush1.msra.mxu0 0.0
        %2057 = vmatprep.subr.mxu0 0.0
        %2058 = vmatpush1.msra.mxu0 0.0
        %2059 = vmatprep.subr.mxu0 0.0
        %2060 = vmatpush1.msra.mxu0 0.0
        %2061 = vmatprep.subr.mxu0 0.0
        %2062 = vmatpush1.msra.mxu0 0.0
        %2063 = vmatprep.subr.mxu0 0.0
        %2064 = vmatpush1.msra.mxu0 0.0
        %2065 = vmatprep.subr.mxu0 0.0
        %2066 = vmatpush1.msra.mxu0 0.0
        %2067 = vmatprep.subr.mxu0 0.0
        %2068 = vmatpush1.msra.mxu0 0.0
        %2069 = vmatprep.subr.mxu0 0.0
        %2070 = vmatpush1.msra.mxu0 %v2034
        %2071 = vmatprep.subr.mxu0 0.0
        %2072 = vmatpush2.msra.mxu0 0.0
        %2073 = vmatprep.subr.mxu0 0.0
        %2074 = vmatpush2.msra.mxu0 0.0
        %2075 = vmatprep.subr.mxu0 0.0
        %2076 = vmatpush2.msra.mxu0 0.0
        %2077 = vmatprep.subr.mxu0 0.0
        %2078 = vmatpush2.msra.mxu0 0.0
        %2079 = vmatprep.subr.mxu0 0.0
        %2080 = vmatpush2.msra.mxu0 0.0
        %2081 = vmatprep.subr.mxu0 0.0
        %2082 = vmatpush2.msra.mxu0 0.0
        %2083 = vmatprep.subr.mxu0 0.0
        %2084 = vmatpush2.msra.mxu0 0.0
        %2085 = vmatprep.subr.mxu0 0.0
        %2086 = vmatpush2.msra.mxu0 0.0
        %2087 = vmatprep.subr.mxu0 0.0
        %2088 = vmatpush2.msra.mxu0 0.0
        %2089 = vmatprep.subr.mxu0 0.0
        %2090 = vmatpush2.msra.mxu0 0.0
        %2091 = vmatprep.subr.mxu0 0.0
        %2092 = vmatpush2.msra.mxu0 0.0
        %2093 = vmatprep.subr.mxu0 0.0
        %2094 = vmatpush2.msra.mxu0 0.0
        %2095 = vmatprep.subr.mxu0 0.0
        %2096 = vmatpush2.msra.mxu0 0.0
        %2097 = vmatprep.subr.mxu0 0.0
        %2098 = vmatpush2.msra.mxu0 0.0
        %2099 = vmatprep.subr.mxu0 0.0
        %2100 = vmatpush2.msra.mxu0 0.0
        %2101 = vmatprep.subr.mxu0 0.0
        %2102 = vmatpush2.msra.mxu0 0.0
        %2103 = vmatprep.mubr.f32.mxu0 0.0
        %2104 = vmatmul.mubr.f32.gmra.mxu0 %v2037
        %v2105 = vpop.f32.mrf.mxu0
        %v2106 = vadd.f32 0.0, %v2105
        %v2107 = vpop.f32.mrf.mxu0
        %2108 = vdwg.mxu0
        %2110 = vrot.lane.b32.xlu0 %v2106, 48
        %v2111 = vpop.permute.xlu0 %2110
        %vm2113 = vcmask 523648
        %2114 = vst.msk [vmem:[#allocation2] sm:$0xff] %vm2113, %v2111
        %v2115 = vld [vmem:[#allocation2] sm:$0xff]
        %v2116 = vld [vmem:[%s12] sm:$0xff]
        %v2117 = vld [vmem:[%s12 + $0x8] sm:$0xff]
        %v2118 = vld [vmem:[%s12 + $0x10] sm:$0xff]
        %v2119 = vld [vmem:[%s12 + $0x18] sm:$0xff]
        %v2120 = vld [vmem:[%s12 + $0x20] sm:$0xff]
        %v2121 = vld [vmem:[%s12 + $0x28] sm:$0xff]
        %v2122 = vld [vmem:[%s12 + $0x30] sm:$0xff]
        %v2123 = vld [vmem:[%s12 + $0x38] sm:$0xff]
        %v2124 = vld [vmem:[%s13] sm:$0x1]
        %v2126 = vlaneseq
        %v2127 = vshrl.u32 %v2126, 7
        %v2128 = vsub.s32 0, %v2127
        %v2129 = vrot.slane %v2124, %v2128
        %v2132 = vsel %vm629, %v2115, 0
        %2134 = vmatprep.subr.mxu0 0.0
        %2135 = vmatpush1.msra.mxu0 0.0
        %2136 = vmatprep.subr.mxu0 0.0
        %2137 = vmatpush1.msra.mxu0 0.0
        %2138 = vmatprep.subr.mxu0 0.0
        %2139 = vmatpush1.msra.mxu0 0.0
        %2140 = vmatprep.subr.mxu0 0.0
        %2141 = vmatpush1.msra.mxu0 0.0
        %2142 = vmatprep.subr.mxu0 0.0
        %2143 = vmatpush1.msra.mxu0 0.0
        %2144 = vmatprep.subr.mxu0 0.0
        %2145 = vmatpush1.msra.mxu0 0.0
        %2146 = vmatprep.subr.mxu0 0.0
        %2147 = vmatpush1.msra.mxu0 0.0
        %2148 = vmatprep.subr.mxu0 0.0
        %2149 = vmatpush1.msra.mxu0 0.0
        %2150 = vmatprep.subr.mxu0 0.0
        %2151 = vmatpush1.msra.mxu0 %v2123
        %2152 = vmatprep.subr.mxu0 0.0
        %2153 = vmatpush1.msra.mxu0 %v2122
        %2154 = vmatprep.subr.mxu0 0.0
        %2155 = vmatpush1.msra.mxu0 %v2121
        %2156 = vmatprep.subr.mxu0 0.0
        %2157 = vmatpush1.msra.mxu0 %v2120
        %2158 = vmatprep.subr.mxu0 0.0
        %2159 = vmatpush1.msra.mxu0 %v2119
        %2160 = vmatprep.subr.mxu0 0.0
        %2161 = vmatpush1.msra.mxu0 %v2118
        %2162 = vmatprep.subr.mxu0 0.0
        %2163 = vmatpush1.msra.mxu0 %v2117
        %2164 = vmatprep.subr.mxu0 0.0
        %2165 = vmatpush1.msra.mxu0 %v2116
        %2166 = vmatprep.subr.mxu0 0.0
        %2167 = vmatpush2.msra.mxu0 0.0
        %2168 = vmatprep.subr.mxu0 0.0
        %2169 = vmatpush2.msra.mxu0 0.0
        %2170 = vmatprep.subr.mxu0 0.0
        %2171 = vmatpush2.msra.mxu0 0.0
        %2172 = vmatprep.subr.mxu0 0.0
        %2173 = vmatpush2.msra.mxu0 0.0
        %2174 = vmatprep.subr.mxu0 0.0
        %2175 = vmatpush2.msra.mxu0 0.0
        %2176 = vmatprep.subr.mxu0 0.0
        %2177 = vmatpush2.msra.mxu0 0.0
        %2178 = vmatprep.subr.mxu0 0.0
        %2179 = vmatpush2.msra.mxu0 0.0
        %2180 = vmatprep.subr.mxu0 0.0
        %2181 = vmatpush2.msra.mxu0 0.0
        %2182 = vmatprep.subr.mxu0 0.0
        %2183 = vmatpush2.msra.mxu0 0.0
        %2184 = vmatprep.subr.mxu0 0.0
        %2185 = vmatpush2.msra.mxu0 0.0
        %2186 = vmatprep.subr.mxu0 0.0
        %2187 = vmatpush2.msra.mxu0 0.0
        %2188 = vmatprep.subr.mxu0 0.0
        %2189 = vmatpush2.msra.mxu0 0.0
        %2190 = vmatprep.subr.mxu0 0.0
        %2191 = vmatpush2.msra.mxu0 0.0
        %2192 = vmatprep.subr.mxu0 0.0
        %2193 = vmatpush2.msra.mxu0 0.0
        %2194 = vmatprep.subr.mxu0 0.0
        %2195 = vmatpush2.msra.mxu0 0.0
        %2196 = vmatprep.subr.mxu0 0.0
        %2197 = vmatpush2.msra.mxu0 0.0
        %2198 = vmatprep.mubr.f32.mxu0 0.0
        %2199 = vmatmul.mubr.f32.gmra.mxu0 %v2132
        %v2200 = vpop.f32.mrf.mxu0
        %v2201 = vadd.f32 %v2129, %v2200
        %v2202 = vpop.f32.mrf.mxu0
        %2203 = vdwg.mxu0
        %v2204 = vld [vmem:[%s8] sm:$0x1]
        %v2205 = vld [vmem:[%s9] sm:$0x1]
        %v2207 = vlaneseq
        %v2208 = vshrl.u32 %v2207, 7
        %v2209 = vsub.s32 0, %v2208
        %v2210 = vrot.slane %v2204, %v2209
        %v2212 = vmul.f32 %v643, %v2210
        %v2214 = vlaneseq
        %v2215 = vshrl.u32 %v2214, 7
        %v2216 = vsub.s32 0, %v2215
        %v2217 = vrot.slane %v2205, %v2216
        %v2219 = vadd.f32 %v2212, %v2217
        %v2220 = vld [vmem:[%s14] sm:$0xff]
        %v2221 = vld [vmem:[%s14 + $0x8] sm:$0xff]
        %v2222 = vld [vmem:[%s14 + $0x10] sm:$0xff]
        %v2223 = vld [vmem:[%s14 + $0x18] sm:$0xff]
        %v2224 = vld [vmem:[%s14 + $0x20] sm:$0xff]
        %v2225 = vld [vmem:[%s14 + $0x28] sm:$0xff]
        %v2226 = vld [vmem:[%s14 + $0x30] sm:$0xff]
        %v2227 = vld [vmem:[%s14 + $0x38] sm:$0xff]
        %v2228 = vld [vmem:[%s14 + $0x40] sm:$0xff]
        %v2229 = vld [vmem:[%s14 + $0x48] sm:$0xff]
        %v2230 = vld [vmem:[%s14 + $0x50] sm:$0xff]
        %v2231 = vld [vmem:[%s14 + $0x58] sm:$0xff]
        %v2232 = vld [vmem:[%s14 + $0x60] sm:$0xff]
        %v2233 = vld [vmem:[%s14 + $0x68] sm:$0xff]
        %v2234 = vld [vmem:[%s14 + $0x70] sm:$0xff]
        %v2235 = vld [vmem:[%s14 + $0x78] sm:$0xff]
        %v2236 = vld [vmem:[%s15] sm:$0x3]
        %v2238 = vlaneseq
        %v2239 = vshrl.u32 %v2238, 7
        %v2240 = vsub.s32 0, %v2239
        %v2241 = vrot.slane %v2236, %v2240
        %v2242 = vlaneseq
        %v2243 = vshrl.u32 %v2242, 7
        %v2244 = vsub.s32 1, %v2243
        %v2245 = vrot.slane %v2236, %v2244
        %v2249 = vsel %vm629, %v2219, 0
        %2251 = vmatprep.subr.mxu0 0.0
        %2252 = vmatpush1.msra.mxu0 0.0
        %2253 = vmatprep.subr.mxu0 0.0
        %2254 = vmatpush1.msra.mxu0 0.0
        %2255 = vmatprep.subr.mxu0 0.0
        %2256 = vmatpush1.msra.mxu0 0.0
        %2257 = vmatprep.subr.mxu0 0.0
        %2258 = vmatpush1.msra.mxu0 0.0
        %2259 = vmatprep.subr.mxu0 0.0
        %2260 = vmatpush1.msra.mxu0 0.0
        %2261 = vmatprep.subr.mxu0 0.0
        %2262 = vmatpush1.msra.mxu0 0.0
        %2263 = vmatprep.subr.mxu0 0.0
        %2264 = vmatpush1.msra.mxu0 0.0
        %2265 = vmatprep.subr.mxu0 0.0
        %2266 = vmatpush1.msra.mxu0 0.0
        %2267 = vmatprep.subr.mxu0 %v2235
        %2268 = vmatpush1.msra.mxu0 %v2234
        %2269 = vmatprep.subr.mxu0 %v2233
        %2270 = vmatpush1.msra.mxu0 %v2232
        %2271 = vmatprep.subr.mxu0 %v2231
        %2272 = vmatpush1.msra.mxu0 %v2230
        %2273 = vmatprep.subr.mxu0 %v2229
        %2274 = vmatpush1.msra.mxu0 %v2228
        %2275 = vmatprep.subr.mxu0 %v2227
        %2276 = vmatpush1.msra.mxu0 %v2226
        %2277 = vmatprep.subr.mxu0 %v2225
        %2278 = vmatpush1.msra.mxu0 %v2224
        %2279 = vmatprep.subr.mxu0 %v2223
        %2280 = vmatpush1.msra.mxu0 %v2222
        %2281 = vmatprep.subr.mxu0 %v2221
        %2282 = vmatpush1.msra.mxu0 %v2220
        %2283 = vmatprep.subr.mxu0 0.0
        %2284 = vmatpush2.msra.mxu0 0.0
        %2285 = vmatprep.subr.mxu0 0.0
        %2286 = vmatpush2.msra.mxu0 0.0
        %2287 = vmatprep.subr.mxu0 0.0
        %2288 = vmatpush2.msra.mxu0 0.0
        %2289 = vmatprep.subr.mxu0 0.0
        %2290 = vmatpush2.msra.mxu0 0.0
        %2291 = vmatprep.subr.mxu0 0.0
        %2292 = vmatpush2.msra.mxu0 0.0
        %2293 = vmatprep.subr.mxu0 0.0
        %2294 = vmatpush2.msra.mxu0 0.0
        %2295 = vmatprep.subr.mxu0 0.0
        %2296 = vmatpush2.msra.mxu0 0.0
        %2297 = vmatprep.subr.mxu0 0.0
        %2298 = vmatpush2.msra.mxu0 0.0
        %2299 = vmatprep.subr.mxu0 0.0
        %2300 = vmatpush2.msra.mxu0 0.0
        %2301 = vmatprep.subr.mxu0 0.0
        %2302 = vmatpush2.msra.mxu0 0.0
        %2303 = vmatprep.subr.mxu0 0.0
        %2304 = vmatpush2.msra.mxu0 0.0
        %2305 = vmatprep.subr.mxu0 0.0
        %2306 = vmatpush2.msra.mxu0 0.0
        %2307 = vmatprep.subr.mxu0 0.0
        %2308 = vmatpush2.msra.mxu0 0.0
        %2309 = vmatprep.subr.mxu0 0.0
        %2310 = vmatpush2.msra.mxu0 0.0
        %2311 = vmatprep.subr.mxu0 0.0
        %2312 = vmatpush2.msra.mxu0 0.0
        %2313 = vmatprep.subr.mxu0 0.0
        %2314 = vmatpush2.msra.mxu0 0.0
        %2315 = vmatprep.mubr.f32.mxu0 0.0
        %2316 = vmatmul.mubr.f32.gmra.mxu0 %v2249
        %v2317 = vpop.f32.mrf.mxu0
        %v2318 = vadd.f32 %v2241, %v2317
        %v2319 = vpop.f32.mrf.mxu0
        %v2320 = vadd.f32 %v2245, %v2319
        %2321 = vdwg.mxu0
        %v2322 = vmul.f32 %v2318, 0.5
        %v2323 = vmul.f32 %v2320, 0.5
        %v2324 = vmul.f32 %v2318, 0.044715
        %v2325 = vmul.f32 %v2320, 0.044715
        %v2326 = vmul.f32 %v2324, %v2318
        %v2327 = vmul.f32 %v2325, %v2320
        %v2328 = vmul.f32 %v2326, %v2318
        %v2329 = vmul.f32 %v2327, %v2320
        %v2330 = vadd.f32 %v2318, %v2328
        %v2331 = vadd.f32 %v2320, %v2329
        %v2332 = vmul.f32 %v2330, 0.7978846
        %v2333 = vmul.f32 %v2331, 0.7978846
        %v2334 = vtanh.pop %v2332
        %v2335 = vtanh.pop %v2333
        %v2336 = vadd.f32 %v2334, 1.0
        %v2337 = vadd.f32 %v2335, 1.0
        %v2338 = vmul.f32 %v2322, %v2336
        %v2339 = vmul.f32 %v2323, %v2337
        %v2340 = vld [vmem:[%s16] sm:$0xff]
        %v2341 = vld [vmem:[%s16 + $0x8] sm:$0xff]
        %v2342 = vld [vmem:[%s16 + $0x10] sm:$0xff]
        %v2343 = vld [vmem:[%s16 + $0x18] sm:$0xff]
        %v2344 = vld [vmem:[%s16 + $0x20] sm:$0xff]
        %v2345 = vld [vmem:[%s16 + $0x28] sm:$0xff]
        %v2346 = vld [vmem:[%s16 + $0x30] sm:$0xff]
        %v2347 = vld [vmem:[%s16 + $0x38] sm:$0xff]
        %v2348 = vld [vmem:[%s16 + $0x40] sm:$0xff]
        %v2349 = vld [vmem:[%s16 + $0x48] sm:$0xff]
        %v2350 = vld [vmem:[%s16 + $0x50] sm:$0xff]
        %v2351 = vld [vmem:[%s16 + $0x58] sm:$0xff]
        %v2352 = vld [vmem:[%s16 + $0x60] sm:$0xff]
        %v2353 = vld [vmem:[%s16 + $0x68] sm:$0xff]
        %v2354 = vld [vmem:[%s16 + $0x70] sm:$0xff]
        %v2355 = vld [vmem:[%s16 + $0x78] sm:$0xff]
        %v2356 = vld [vmem:[%s16 + $0x80] sm:$0xff]
        %v2357 = vld [vmem:[%s16 + $0x88] sm:$0xff]
        %v2358 = vld [vmem:[%s16 + $0x90] sm:$0xff]
        %v2359 = vld [vmem:[%s16 + $0x98] sm:$0xff]
        %v2360 = vld [vmem:[%s16 + $0xa0] sm:$0xff]
        %v2361 = vld [vmem:[%s16 + $0xa8] sm:$0xff]
        %v2362 = vld [vmem:[%s16 + $0xb0] sm:$0xff]
        %v2363 = vld [vmem:[%s16 + $0xb8] sm:$0xff]
        %v2364 = vld [vmem:[%s16 + $0xc0] sm:$0xff]
        %v2365 = vld [vmem:[%s16 + $0xc8] sm:$0xff]
        %v2366 = vld [vmem:[%s16 + $0xd0] sm:$0xff]
        %v2367 = vld [vmem:[%s16 + $0xd8] sm:$0xff]
        %v2368 = vld [vmem:[%s16 + $0xe0] sm:$0xff]
        %v2369 = vld [vmem:[%s16 + $0xe8] sm:$0xff]
        %v2370 = vld [vmem:[%s16 + $0xf0] sm:$0xff]
        %v2371 = vld [vmem:[%s16 + $0xf8] sm:$0xff]
        %v2372 = vld [vmem:[%s17] sm:$0x1]
        %v2374 = vlaneseq
        %v2375 = vshrl.u32 %v2374, 7
        %v2376 = vsub.s32 0, %v2375
        %v2377 = vrot.slane %v2372, %v2376
        %2379 = vmatprep.subr.mxu0 0.0
        %2380 = vmatpush1.msra.mxu0 %v2355
        %2381 = vmatprep.subr.mxu0 0.0
        %2382 = vmatpush1.msra.mxu0 %v2354
        %2383 = vmatprep.subr.mxu0 0.0
        %2384 = vmatpush1.msra.mxu0 %v2353
        %2385 = vmatprep.subr.mxu0 0.0
        %2386 = vmatpush1.msra.mxu0 %v2352
        %2387 = vmatprep.subr.mxu0 0.0
        %2388 = vmatpush1.msra.mxu0 %v2351
        %2389 = vmatprep.subr.mxu0 0.0
        %2390 = vmatpush1.msra.mxu0 %v2350
        %2391 = vmatprep.subr.mxu0 0.0
        %2392 = vmatpush1.msra.mxu0 %v2349
        %2393 = vmatprep.subr.mxu0 0.0
        %2394 = vmatpush1.msra.mxu0 %v2348
        %2395 = vmatprep.subr.mxu0 0.0
        %2396 = vmatpush1.msra.mxu0 %v2347
        %2397 = vmatprep.subr.mxu0 0.0
        %2398 = vmatpush1.msra.mxu0 %v2346
        %2399 = vmatprep.subr.mxu0 0.0
        %2400 = vmatpush1.msra.mxu0 %v2345
        %2401 = vmatprep.subr.mxu0 0.0
        %2402 = vmatpush1.msra.mxu0 %v2344
        %2403 = vmatprep.subr.mxu0 0.0
        %2404 = vmatpush1.msra.mxu0 %v2343
        %2405 = vmatprep.subr.mxu0 0.0
        %2406 = vmatpush1.msra.mxu0 %v2342
        %2407 = vmatprep.subr.mxu0 0.0
        %2408 = vmatpush1.msra.mxu0 %v2341
        %2409 = vmatprep.subr.mxu0 0.0
        %2410 = vmatpush1.msra.mxu0 %v2340
        %2411 = vmatprep.subr.mxu0 0.0
        %2412 = vmatpush2.msra.mxu0 %v2371
        %2413 = vmatprep.subr.mxu0 0.0
        %2414 = vmatpush2.msra.mxu0 %v2370
        %2415 = vmatprep.subr.mxu0 0.0
        %2416 = vmatpush2.msra.mxu0 %v2369
        %2417 = vmatprep.subr.mxu0 0.0
        %2418 = vmatpush2.msra.mxu0 %v2368
        %2419 = vmatprep.subr.mxu0 0.0
        %2420 = vmatpush2.msra.mxu0 %v2367
        %2421 = vmatprep.subr.mxu0 0.0
        %2422 = vmatpush2.msra.mxu0 %v2366
        %2423 = vmatprep.subr.mxu0 0.0
        %2424 = vmatpush2.msra.mxu0 %v2365
        %2425 = vmatprep.subr.mxu0 0.0
        %2426 = vmatpush2.msra.mxu0 %v2364
        %2427 = vmatprep.subr.mxu0 0.0
        %2428 = vmatpush2.msra.mxu0 %v2363
        %2429 = vmatprep.subr.mxu0 0.0
        %2430 = vmatpush2.msra.mxu0 %v2362
        %2431 = vmatprep.subr.mxu0 0.0
        %2432 = vmatpush2.msra.mxu0 %v2361
        %2433 = vmatprep.subr.mxu0 0.0
        %2434 = vmatpush2.msra.mxu0 %v2360
        %2435 = vmatprep.subr.mxu0 0.0
        %2436 = vmatpush2.msra.mxu0 %v2359
        %2437 = vmatprep.subr.mxu0 0.0
        %2438 = vmatpush2.msra.mxu0 %v2358
        %2439 = vmatprep.subr.mxu0 0.0
        %2440 = vmatpush2.msra.mxu0 %v2357
        %2441 = vmatprep.subr.mxu0 0.0
        %2442 = vmatpush2.msra.mxu0 %v2356
        %2443 = vmatprep.mubr.f32.mxu0 %v2339
        %2444 = vmatmul.mubr.f32.gmra.mxu0 %v2338
        %v2445 = vpop.f32.mrf.mxu0
        %v2446 = vadd.f32 %v2377, %v2445
        %v2447 = vpop.f32.mrf.mxu0
        %2448 = vdwg.mxu0
        %v2449 = vadd.f32 %v621, %v2201
        %v2450 = vadd.f32 %v2449, %v2446
        %s2451 = scalar_lea.vmem %s6, 1
        %v2452 = vld [vmem:[%s2451] sm:$0x1]
        %s2453 = scalar_lea.vmem %s7, 1
        %v2454 = vld [vmem:[%s2453] sm:$0x1]
        %v2455 = vsel %vm629, %v2450, 0.0
        %2456 = vadd.xlane.f32.xlu0 %v2455
        %v2457 = vpop.xlane.xlu0 %2456
        %v2458 = vmul.f32 %v2457, %v633
        %v2459 = vsub.f32 %v2450, %v2458
        %v2460 = vmul.f32 %v2459, %v2459
        %v2461 = vsel %vm629, %v2460, 0.0
        %2462 = vadd.xlane.f32.xlu0 %v2461
        %v2463 = vpop.xlane.xlu0 %2462
        %v2464 = vmul.f32 %v2463, %v633
        %v2465 = vadd.f32 %v2464, 1e-05
        %v2466 = vrsqrt.pop %v2465
        %v2467 = vmul.f32 %v2459, %v2466
        %v2469 = vlaneseq
        %v2470 = vshrl.u32 %v2469, 7
        %v2471 = vsub.s32 0, %v2470
        %v2472 = vrot.slane %v2452, %v2471
        %v2474 = vmul.f32 %v2467, %v2472
        %v2476 = vlaneseq
        %v2477 = vshrl.u32 %v2476, 7
        %v2478 = vsub.s32 0, %v2477
        %v2479 = vrot.slane %v2454, %v2478
        %v2481 = vadd.f32 %v2474, %v2479
        %s2482 = scalar_lea.vmem %s10, 128
        %v2483 = vld [vmem:[%s2482] sm:$0xff]
        %v2484 = vld [vmem:[%s2482 + $0x8] sm:$0xff]
        %v2485 = vld [vmem:[%s2482 + $0x10] sm:$0xff]
        %v2486 = vld [vmem:[%s2482 + $0x18] sm:$0xff]
        %v2487 = vld [vmem:[%s2482 + $0x20] sm:$0xff]
        %v2488 = vld [vmem:[%s2482 + $0x28] sm:$0xff]
        %v2489 = vld [vmem:[%s2482 + $0x30] sm:$0xff]
        %v2490 = vld [vmem:[%s2482 + $0x38] sm:$0xff]
        %v2491 = vld [vmem:[%s2482 + $0x40] sm:$0xff]
        %v2492 = vld [vmem:[%s2482 + $0x48] sm:$0xff]
        %v2493 = vld [vmem:[%s2482 + $0x50] sm:$0xff]
        %v2494 = vld [vmem:[%s2482 + $0x58] sm:$0xff]
        %v2495 = vld [vmem:[%s2482 + $0x60] sm:$0xff]
        %v2496 = vld [vmem:[%s2482 + $0x68] sm:$0xff]
        %v2497 = vld [vmem:[%s2482 + $0x70] sm:$0xff]
        %v2498 = vld [vmem:[%s2482 + $0x78] sm:$0xff]
        %s2499 = scalar_lea.vmem %s11, 2
        %v2500 = vld [vmem:[%s2499] sm:$0x3]
        %v2502 = vlaneseq
        %v2503 = vshrl.u32 %v2502, 7
        %v2504 = vsub.s32 0, %v2503
        %v2505 = vrot.slane %v2500, %v2504
        %v2506 = vlaneseq
        %v2507 = vshrl.u32 %v2506, 7
        %v2508 = vsub.s32 1, %v2507
        %v2509 = vrot.slane %v2500, %v2508
        %v2513 = vsel %vm629, %v2481, 0
        %2515 = vmatprep.subr.mxu0 0.0
        %2516 = vmatpush1.msra.mxu0 0.0
        %2517 = vmatprep.subr.mxu0 0.0
        %2518 = vmatpush1.msra.mxu0 0.0
        %2519 = vmatprep.subr.mxu0 0.0
        %2520 = vmatpush1.msra.mxu0 0.0
        %2521 = vmatprep.subr.mxu0 0.0
        %2522 = vmatpush1.msra.mxu0 0.0
        %2523 = vmatprep.subr.mxu0 0.0
        %2524 = vmatpush1.msra.mxu0 0.0
        %2525 = vmatprep.subr.mxu0 0.0
        %2526 = vmatpush1.msra.mxu0 0.0
        %2527 = vmatprep.subr.mxu0 0.0
        %2528 = vmatpush1.msra.mxu0 0.0
        %2529 = vmatprep.subr.mxu0 0.0
        %2530 = vmatpush1.msra.mxu0 0.0
        %2531 = vmatprep.subr.mxu0 %v2498
        %2532 = vmatpush1.msra.mxu0 %v2497
        %2533 = vmatprep.subr.mxu0 %v2496
        %2534 = vmatpush1.msra.mxu0 %v2495
        %2535 = vmatprep.subr.mxu0 %v2494
        %2536 = vmatpush1.msra.mxu0 %v2493
        %2537 = vmatprep.subr.mxu0 %v2492
        %2538 = vmatpush1.msra.mxu0 %v2491
        %2539 = vmatprep.subr.mxu0 %v2490
        %2540 = vmatpush1.msra.mxu0 %v2489
        %2541 = vmatprep.subr.mxu0 %v2488
        %2542 = vmatpush1.msra.mxu0 %v2487
        %2543 = vmatprep.subr.mxu0 %v2486
        %2544 = vmatpush1.msra.mxu0 %v2485
        %2545 = vmatprep.subr.mxu0 %v2484
        %2546 = vmatpush1.msra.mxu0 %v2483
        %2547 = vmatprep.subr.mxu0 0.0
        %2548 = vmatpush2.msra.mxu0 0.0
        %2549 = vmatprep.subr.mxu0 0.0
        %2550 = vmatpush2.msra.mxu0 0.0
        %2551 = vmatprep.subr.mxu0 0.0
        %2552 = vmatpush2.msra.mxu0 0.0
        %2553 = vmatprep.subr.mxu0 0.0
        %2554 = vmatpush2.msra.mxu0 0.0
        %2555 = vmatprep.subr.mxu0 0.0
        %2556 = vmatpush2.msra.mxu0 0.0
        %2557 = vmatprep.subr.mxu0 0.0
        %2558 = vmatpush2.msra.mxu0 0.0
        %2559 = vmatprep.subr.mxu0 0.0
        %2560 = vmatpush2.msra.mxu0 0.0
        %2561 = vmatprep.subr.mxu0 0.0
        %2562 = vmatpush2.msra.mxu0 0.0
        %2563 = vmatprep.subr.mxu0 0.0
        %2564 = vmatpush2.msra.mxu0 0.0
        %2565 = vmatprep.subr.mxu0 0.0
        %2566 = vmatpush2.msra.mxu0 0.0
        %2567 = vmatprep.subr.mxu0 0.0
        %2568 = vmatpush2.msra.mxu0 0.0
        %2569 = vmatprep.subr.mxu0 0.0
        %2570 = vmatpush2.msra.mxu0 0.0
        %2571 = vmatprep.subr.mxu0 0.0
        %2572 = vmatpush2.msra.mxu0 0.0
        %2573 = vmatprep.subr.mxu0 0.0
        %2574 = vmatpush2.msra.mxu0 0.0
        %2575 = vmatprep.subr.mxu0 0.0
        %2576 = vmatpush2.msra.mxu0 0.0
        %2577 = vmatprep.subr.mxu0 0.0
        %2578 = vmatpush2.msra.mxu0 0.0
        %2579 = vmatprep.mubr.f32.mxu0 0.0
        %2580 = vmatmul.mubr.f32.gmra.mxu0 %v2513
        %v2581 = vpop.f32.mrf.mxu0
        %v2582 = vadd.f32 %v2505, %v2581
        %v2583 = vpop.f32.mrf.mxu0
        %v2584 = vadd.f32 %v2509, %v2583
        %2585 = vdwg.mxu0
        %v2586 = vmul.f32 %v2582, %v623
        %v2588 = vsel %vm761, %v2582, 0
        %2590 = vmatprep.subr.mxu0 0.0
        %2591 = vmatpush1.msra.mxu0 0.0
        %2592 = vmatprep.subr.mxu0 0.0
        %2593 = vmatpush1.msra.mxu0 0.0
        %2594 = vmatprep.subr.mxu0 0.0
        %2595 = vmatpush1.msra.mxu0 0.0
        %2596 = vmatprep.subr.mxu0 0.0
        %2597 = vmatpush1.msra.mxu0 0.0
        %2598 = vmatprep.subr.mxu0 0.0
        %2599 = vmatpush1.msra.mxu0 0.0
        %2600 = vmatprep.subr.mxu0 0.0
        %2601 = vmatpush1.msra.mxu0 0.0
        %2602 = vmatprep.subr.mxu0 0.0
        %2603 = vmatpush1.msra.mxu0 0.0
        %2604 = vmatprep.subr.mxu0 0.0
        %2605 = vmatpush1.msra.mxu0 0.0
        %2606 = vmatprep.subr.mxu0 0.0
        %2607 = vmatpush1.msra.mxu0 0.0
        %2608 = vmatprep.subr.mxu0 0.0
        %2609 = vmatpush1.msra.mxu0 0.0
        %2610 = vmatprep.subr.mxu0 0.0
        %2611 = vmatpush1.msra.mxu0 0.0
        %2612 = vmatprep.subr.mxu0 0.0
        %2613 = vmatpush1.msra.mxu0 0.0
        %2614 = vmatprep.subr.mxu0 0.0
        %2615 = vmatpush1.msra.mxu0 0.0
        %2616 = vmatprep.subr.mxu0 0.0
        %2617 = vmatpush1.msra.mxu0 0.0
        %2618 = vmatprep.subr.mxu0 0.0
        %2619 = vmatpush1.msra.mxu0 %v626
        %2620 = vmatprep.subr.mxu0 0.0
        %2621 = vmatpush1.msra.mxu0 %v625
        %2622 = vmatprep.subr.mxu0 0.0
        %2623 = vmatpush2.msra.mxu0 0.0
        %2624 = vmatprep.subr.mxu0 0.0
        %2625 = vmatpush2.msra.mxu0 0.0
        %2626 = vmatprep.subr.mxu0 0.0
        %2627 = vmatpush2.msra.mxu0 0.0
        %2628 = vmatprep.subr.mxu0 0.0
        %2629 = vmatpush2.msra.mxu0 0.0
        %2630 = vmatprep.subr.mxu0 0.0
        %2631 = vmatpush2.msra.mxu0 0.0
        %2632 = vmatprep.subr.mxu0 0.0
        %2633 = vmatpush2.msra.mxu0 0.0
        %2634 = vmatprep.subr.mxu0 0.0
        %2635 = vmatpush2.msra.mxu0 0.0
        %2636 = vmatprep.subr.mxu0 0.0
        %2637 = vmatpush2.msra.mxu0 0.0
        %2638 = vmatprep.subr.mxu0 0.0
        %2639 = vmatpush2.msra.mxu0 0.0
        %2640 = vmatprep.subr.mxu0 0.0
        %2641 = vmatpush2.msra.mxu0 0.0
        %2642 = vmatprep.subr.mxu0 0.0
        %2643 = vmatpush2.msra.mxu0 0.0
        %2644 = vmatprep.subr.mxu0 0.0
        %2645 = vmatpush2.msra.mxu0 0.0
        %2646 = vmatprep.subr.mxu0 0.0
        %2647 = vmatpush2.msra.mxu0 0.0
        %2648 = vmatprep.subr.mxu0 0.0
        %2649 = vmatpush2.msra.mxu0 0.0
        %2650 = vmatprep.subr.mxu0 0.0
        %2651 = vmatpush2.msra.mxu0 0.0
        %2652 = vmatprep.subr.mxu0 0.0
        %2653 = vmatpush2.msra.mxu0 0.0
        %2654 = vmatprep.mubr.f32.mxu0 0.0
        %2655 = vmatmul.mubr.f32.gmra.mxu0 %v2588
        %v2656 = vpop.f32.mrf.mxu0
        %v2657 = vadd.f32 0.0, %v2656
        %v2658 = vpop.f32.mrf.mxu0
        %2659 = vdwg.mxu0
        %v2660 = vmul.f32 %v2657, %v624
        %v2661 = vadd.f32 %v2586, %v2660
        %v2662 = vmul.f32 %v2582, %v839
        %2663 = vrot.lane.b32.xlu0 %v2582, 112
        %v2664 = vpop.permute.xlu0 %2663
        %v2665 = vsel %vm761, %v2664, 0
        %2667 = vmatprep.subr.mxu0 0.0
        %2668 = vmatpush1.msra.mxu0 0.0
        %2669 = vmatprep.subr.mxu0 0.0
        %2670 = vmatpush1.msra.mxu0 0.0
        %2671 = vmatprep.subr.mxu0 0.0
        %2672 = vmatpush1.msra.mxu0 0.0
        %2673 = vmatprep.subr.mxu0 0.0
        %2674 = vmatpush1.msra.mxu0 0.0
        %2675 = vmatprep.subr.mxu0 0.0
        %2676 = vmatpush1.msra.mxu0 0.0
        %2677 = vmatprep.subr.mxu0 0.0
        %2678 = vmatpush1.msra.mxu0 0.0
        %2679 = vmatprep.subr.mxu0 0.0
        %2680 = vmatpush1.msra.mxu0 0.0
        %2681 = vmatprep.subr.mxu0 0.0
        %2682 = vmatpush1.msra.mxu0 0.0
        %2683 = vmatprep.subr.mxu0 0.0
        %2684 = vmatpush1.msra.mxu0 0.0
        %2685 = vmatprep.subr.mxu0 0.0
        %2686 = vmatpush1.msra.mxu0 0.0
        %2687 = vmatprep.subr.mxu0 0.0
        %2688 = vmatpush1.msra.mxu0 0.0
        %2689 = vmatprep.subr.mxu0 0.0
        %2690 = vmatpush1.msra.mxu0 0.0
        %2691 = vmatprep.subr.mxu0 0.0
        %2692 = vmatpush1.msra.mxu0 0.0
        %2693 = vmatprep.subr.mxu0 0.0
        %2694 = vmatpush1.msra.mxu0 0.0
        %2695 = vmatprep.subr.mxu0 0.0
        %2696 = vmatpush1.msra.mxu0 %v626
        %2697 = vmatprep.subr.mxu0 0.0
        %2698 = vmatpush1.msra.mxu0 %v625
        %2699 = vmatprep.subr.mxu0 0.0
        %2700 = vmatpush2.msra.mxu0 0.0
        %2701 = vmatprep.subr.mxu0 0.0
        %2702 = vmatpush2.msra.mxu0 0.0
        %2703 = vmatprep.subr.mxu0 0.0
        %2704 = vmatpush2.msra.mxu0 0.0
        %2705 = vmatprep.subr.mxu0 0.0
        %2706 = vmatpush2.msra.mxu0 0.0
        %2707 = vmatprep.subr.mxu0 0.0
        %2708 = vmatpush2.msra.mxu0 0.0
        %2709 = vmatprep.subr.mxu0 0.0
        %2710 = vmatpush2.msra.mxu0 0.0
        %2711 = vmatprep.subr.mxu0 0.0
        %2712 = vmatpush2.msra.mxu0 0.0
        %2713 = vmatprep.subr.mxu0 0.0
        %2714 = vmatpush2.msra.mxu0 0.0
        %2715 = vmatprep.subr.mxu0 0.0
        %2716 = vmatpush2.msra.mxu0 0.0
        %2717 = vmatprep.subr.mxu0 0.0
        %2718 = vmatpush2.msra.mxu0 0.0
        %2719 = vmatprep.subr.mxu0 0.0
        %2720 = vmatpush2.msra.mxu0 0.0
        %2721 = vmatprep.subr.mxu0 0.0
        %2722 = vmatpush2.msra.mxu0 0.0
        %2723 = vmatprep.subr.mxu0 0.0
        %2724 = vmatpush2.msra.mxu0 0.0
        %2725 = vmatprep.subr.mxu0 0.0
        %2726 = vmatpush2.msra.mxu0 0.0
        %2727 = vmatprep.subr.mxu0 0.0
        %2728 = vmatpush2.msra.mxu0 0.0
        %2729 = vmatprep.subr.mxu0 0.0
        %2730 = vmatpush2.msra.mxu0 0.0
        %2731 = vmatprep.mubr.f32.mxu0 0.0
        %2732 = vmatmul.mubr.f32.gmra.mxu0 %v2665
        %v2733 = vpop.f32.mrf.mxu0
        %v2734 = vadd.f32 0.0, %v2733
        %v2735 = vpop.f32.mrf.mxu0
        %2736 = vdwg.mxu0
        %v2737 = vmul.f32 %v2734, %v624
        %2739 = vrot.lane.b32.xlu0 %v2737, 16
        %v2740 = vpop.permute.xlu0 %2739
        %v2742 = vadd.f32 %v2662, %v2740
        %2744 = vrot.lane.b32.xlu0 %v2742, 112
        %v2745 = vpop.permute.xlu0 %2744
        %v2747 = vsel %vm761, %v2661, 0
        %v2749 = vsel %vm761, %v2745, 0
        %2751 = vmatprep.subr.mxu0 0.0
        %2752 = vmatpush1.xpose.msra.mxu0 0.0
        %2753 = vmatprep.subr.mxu0 0.0
        %2754 = vmatpush1.xpose.msra.mxu0 0.0
        %2755 = vmatprep.subr.mxu0 0.0
        %2756 = vmatpush1.xpose.msra.mxu0 0.0
        %2757 = vmatprep.subr.mxu0 0.0
        %2758 = vmatpush1.xpose.msra.mxu0 0.0
        %2759 = vmatprep.subr.mxu0 0.0
        %2760 = vmatpush1.xpose.msra.mxu0 0.0
        %2761 = vmatprep.subr.mxu0 0.0
        %2762 = vmatpush1.xpose.msra.mxu0 0.0
        %2763 = vmatprep.subr.mxu0 0.0
        %2764 = vmatpush1.xpose.msra.mxu0 0.0
        %2765 = vmatprep.subr.mxu0 0.0
        %2766 = vmatpush1.xpose.msra.mxu0 0.0
        %2767 = vmatprep.subr.mxu0 0.0
        %2768 = vmatpush1.xpose.msra.mxu0 0.0
        %2769 = vmatprep.subr.mxu0 0.0
        %2770 = vmatpush1.xpose.msra.mxu0 0.0
        %2771 = vmatprep.subr.mxu0 0.0
        %2772 = vmatpush1.xpose.msra.mxu0 0.0
        %2773 = vmatprep.subr.mxu0 0.0
        %2774 = vmatpush1.xpose.msra.mxu0 0.0
        %2775 = vmatprep.subr.mxu0 0.0
        %2776 = vmatpush1.xpose.msra.mxu0 0.0
        %2777 = vmatprep.subr.mxu0 0.0
        %2778 = vmatpush1.xpose.msra.mxu0 0.0
        %2779 = vmatprep.subr.mxu0 0.0
        %2780 = vmatpush1.xpose.msra.mxu0 0.0
        %2781 = vmatprep.subr.mxu0 0.0
        %2782 = vmatpush1.xpose.msra.mxu0 %v2749
        %2783 = vmatprep.subr.mxu0 0.0
        %2784 = vmatpush2.xpose.msra.mxu0 0.0
        %2785 = vmatprep.subr.mxu0 0.0
        %2786 = vmatpush2.xpose.msra.mxu0 0.0
        %2787 = vmatprep.subr.mxu0 0.0
        %2788 = vmatpush2.xpose.msra.mxu0 0.0
        %2789 = vmatprep.subr.mxu0 0.0
        %2790 = vmatpush2.xpose.msra.mxu0 0.0
        %2791 = vmatprep.subr.mxu0 0.0
        %2792 = vmatpush2.xpose.msra.mxu0 0.0
        %2793 = vmatprep.subr.mxu0 0.0
        %2794 = vmatpush2.xpose.msra.mxu0 0.0
        %2795 = vmatprep.subr.mxu0 0.0
        %2796 = vmatpush2.xpose.msra.mxu0 0.0
        %2797 = vmatprep.subr.mxu0 0.0
        %2798 = vmatpush2.xpose.msra.mxu0 0.0
        %2799 = vmatprep.subr.mxu0 0.0
        %2800 = vmatpush2.xpose.msra.mxu0 0.0
        %2801 = vmatprep.subr.mxu0 0.0
        %2802 = vmatpush2.xpose.msra.mxu0 0.0
        %2803 = vmatprep.subr.mxu0 0.0
        %2804 = vmatpush2.xpose.msra.mxu0 0.0
        %2805 = vmatprep.subr.mxu0 0.0
        %2806 = vmatpush2.xpose.msra.mxu0 0.0
        %2807 = vmatprep.subr.mxu0 0.0
        %2808 = vmatpush2.xpose.msra.mxu0 0.0
        %2809 = vmatprep.subr.mxu0 0.0
        %2810 = vmatpush2.xpose.msra.mxu0 0.0
        %2811 = vmatprep.subr.mxu0 0.0
        %2812 = vmatpush2.xpose.msra.mxu0 0.0
        %2813 = vmatprep.subr.mxu0 0.0
        %2814 = vmatpush2.xpose.msra.mxu0 0.0
        %2815 = vmatprep.mubr.f32.mxu0 0.0
        %2816 = vmatmul.mubr.f32.gmra.mxu0 %v2747
        %v2817 = vpop.f32.mrf.mxu0
        %v2818 = vadd.f32 0.0, %v2817
        %v2819 = vpop.f32.mrf.mxu0
        %2820 = vdwg.mxu0
        %v2821 = vmul.f32 %v2818, 0.25
        %v2822 = vadd.f32 %v2821, %v622
        %v2823 = vsel %vm1002, %v2822, -inf
        %2824 = vmax.xlane.f32.xlu0 %v2823
        %v2825 = vpop.xlane.xlu0 %2824
        %v2826 = vsub.f32 %v2822, %v2825
        %v2827 = vmul.f32 %v2826, 1.442695
        %v2828 = vpow.pop %v2827
        %v2829 = vsel %vm1002, %v2828, 0.0
        %2830 = vadd.xlane.f32.xlu0 %v2829
        %v2831 = vpop.xlane.xlu0 %2830
        %v2832 = vrcp.pop %v2831
        %v2833 = vmul.f32 %v2828, %v2832
        %2834 = vrot.lane.b32.xlu0 %v2582, 96
        %v2835 = vpop.permute.xlu0 %2834
        %v2838 = vsel %vm1002, %v2833, 0
        %2840 = vmatprep.subr.mxu0 0.0
        %2841 = vmatpush1.msra.mxu0 0.0
        %2842 = vmatprep.subr.mxu0 0.0
        %2843 = vmatpush1.msra.mxu0 0.0
        %2844 = vmatprep.subr.mxu0 0.0
        %2845 = vmatpush1.msra.mxu0 0.0
        %2846 = vmatprep.subr.mxu0 0.0
        %2847 = vmatpush1.msra.mxu0 0.0
        %2848 = vmatprep.subr.mxu0 0.0
        %2849 = vmatpush1.msra.mxu0 0.0
        %2850 = vmatprep.subr.mxu0 0.0
        %2851 = vmatpush1.msra.mxu0 0.0
        %2852 = vmatprep.subr.mxu0 0.0
        %2853 = vmatpush1.msra.mxu0 0.0
        %2854 = vmatprep.subr.mxu0 0.0
        %2855 = vmatpush1.msra.mxu0 0.0
        %2856 = vmatprep.subr.mxu0 0.0
        %2857 = vmatpush1.msra.mxu0 0.0
        %2858 = vmatprep.subr.mxu0 0.0
        %2859 = vmatpush1.msra.mxu0 0.0
        %2860 = vmatprep.subr.mxu0 0.0
        %2861 = vmatpush1.msra.mxu0 0.0
        %2862 = vmatprep.subr.mxu0 0.0
        %2863 = vmatpush1.msra.mxu0 0.0
        %2864 = vmatprep.subr.mxu0 0.0
        %2865 = vmatpush1.msra.mxu0 0.0
        %2866 = vmatprep.subr.mxu0 0.0
        %2867 = vmatpush1.msra.mxu0 0.0
        %2868 = vmatprep.subr.mxu0 0.0
        %2869 = vmatpush1.msra.mxu0 0.0
        %2870 = vmatprep.subr.mxu0 0.0
        %2871 = vmatpush1.msra.mxu0 %v2835
        %2872 = vmatprep.subr.mxu0 0.0
        %2873 = vmatpush2.msra.mxu0 0.0
        %2874 = vmatprep.subr.mxu0 0.0
        %2875 = vmatpush2.msra.mxu0 0.0
        %2876 = vmatprep.subr.mxu0 0.0
        %2877 = vmatpush2.msra.mxu0 0.0
        %2878 = vmatprep.subr.mxu0 0.0
        %2879 = vmatpush2.msra.mxu0 0.0
        %2880 = vmatprep.subr.mxu0 0.0
        %2881 = vmatpush2.msra.mxu0 0.0
        %2882 = vmatprep.subr.mxu0 0.0
        %2883 = vmatpush2.msra.mxu0 0.0
        %2884 = vmatprep.subr.mxu0 0.0
        %2885 = vmatpush2.msra.mxu0 0.0
        %2886 = vmatprep.subr.mxu0 0.0
        %2887 = vmatpush2.msra.mxu0 0.0
        %2888 = vmatprep.subr.mxu0 0.0
        %2889 = vmatpush2.msra.mxu0 0.0
        %2890 = vmatprep.subr.mxu0 0.0
        %2891 = vmatpush2.msra.mxu0 0.0
        %2892 = vmatprep.subr.mxu0 0.0
        %2893 = vmatpush2.msra.mxu0 0.0
        %2894 = vmatprep.subr.mxu0 0.0
        %2895 = vmatpush2.msra.mxu0 0.0
        %2896 = vmatprep.subr.mxu0 0.0
        %2897 = vmatpush2.msra.mxu0 0.0
        %2898 = vmatprep.subr.mxu0 0.0
        %2899 = vmatpush2.msra.mxu0 0.0
        %2900 = vmatprep.subr.mxu0 0.0
        %2901 = vmatpush2.msra.mxu0 0.0
        %2902 = vmatprep.subr.mxu0 0.0
        %2903 = vmatpush2.msra.mxu0 0.0
        %2904 = vmatprep.mubr.f32.mxu0 0.0
        %2905 = vmatmul.mubr.f32.gmra.mxu0 %v2838
        %v2906 = vpop.f32.mrf.mxu0
        %v2907 = vadd.f32 0.0, %v2906
        %v2908 = vpop.f32.mrf.mxu0
        %2909 = vdwg.mxu0
        %2910 = vst.msk [vmem:[#allocation2] sm:$0xff] %vm761, %v2907
        %v2911 = vmul.f32 %v2582, %v1092
        %2912 = vrot.lane.b32.xlu0 %v2582, 80
        %v2913 = vpop.permute.xlu0 %2912
        %v2914 = vsel %vm761, %v2913, 0
        %2916 = vmatprep.subr.mxu0 0.0
        %2917 = vmatpush1.msra.mxu0 0.0
        %2918 = vmatprep.subr.mxu0 0.0
        %2919 = vmatpush1.msra.mxu0 0.0
        %2920 = vmatprep.subr.mxu0 0.0
        %2921 = vmatpush1.msra.mxu0 0.0
        %2922 = vmatprep.subr.mxu0 0.0
        %2923 = vmatpush1.msra.mxu0 0.0
        %2924 = vmatprep.subr.mxu0 0.0
        %2925 = vmatpush1.msra.mxu0 0.0
        %2926 = vmatprep.subr.mxu0 0.0
        %2927 = vmatpush1.msra.mxu0 0.0
        %2928 = vmatprep.subr.mxu0 0.0
        %2929 = vmatpush1.msra.mxu0 0.0
        %2930 = vmatprep.subr.mxu0 0.0
        %2931 = vmatpush1.msra.mxu0 0.0
        %2932 = vmatprep.subr.mxu0 0.0
        %2933 = vmatpush1.msra.mxu0 0.0
        %2934 = vmatprep.subr.mxu0 0.0
        %2935 = vmatpush1.msra.mxu0 0.0
        %2936 = vmatprep.subr.mxu0 0.0
        %2937 = vmatpush1.msra.mxu0 0.0
        %2938 = vmatprep.subr.mxu0 0.0
        %2939 = vmatpush1.msra.mxu0 0.0
        %2940 = vmatprep.subr.mxu0 0.0
        %2941 = vmatpush1.msra.mxu0 0.0
        %2942 = vmatprep.subr.mxu0 0.0
        %2943 = vmatpush1.msra.mxu0 0.0
        %2944 = vmatprep.subr.mxu0 0.0
        %2945 = vmatpush1.msra.mxu0 %v626
        %2946 = vmatprep.subr.mxu0 0.0
        %2947 = vmatpush1.msra.mxu0 %v625
        %2948 = vmatprep.subr.mxu0 0.0
        %2949 = vmatpush2.msra.mxu0 0.0
        %2950 = vmatprep.subr.mxu0 0.0
        %2951 = vmatpush2.msra.mxu0 0.0
        %2952 = vmatprep.subr.mxu0 0.0
        %2953 = vmatpush2.msra.mxu0 0.0
        %2954 = vmatprep.subr.mxu0 0.0
        %2955 = vmatpush2.msra.mxu0 0.0
        %2956 = vmatprep.subr.mxu0 0.0
        %2957 = vmatpush2.msra.mxu0 0.0
        %2958 = vmatprep.subr.mxu0 0.0
        %2959 = vmatpush2.msra.mxu0 0.0
        %2960 = vmatprep.subr.mxu0 0.0
        %2961 = vmatpush2.msra.mxu0 0.0
        %2962 = vmatprep.subr.mxu0 0.0
        %2963 = vmatpush2.msra.mxu0 0.0
        %2964 = vmatprep.subr.mxu0 0.0
        %2965 = vmatpush2.msra.mxu0 0.0
        %2966 = vmatprep.subr.mxu0 0.0
        %2967 = vmatpush2.msra.mxu0 0.0
        %2968 = vmatprep.subr.mxu0 0.0
        %2969 = vmatpush2.msra.mxu0 0.0
        %2970 = vmatprep.subr.mxu0 0.0
        %2971 = vmatpush2.msra.mxu0 0.0
        %2972 = vmatprep.subr.mxu0 0.0
        %2973 = vmatpush2.msra.mxu0 0.0
        %2974 = vmatprep.subr.mxu0 0.0
        %2975 = vmatpush2.msra.mxu0 0.0
        %2976 = vmatprep.subr.mxu0 0.0
        %2977 = vmatpush2.msra.mxu0 0.0
        %2978 = vmatprep.subr.mxu0 0.0
        %2979 = vmatpush2.msra.mxu0 0.0
        %2980 = vmatprep.mubr.f32.mxu0 0.0
        %2981 = vmatmul.mubr.f32.gmra.mxu0 %v2914
        %v2982 = vpop.f32.mrf.mxu0
        %v2983 = vadd.f32 0.0, %v2982
        %v2984 = vpop.f32.mrf.mxu0
        %2985 = vdwg.mxu0
        %v2986 = vmul.f32 %v2983, %v624
        %2988 = vrot.lane.b32.xlu0 %v2986, 48
        %v2989 = vpop.permute.xlu0 %2988
        %v2991 = vadd.f32 %v2911, %v2989
        %v2992 = vmul.f32 %v2582, %v1176
        %2993 = vrot.lane.b32.xlu0 %v2582, 64
        %v2994 = vpop.permute.xlu0 %2993
        %v2995 = vsel %vm761, %v2994, 0
        %2997 = vmatprep.subr.mxu0 0.0
        %2998 = vmatpush1.msra.mxu0 0.0
        %2999 = vmatprep.subr.mxu0 0.0
        %3000 = vmatpush1.msra.mxu0 0.0
        %3001 = vmatprep.subr.mxu0 0.0
        %3002 = vmatpush1.msra.mxu0 0.0
        %3003 = vmatprep.subr.mxu0 0.0
        %3004 = vmatpush1.msra.mxu0 0.0
        %3005 = vmatprep.subr.mxu0 0.0
        %3006 = vmatpush1.msra.mxu0 0.0
        %3007 = vmatprep.subr.mxu0 0.0
        %3008 = vmatpush1.msra.mxu0 0.0
        %3009 = vmatprep.subr.mxu0 0.0
        %3010 = vmatpush1.msra.mxu0 0.0
        %3011 = vmatprep.subr.mxu0 0.0
        %3012 = vmatpush1.msra.mxu0 0.0
        %3013 = vmatprep.subr.mxu0 0.0
        %3014 = vmatpush1.msra.mxu0 0.0
        %3015 = vmatprep.subr.mxu0 0.0
        %3016 = vmatpush1.msra.mxu0 0.0
        %3017 = vmatprep.subr.mxu0 0.0
        %3018 = vmatpush1.msra.mxu0 0.0
        %3019 = vmatprep.subr.mxu0 0.0
        %3020 = vmatpush1.msra.mxu0 0.0
        %3021 = vmatprep.subr.mxu0 0.0
        %3022 = vmatpush1.msra.mxu0 0.0
        %3023 = vmatprep.subr.mxu0 0.0
        %3024 = vmatpush1.msra.mxu0 0.0
        %3025 = vmatprep.subr.mxu0 0.0
        %3026 = vmatpush1.msra.mxu0 %v626
        %3027 = vmatprep.subr.mxu0 0.0
        %3028 = vmatpush1.msra.mxu0 %v625
        %3029 = vmatprep.subr.mxu0 0.0
        %3030 = vmatpush2.msra.mxu0 0.0
        %3031 = vmatprep.subr.mxu0 0.0
        %3032 = vmatpush2.msra.mxu0 0.0
        %3033 = vmatprep.subr.mxu0 0.0
        %3034 = vmatpush2.msra.mxu0 0.0
        %3035 = vmatprep.subr.mxu0 0.0
        %3036 = vmatpush2.msra.mxu0 0.0
        %3037 = vmatprep.subr.mxu0 0.0
        %3038 = vmatpush2.msra.mxu0 0.0
        %3039 = vmatprep.subr.mxu0 0.0
        %3040 = vmatpush2.msra.mxu0 0.0
        %3041 = vmatprep.subr.mxu0 0.0
        %3042 = vmatpush2.msra.mxu0 0.0
        %3043 = vmatprep.subr.mxu0 0.0
        %3044 = vmatpush2.msra.mxu0 0.0
        %3045 = vmatprep.subr.mxu0 0.0
        %3046 = vmatpush2.msra.mxu0 0.0
        %3047 = vmatprep.subr.mxu0 0.0
        %3048 = vmatpush2.msra.mxu0 0.0
        %3049 = vmatprep.subr.mxu0 0.0
        %3050 = vmatpush2.msra.mxu0 0.0
        %3051 = vmatprep.subr.mxu0 0.0
        %3052 = vmatpush2.msra.mxu0 0.0
        %3053 = vmatprep.subr.mxu0 0.0
        %3054 = vmatpush2.msra.mxu0 0.0
        %3055 = vmatprep.subr.mxu0 0.0
        %3056 = vmatpush2.msra.mxu0 0.0
        %3057 = vmatprep.subr.mxu0 0.0
        %3058 = vmatpush2.msra.mxu0 0.0
        %3059 = vmatprep.subr.mxu0 0.0
        %3060 = vmatpush2.msra.mxu0 0.0
        %3061 = vmatprep.mubr.f32.mxu0 0.0
        %3062 = vmatmul.mubr.f32.gmra.mxu0 %v2995
        %v3063 = vpop.f32.mrf.mxu0
        %v3064 = vadd.f32 0.0, %v3063
        %v3065 = vpop.f32.mrf.mxu0
        %3066 = vdwg.mxu0
        %v3067 = vmul.f32 %v3064, %v624
        %3069 = vrot.lane.b32.xlu0 %v3067, 64
        %v3070 = vpop.permute.xlu0 %3069
        %v3072 = vadd.f32 %v2992, %v3070
        %3074 = vrot.lane.b32.xlu0 %v2991, 80
        %v3075 = vpop.permute.xlu0 %3074
        %3077 = vrot.lane.b32.xlu0 %v3072, 64
        %v3078 = vpop.permute.xlu0 %3077
        %v3079 = vsel %vm761, %v3075, 0
        %v3081 = vsel %vm761, %v3078, 0
        %3083 = vmatprep.subr.mxu0 0.0
        %3084 = vmatpush1.xpose.msra.mxu0 0.0
        %3085 = vmatprep.subr.mxu0 0.0
        %3086 = vmatpush1.xpose.msra.mxu0 0.0
        %3087 = vmatprep.subr.mxu0 0.0
        %3088 = vmatpush1.xpose.msra.mxu0 0.0
        %3089 = vmatprep.subr.mxu0 0.0
        %3090 = vmatpush1.xpose.msra.mxu0 0.0
        %3091 = vmatprep.subr.mxu0 0.0
        %3092 = vmatpush1.xpose.msra.mxu0 0.0
        %3093 = vmatprep.subr.mxu0 0.0
        %3094 = vmatpush1.xpose.msra.mxu0 0.0
        %3095 = vmatprep.subr.mxu0 0.0
        %3096 = vmatpush1.xpose.msra.mxu0 0.0
        %3097 = vmatprep.subr.mxu0 0.0
        %3098 = vmatpush1.xpose.msra.mxu0 0.0
        %3099 = vmatprep.subr.mxu0 0.0
        %3100 = vmatpush1.xpose.msra.mxu0 0.0
        %3101 = vmatprep.subr.mxu0 0.0
        %3102 = vmatpush1.xpose.msra.mxu0 0.0
        %3103 = vmatprep.subr.mxu0 0.0
        %3104 = vmatpush1.xpose.msra.mxu0 0.0
        %3105 = vmatprep.subr.mxu0 0.0
        %3106 = vmatpush1.xpose.msra.mxu0 0.0
        %3107 = vmatprep.subr.mxu0 0.0
        %3108 = vmatpush1.xpose.msra.mxu0 0.0
        %3109 = vmatprep.subr.mxu0 0.0
        %3110 = vmatpush1.xpose.msra.mxu0 0.0
        %3111 = vmatprep.subr.mxu0 0.0
        %3112 = vmatpush1.xpose.msra.mxu0 0.0
        %3113 = vmatprep.subr.mxu0 0.0
        %3114 = vmatpush1.xpose.msra.mxu0 %v3081
        %3115 = vmatprep.subr.mxu0 0.0
        %3116 = vmatpush2.xpose.msra.mxu0 0.0
        %3117 = vmatprep.subr.mxu0 0.0
        %3118 = vmatpush2.xpose.msra.mxu0 0.0
        %3119 = vmatprep.subr.mxu0 0.0
        %3120 = vmatpush2.xpose.msra.mxu0 0.0
        %3121 = vmatprep.subr.mxu0 0.0
        %3122 = vmatpush2.xpose.msra.mxu0 0.0
        %3123 = vmatprep.subr.mxu0 0.0
        %3124 = vmatpush2.xpose.msra.mxu0 0.0
        %3125 = vmatprep.subr.mxu0 0.0
        %3126 = vmatpush2.xpose.msra.mxu0 0.0
        %3127 = vmatprep.subr.mxu0 0.0
        %3128 = vmatpush2.xpose.msra.mxu0 0.0
        %3129 = vmatprep.subr.mxu0 0.0
        %3130 = vmatpush2.xpose.msra.mxu0 0.0
        %3131 = vmatprep.subr.mxu0 0.0
        %3132 = vmatpush2.xpose.msra.mxu0 0.0
        %3133 = vmatprep.subr.mxu0 0.0
        %3134 = vmatpush2.xpose.msra.mxu0 0.0
        %3135 = vmatprep.subr.mxu0 0.0
        %3136 = vmatpush2.xpose.msra.mxu0 0.0
        %3137 = vmatprep.subr.mxu0 0.0
        %3138 = vmatpush2.xpose.msra.mxu0 0.0
        %3139 = vmatprep.subr.mxu0 0.0
        %3140 = vmatpush2.xpose.msra.mxu0 0.0
        %3141 = vmatprep.subr.mxu0 0.0
        %3142 = vmatpush2.xpose.msra.mxu0 0.0
        %3143 = vmatprep.subr.mxu0 0.0
        %3144 = vmatpush2.xpose.msra.mxu0 0.0
        %3145 = vmatprep.subr.mxu0 0.0
        %3146 = vmatpush2.xpose.msra.mxu0 0.0
        %3147 = vmatprep.mubr.f32.mxu0 0.0
        %3148 = vmatmul.mubr.f32.gmra.mxu0 %v3079
        %v3149 = vpop.f32.mrf.mxu0
        %v3150 = vadd.f32 0.0, %v3149
        %v3151 = vpop.f32.mrf.mxu0
        %3152 = vdwg.mxu0
        %v3153 = vmul.f32 %v3150, 0.25
        %v3154 = vadd.f32 %v3153, %v622
        %v3155 = vsel %vm1002, %v3154, -inf
        %3156 = vmax.xlane.f32.xlu0 %v3155
        %v3157 = vpop.xlane.xlu0 %3156
        %v3158 = vsub.f32 %v3154, %v3157
        %v3159 = vmul.f32 %v3158, 1.442695
        %v3160 = vpow.pop %v3159
        %v3161 = vsel %vm1002, %v3160, 0.0
        %3162 = vadd.xlane.f32.xlu0 %v3161
        %v3163 = vpop.xlane.xlu0 %3162
        %v3164 = vrcp.pop %v3163
        %v3165 = vmul.f32 %v3160, %v3164
        %3166 = vrot.lane.b32.xlu0 %v2582, 48
        %v3167 = vpop.permute.xlu0 %3166
        %v3170 = vsel %vm1002, %v3165, 0
        %3172 = vmatprep.subr.mxu0 0.0
        %3173 = vmatpush1.msra.mxu0 0.0
        %3174 = vmatprep.subr.mxu0 0.0
        %3175 = vmatpush1.msra.mxu0 0.0
        %3176 = vmatprep.subr.mxu0 0.0
        %3177 = vmatpush1.msra.mxu0 0.0
        %3178 = vmatprep.subr.mxu0 0.0
        %3179 = vmatpush1.msra.mxu0 0.0
        %3180 = vmatprep.subr.mxu0 0.0
        %3181 = vmatpush1.msra.mxu0 0.0
        %3182 = vmatprep.subr.mxu0 0.0
        %3183 = vmatpush1.msra.mxu0 0.0
        %3184 = vmatprep.subr.mxu0 0.0
        %3185 = vmatpush1.msra.mxu0 0.0
        %3186 = vmatprep.subr.mxu0 0.0
        %3187 = vmatpush1.msra.mxu0 0.0
        %3188 = vmatprep.subr.mxu0 0.0
        %3189 = vmatpush1.msra.mxu0 0.0
        %3190 = vmatprep.subr.mxu0 0.0
        %3191 = vmatpush1.msra.mxu0 0.0
        %3192 = vmatprep.subr.mxu0 0.0
        %3193 = vmatpush1.msra.mxu0 0.0
        %3194 = vmatprep.subr.mxu0 0.0
        %3195 = vmatpush1.msra.mxu0 0.0
        %3196 = vmatprep.subr.mxu0 0.0
        %3197 = vmatpush1.msra.mxu0 0.0
        %3198 = vmatprep.subr.mxu0 0.0
        %3199 = vmatpush1.msra.mxu0 0.0
        %3200 = vmatprep.subr.mxu0 0.0
        %3201 = vmatpush1.msra.mxu0 0.0
        %3202 = vmatprep.subr.mxu0 0.0
        %3203 = vmatpush1.msra.mxu0 %v3167
        %3204 = vmatprep.subr.mxu0 0.0
        %3205 = vmatpush2.msra.mxu0 0.0
        %3206 = vmatprep.subr.mxu0 0.0
        %3207 = vmatpush2.msra.mxu0 0.0
        %3208 = vmatprep.subr.mxu0 0.0
        %3209 = vmatpush2.msra.mxu0 0.0
        %3210 = vmatprep.subr.mxu0 0.0
        %3211 = vmatpush2.msra.mxu0 0.0
        %3212 = vmatprep.subr.mxu0 0.0
        %3213 = vmatpush2.msra.mxu0 0.0
        %3214 = vmatprep.subr.mxu0 0.0
        %3215 = vmatpush2.msra.mxu0 0.0
        %3216 = vmatprep.subr.mxu0 0.0
        %3217 = vmatpush2.msra.mxu0 0.0
        %3218 = vmatprep.subr.mxu0 0.0
        %3219 = vmatpush2.msra.mxu0 0.0
        %3220 = vmatprep.subr.mxu0 0.0
        %3221 = vmatpush2.msra.mxu0 0.0
        %3222 = vmatprep.subr.mxu0 0.0
        %3223 = vmatpush2.msra.mxu0 0.0
        %3224 = vmatprep.subr.mxu0 0.0
        %3225 = vmatpush2.msra.mxu0 0.0
        %3226 = vmatprep.subr.mxu0 0.0
        %3227 = vmatpush2.msra.mxu0 0.0
        %3228 = vmatprep.subr.mxu0 0.0
        %3229 = vmatpush2.msra.mxu0 0.0
        %3230 = vmatprep.subr.mxu0 0.0
        %3231 = vmatpush2.msra.mxu0 0.0
        %3232 = vmatprep.subr.mxu0 0.0
        %3233 = vmatpush2.msra.mxu0 0.0
        %3234 = vmatprep.subr.mxu0 0.0
        %3235 = vmatpush2.msra.mxu0 0.0
        %3236 = vmatprep.mubr.f32.mxu0 0.0
        %3237 = vmatmul.mubr.f32.gmra.mxu0 %v3170
        %v3238 = vpop.f32.mrf.mxu0
        %v3239 = vadd.f32 0.0, %v3238
        %v3240 = vpop.f32.mrf.mxu0
        %3241 = vdwg.mxu0
        %3243 = vrot.lane.b32.xlu0 %v3239, 16
        %v3244 = vpop.permute.xlu0 %3243
        %3246 = vst.msk [vmem:[#allocation2] sm:$0xff] %vm1432, %v3244
        %v3247 = vmul.f32 %v2582, %v1435
        %3248 = vrot.lane.b32.xlu0 %v2582, 32
        %v3249 = vpop.permute.xlu0 %3248
        %v3250 = vsel %vm761, %v3249, 0
        %3252 = vmatprep.subr.mxu0 0.0
        %3253 = vmatpush1.msra.mxu0 0.0
        %3254 = vmatprep.subr.mxu0 0.0
        %3255 = vmatpush1.msra.mxu0 0.0
        %3256 = vmatprep.subr.mxu0 0.0
        %3257 = vmatpush1.msra.mxu0 0.0
        %3258 = vmatprep.subr.mxu0 0.0
        %3259 = vmatpush1.msra.mxu0 0.0
        %3260 = vmatprep.subr.mxu0 0.0
        %3261 = vmatpush1.msra.mxu0 0.0
        %3262 = vmatprep.subr.mxu0 0.0
        %3263 = vmatpush1.msra.mxu0 0.0
        %3264 = vmatprep.subr.mxu0 0.0
        %3265 = vmatpush1.msra.mxu0 0.0
        %3266 = vmatprep.subr.mxu0 0.0
        %3267 = vmatpush1.msra.mxu0 0.0
        %3268 = vmatprep.subr.mxu0 0.0
        %3269 = vmatpush1.msra.mxu0 0.0
        %3270 = vmatprep.subr.mxu0 0.0
        %3271 = vmatpush1.msra.mxu0 0.0
        %3272 = vmatprep.subr.mxu0 0.0
        %3273 = vmatpush1.msra.mxu0 0.0
        %3274 = vmatprep.subr.mxu0 0.0
        %3275 = vmatpush1.msra.mxu0 0.0
        %3276 = vmatprep.subr.mxu0 0.0
        %3277 = vmatpush1.msra.mxu0 0.0
        %3278 = vmatprep.subr.mxu0 0.0
        %3279 = vmatpush1.msra.mxu0 0.0
        %3280 = vmatprep.subr.mxu0 0.0
        %3281 = vmatpush1.msra.mxu0 %v626
        %3282 = vmatprep.subr.mxu0 0.0
        %3283 = vmatpush1.msra.mxu0 %v625
        %3284 = vmatprep.subr.mxu0 0.0
        %3285 = vmatpush2.msra.mxu0 0.0
        %3286 = vmatprep.subr.mxu0 0.0
        %3287 = vmatpush2.msra.mxu0 0.0
        %3288 = vmatprep.subr.mxu0 0.0
        %3289 = vmatpush2.msra.mxu0 0.0
        %3290 = vmatprep.subr.mxu0 0.0
        %3291 = vmatpush2.msra.mxu0 0.0
        %3292 = vmatprep.subr.mxu0 0.0
        %3293 = vmatpush2.msra.mxu0 0.0
        %3294 = vmatprep.subr.mxu0 0.0
        %3295 = vmatpush2.msra.mxu0 0.0
        %3296 = vmatprep.subr.mxu0 0.0
        %3297 = vmatpush2.msra.mxu0 0.0
        %3298 = vmatprep.subr.mxu0 0.0
        %3299 = vmatpush2.msra.mxu0 0.0
        %3300 = vmatprep.subr.mxu0 0.0
        %3301 = vmatpush2.msra.mxu0 0.0
        %3302 = vmatprep.subr.mxu0 0.0
        %3303 = vmatpush2.msra.mxu0 0.0
        %3304 = vmatprep.subr.mxu0 0.0
        %3305 = vmatpush2.msra.mxu0 0.0
        %3306 = vmatprep.subr.mxu0 0.0
        %3307 = vmatpush2.msra.mxu0 0.0
        %3308 = vmatprep.subr.mxu0 0.0
        %3309 = vmatpush2.msra.mxu0 0.0
        %3310 = vmatprep.subr.mxu0 0.0
        %3311 = vmatpush2.msra.mxu0 0.0
        %3312 = vmatprep.subr.mxu0 0.0
        %3313 = vmatpush2.msra.mxu0 0.0
        %3314 = vmatprep.subr.mxu0 0.0
        %3315 = vmatpush2.msra.mxu0 0.0
        %3316 = vmatprep.mubr.f32.mxu0 0.0
        %3317 = vmatmul.mubr.f32.gmra.mxu0 %v3250
        %v3318 = vpop.f32.mrf.mxu0
        %v3319 = vadd.f32 0.0, %v3318
        %v3320 = vpop.f32.mrf.mxu0
        %3321 = vdwg.mxu0
        %v3322 = vmul.f32 %v3319, %v624
        %3324 = vrot.lane.b32.xlu0 %v3322, 96
        %v3325 = vpop.permute.xlu0 %3324
        %v3327 = vadd.f32 %v3247, %v3325
        %v3328 = vmul.f32 %v2582, %v1519
        %3329 = vrot.lane.b32.xlu0 %v2582, 16
        %v3330 = vpop.permute.xlu0 %3329
        %v3331 = vsel %vm761, %v3330, 0
        %3333 = vmatprep.subr.mxu0 0.0
        %3334 = vmatpush1.msra.mxu0 0.0
        %3335 = vmatprep.subr.mxu0 0.0
        %3336 = vmatpush1.msra.mxu0 0.0
        %3337 = vmatprep.subr.mxu0 0.0
        %3338 = vmatpush1.msra.mxu0 0.0
        %3339 = vmatprep.subr.mxu0 0.0
        %3340 = vmatpush1.msra.mxu0 0.0
        %3341 = vmatprep.subr.mxu0 0.0
        %3342 = vmatpush1.msra.mxu0 0.0
        %3343 = vmatprep.subr.mxu0 0.0
        %3344 = vmatpush1.msra.mxu0 0.0
        %3345 = vmatprep.subr.mxu0 0.0
        %3346 = vmatpush1.msra.mxu0 0.0
        %3347 = vmatprep.subr.mxu0 0.0
        %3348 = vmatpush1.msra.mxu0 0.0
        %3349 = vmatprep.subr.mxu0 0.0
        %3350 = vmatpush1.msra.mxu0 0.0
        %3351 = vmatprep.subr.mxu0 0.0
        %3352 = vmatpush1.msra.mxu0 0.0
        %3353 = vmatprep.subr.mxu0 0.0
        %3354 = vmatpush1.msra.mxu0 0.0
        %3355 = vmatprep.subr.mxu0 0.0
        %3356 = vmatpush1.msra.mxu0 0.0
        %3357 = vmatprep.subr.mxu0 0.0
        %3358 = vmatpush1.msra.mxu0 0.0
        %3359 = vmatprep.subr.mxu0 0.0
        %3360 = vmatpush1.msra.mxu0 0.0
        %3361 = vmatprep.subr.mxu0 0.0
        %3362 = vmatpush1.msra.mxu0 %v626
        %3363 = vmatprep.subr.mxu0 0.0
        %3364 = vmatpush1.msra.mxu0 %v625
        %3365 = vmatprep.subr.mxu0 0.0
        %3366 = vmatpush2.msra.mxu0 0.0
        %3367 = vmatprep.subr.mxu0 0.0
        %3368 = vmatpush2.msra.mxu0 0.0
        %3369 = vmatprep.subr.mxu0 0.0
        %3370 = vmatpush2.msra.mxu0 0.0
        %3371 = vmatprep.subr.mxu0 0.0
        %3372 = vmatpush2.msra.mxu0 0.0
        %3373 = vmatprep.subr.mxu0 0.0
        %3374 = vmatpush2.msra.mxu0 0.0
        %3375 = vmatprep.subr.mxu0 0.0
        %3376 = vmatpush2.msra.mxu0 0.0
        %3377 = vmatprep.subr.mxu0 0.0
        %3378 = vmatpush2.msra.mxu0 0.0
        %3379 = vmatprep.subr.mxu0 0.0
        %3380 = vmatpush2.msra.mxu0 0.0
        %3381 = vmatprep.subr.mxu0 0.0
        %3382 = vmatpush2.msra.mxu0 0.0
        %3383 = vmatprep.subr.mxu0 0.0
        %3384 = vmatpush2.msra.mxu0 0.0
        %3385 = vmatprep.subr.mxu0 0.0
        %3386 = vmatpush2.msra.mxu0 0.0
        %3387 = vmatprep.subr.mxu0 0.0
        %3388 = vmatpush2.msra.mxu0 0.0
        %3389 = vmatprep.subr.mxu0 0.0
        %3390 = vmatpush2.msra.mxu0 0.0
        %3391 = vmatprep.subr.mxu0 0.0
        %3392 = vmatpush2.msra.mxu0 0.0
        %3393 = vmatprep.subr.mxu0 0.0
        %3394 = vmatpush2.msra.mxu0 0.0
        %3395 = vmatprep.subr.mxu0 0.0
        %3396 = vmatpush2.msra.mxu0 0.0
        %3397 = vmatprep.mubr.f32.mxu0 0.0
        %3398 = vmatmul.mubr.f32.gmra.mxu0 %v3331
        %v3399 = vpop.f32.mrf.mxu0
        %v3400 = vadd.f32 0.0, %v3399
        %v3401 = vpop.f32.mrf.mxu0
        %3402 = vdwg.mxu0
        %v3403 = vmul.f32 %v3400, %v624
        %3405 = vrot.lane.b32.xlu0 %v3403, 112
        %v3406 = vpop.permute.xlu0 %3405
        %v3408 = vadd.f32 %v3328, %v3406
        %3410 = vrot.lane.b32.xlu0 %v3327, 32
        %v3411 = vpop.permute.xlu0 %3410
        %3413 = vrot.lane.b32.xlu0 %v3408, 16
        %v3414 = vpop.permute.xlu0 %3413
        %v3415 = vsel %vm761, %v3411, 0
        %v3417 = vsel %vm761, %v3414, 0
        %3419 = vmatprep.subr.mxu0 0.0
        %3420 = vmatpush1.xpose.msra.mxu0 0.0
        %3421 = vmatprep.subr.mxu0 0.0
        %3422 = vmatpush1.xpose.msra.mxu0 0.0
        %3423 = vmatprep.subr.mxu0 0.0
        %3424 = vmatpush1.xpose.msra.mxu0 0.0
        %3425 = vmatprep.subr.mxu0 0.0
        %3426 = vmatpush1.xpose.msra.mxu0 0.0
        %3427 = vmatprep.subr.mxu0 0.0
        %3428 = vmatpush1.xpose.msra.mxu0 0.0
        %3429 = vmatprep.subr.mxu0 0.0
        %3430 = vmatpush1.xpose.msra.mxu0 0.0
        %3431 = vmatprep.subr.mxu0 0.0
        %3432 = vmatpush1.xpose.msra.mxu0 0.0
        %3433 = vmatprep.subr.mxu0 0.0
        %3434 = vmatpush1.xpose.msra.mxu0 0.0
        %3435 = vmatprep.subr.mxu0 0.0
        %3436 = vmatpush1.xpose.msra.mxu0 0.0
        %3437 = vmatprep.subr.mxu0 0.0
        %3438 = vmatpush1.xpose.msra.mxu0 0.0
        %3439 = vmatprep.subr.mxu0 0.0
        %3440 = vmatpush1.xpose.msra.mxu0 0.0
        %3441 = vmatprep.subr.mxu0 0.0
        %3442 = vmatpush1.xpose.msra.mxu0 0.0
        %3443 = vmatprep.subr.mxu0 0.0
        %3444 = vmatpush1.xpose.msra.mxu0 0.0
        %3445 = vmatprep.subr.mxu0 0.0
        %3446 = vmatpush1.xpose.msra.mxu0 0.0
        %3447 = vmatprep.subr.mxu0 0.0
        %3448 = vmatpush1.xpose.msra.mxu0 0.0
        %3449 = vmatprep.subr.mxu0 0.0
        %3450 = vmatpush1.xpose.msra.mxu0 %v3417
        %3451 = vmatprep.subr.mxu0 0.0
        %3452 = vmatpush2.xpose.msra.mxu0 0.0
        %3453 = vmatprep.subr.mxu0 0.0
        %3454 = vmatpush2.xpose.msra.mxu0 0.0
        %3455 = vmatprep.subr.mxu0 0.0
        %3456 = vmatpush2.xpose.msra.mxu0 0.0
        %3457 = vmatprep.subr.mxu0 0.0
        %3458 = vmatpush2.xpose.msra.mxu0 0.0
        %3459 = vmatprep.subr.mxu0 0.0
        %3460 = vmatpush2.xpose.msra.mxu0 0.0
        %3461 = vmatprep.subr.mxu0 0.0
        %3462 = vmatpush2.xpose.msra.mxu0 0.0
        %3463 = vmatprep.subr.mxu0 0.0
        %3464 = vmatpush2.xpose.msra.mxu0 0.0
        %3465 = vmatprep.subr.mxu0 0.0
        %3466 = vmatpush2.xpose.msra.mxu0 0.0
        %3467 = vmatprep.subr.mxu0 0.0
        %3468 = vmatpush2.xpose.msra.mxu0 0.0
        %3469 = vmatprep.subr.mxu0 0.0
        %3470 = vmatpush2.xpose.msra.mxu0 0.0
        %3471 = vmatprep.subr.mxu0 0.0
        %3472 = vmatpush2.xpose.msra.mxu0 0.0
        %3473 = vmatprep.subr.mxu0 0.0
        %3474 = vmatpush2.xpose.msra.mxu0 0.0
        %3475 = vmatprep.subr.mxu0 0.0
        %3476 = vmatpush2.xpose.msra.mxu0 0.0
        %3477 = vmatprep.subr.mxu0 0.0
        %3478 = vmatpush2.xpose.msra.mxu0 0.0
        %3479 = vmatprep.subr.mxu0 0.0
        %3480 = vmatpush2.xpose.msra.mxu0 0.0
        %3481 = vmatprep.subr.mxu0 0.0
        %3482 = vmatpush2.xpose.msra.mxu0 0.0
        %3483 = vmatprep.mubr.f32.mxu0 0.0
        %3484 = vmatmul.mubr.f32.gmra.mxu0 %v3415
        %v3485 = vpop.f32.mrf.mxu0
        %v3486 = vadd.f32 0.0, %v3485
        %v3487 = vpop.f32.mrf.mxu0
        %3488 = vdwg.mxu0
        %v3489 = vmul.f32 %v3486, 0.25
        %v3490 = vadd.f32 %v3489, %v622
        %v3491 = vsel %vm1002, %v3490, -inf
        %3492 = vmax.xlane.f32.xlu0 %v3491
        %v3493 = vpop.xlane.xlu0 %3492
        %v3494 = vsub.f32 %v3490, %v3493
        %v3495 = vmul.f32 %v3494, 1.442695
        %v3496 = vpow.pop %v3495
        %v3497 = vsel %vm1002, %v3496, 0.0
        %3498 = vadd.xlane.f32.xlu0 %v3497
        %v3499 = vpop.xlane.xlu0 %3498
        %v3500 = vrcp.pop %v3499
        %v3501 = vmul.f32 %v3496, %v3500
        %v3503 = vsel %vm1002, %v3501, 0
        %3505 = vmatprep.subr.mxu0 0.0
        %3506 = vmatpush1.msra.mxu0 0.0
        %3507 = vmatprep.subr.mxu0 0.0
        %3508 = vmatpush1.msra.mxu0 0.0
        %3509 = vmatprep.subr.mxu0 0.0
        %3510 = vmatpush1.msra.mxu0 0.0
        %3511 = vmatprep.subr.mxu0 0.0
        %3512 = vmatpush1.msra.mxu0 0.0
        %3513 = vmatprep.subr.mxu0 0.0
        %3514 = vmatpush1.msra.mxu0 0.0
        %3515 = vmatprep.subr.mxu0 0.0
        %3516 = vmatpush1.msra.mxu0 0.0
        %3517 = vmatprep.subr.mxu0 0.0
        %3518 = vmatpush1.msra.mxu0 0.0
        %3519 = vmatprep.subr.mxu0 0.0
        %3520 = vmatpush1.msra.mxu0 0.0
        %3521 = vmatprep.subr.mxu0 0.0
        %3522 = vmatpush1.msra.mxu0 0.0
        %3523 = vmatprep.subr.mxu0 0.0
        %3524 = vmatpush1.msra.mxu0 0.0
        %3525 = vmatprep.subr.mxu0 0.0
        %3526 = vmatpush1.msra.mxu0 0.0
        %3527 = vmatprep.subr.mxu0 0.0
        %3528 = vmatpush1.msra.mxu0 0.0
        %3529 = vmatprep.subr.mxu0 0.0
        %3530 = vmatpush1.msra.mxu0 0.0
        %3531 = vmatprep.subr.mxu0 0.0
        %3532 = vmatpush1.msra.mxu0 0.0
        %3533 = vmatprep.subr.mxu0 0.0
        %3534 = vmatpush1.msra.mxu0 0.0
        %3535 = vmatprep.subr.mxu0 0.0
        %3536 = vmatpush1.msra.mxu0 %v2584
        %3537 = vmatprep.subr.mxu0 0.0
        %3538 = vmatpush2.msra.mxu0 0.0
        %3539 = vmatprep.subr.mxu0 0.0
        %3540 = vmatpush2.msra.mxu0 0.0
        %3541 = vmatprep.subr.mxu0 0.0
        %3542 = vmatpush2.msra.mxu0 0.0
        %3543 = vmatprep.subr.mxu0 0.0
        %3544 = vmatpush2.msra.mxu0 0.0
        %3545 = vmatprep.subr.mxu0 0.0
        %3546 = vmatpush2.msra.mxu0 0.0
        %3547 = vmatprep.subr.mxu0 0.0
        %3548 = vmatpush2.msra.mxu0 0.0
        %3549 = vmatprep.subr.mxu0 0.0
        %3550 = vmatpush2.msra.mxu0 0.0
        %3551 = vmatprep.subr.mxu0 0.0
        %3552 = vmatpush2.msra.mxu0 0.0
        %3553 = vmatprep.subr.mxu0 0.0
        %3554 = vmatpush2.msra.mxu0 0.0
        %3555 = vmatprep.subr.mxu0 0.0
        %3556 = vmatpush2.msra.mxu0 0.0
        %3557 = vmatprep.subr.mxu0 0.0
        %3558 = vmatpush2.msra.mxu0 0.0
        %3559 = vmatprep.subr.mxu0 0.0
        %3560 = vmatpush2.msra.mxu0 0.0
        %3561 = vmatprep.subr.mxu0 0.0
        %3562 = vmatpush2.msra.mxu0 0.0
        %3563 = vmatprep.subr.mxu0 0.0
        %3564 = vmatpush2.msra.mxu0 0.0
        %3565 = vmatprep.subr.mxu0 0.0
        %3566 = vmatpush2.msra.mxu0 0.0
        %3567 = vmatprep.subr.mxu0 0.0
        %3568 = vmatpush2.msra.mxu0 0.0
        %3569 = vmatprep.mubr.f32.mxu0 0.0
        %3570 = vmatmul.mubr.f32.gmra.mxu0 %v3503
        %v3571 = vpop.f32.mrf.mxu0
        %v3572 = vadd.f32 0.0, %v3571
        %v3573 = vpop.f32.mrf.mxu0
        %3574 = vdwg.mxu0
        %3576 = vrot.lane.b32.xlu0 %v3572, 32
        %v3577 = vpop.permute.xlu0 %3576
        %3579 = vst.msk [vmem:[#allocation2] sm:$0xff] %vm1772, %v3577
        %v3580 = vmul.f32 %v2584, %v839
        %3582 = vrot.lane.b32.xlu0 %v2584, 112
        %v3583 = vpop.permute.xlu0 %3582
        %v3584 = vsel %vm761, %v3583, 0
        %3586 = vmatprep.subr.mxu0 0.0
        %3587 = vmatpush1.msra.mxu0 0.0
        %3588 = vmatprep.subr.mxu0 0.0
        %3589 = vmatpush1.msra.mxu0 0.0
        %3590 = vmatprep.subr.mxu0 0.0
        %3591 = vmatpush1.msra.mxu0 0.0
        %3592 = vmatprep.subr.mxu0 0.0
        %3593 = vmatpush1.msra.mxu0 0.0
        %3594 = vmatprep.subr.mxu0 0.0
        %3595 = vmatpush1.msra.mxu0 0.0
        %3596 = vmatprep.subr.mxu0 0.0
        %3597 = vmatpush1.msra.mxu0 0.0
        %3598 = vmatprep.subr.mxu0 0.0
        %3599 = vmatpush1.msra.mxu0 0.0
        %3600 = vmatprep.subr.mxu0 0.0
        %3601 = vmatpush1.msra.mxu0 0.0
        %3602 = vmatprep.subr.mxu0 0.0
        %3603 = vmatpush1.msra.mxu0 0.0
        %3604 = vmatprep.subr.mxu0 0.0
        %3605 = vmatpush1.msra.mxu0 0.0
        %3606 = vmatprep.subr.mxu0 0.0
        %3607 = vmatpush1.msra.mxu0 0.0
        %3608 = vmatprep.subr.mxu0 0.0
        %3609 = vmatpush1.msra.mxu0 0.0
        %3610 = vmatprep.subr.mxu0 0.0
        %3611 = vmatpush1.msra.mxu0 0.0
        %3612 = vmatprep.subr.mxu0 0.0
        %3613 = vmatpush1.msra.mxu0 0.0
        %3614 = vmatprep.subr.mxu0 0.0
        %3615 = vmatpush1.msra.mxu0 %v626
        %3616 = vmatprep.subr.mxu0 0.0
        %3617 = vmatpush1.msra.mxu0 %v625
        %3618 = vmatprep.subr.mxu0 0.0
        %3619 = vmatpush2.msra.mxu0 0.0
        %3620 = vmatprep.subr.mxu0 0.0
        %3621 = vmatpush2.msra.mxu0 0.0
        %3622 = vmatprep.subr.mxu0 0.0
        %3623 = vmatpush2.msra.mxu0 0.0
        %3624 = vmatprep.subr.mxu0 0.0
        %3625 = vmatpush2.msra.mxu0 0.0
        %3626 = vmatprep.subr.mxu0 0.0
        %3627 = vmatpush2.msra.mxu0 0.0
        %3628 = vmatprep.subr.mxu0 0.0
        %3629 = vmatpush2.msra.mxu0 0.0
        %3630 = vmatprep.subr.mxu0 0.0
        %3631 = vmatpush2.msra.mxu0 0.0
        %3632 = vmatprep.subr.mxu0 0.0
        %3633 = vmatpush2.msra.mxu0 0.0
        %3634 = vmatprep.subr.mxu0 0.0
        %3635 = vmatpush2.msra.mxu0 0.0
        %3636 = vmatprep.subr.mxu0 0.0
        %3637 = vmatpush2.msra.mxu0 0.0
        %3638 = vmatprep.subr.mxu0 0.0
        %3639 = vmatpush2.msra.mxu0 0.0
        %3640 = vmatprep.subr.mxu0 0.0
        %3641 = vmatpush2.msra.mxu0 0.0
        %3642 = vmatprep.subr.mxu0 0.0
        %3643 = vmatpush2.msra.mxu0 0.0
        %3644 = vmatprep.subr.mxu0 0.0
        %3645 = vmatpush2.msra.mxu0 0.0
        %3646 = vmatprep.subr.mxu0 0.0
        %3647 = vmatpush2.msra.mxu0 0.0
        %3648 = vmatprep.subr.mxu0 0.0
        %3649 = vmatpush2.msra.mxu0 0.0
        %3650 = vmatprep.mubr.f32.mxu0 0.0
        %3651 = vmatmul.mubr.f32.gmra.mxu0 %v3584
        %v3652 = vpop.f32.mrf.mxu0
        %v3653 = vadd.f32 0.0, %v3652
        %v3654 = vpop.f32.mrf.mxu0
        %3655 = vdwg.mxu0
        %v3656 = vmul.f32 %v3653, %v624
        %3658 = vrot.lane.b32.xlu0 %v3656, 16
        %v3659 = vpop.permute.xlu0 %3658
        %v3661 = vadd.f32 %v3580, %v3659
        %v3662 = vmul.f32 %v2584, %v1857
        %3663 = vrot.lane.b32.xlu0 %v2584, 96
        %v3664 = vpop.permute.xlu0 %3663
        %v3665 = vsel %vm761, %v3664, 0
        %3667 = vmatprep.subr.mxu0 0.0
        %3668 = vmatpush1.msra.mxu0 0.0
        %3669 = vmatprep.subr.mxu0 0.0
        %3670 = vmatpush1.msra.mxu0 0.0
        %3671 = vmatprep.subr.mxu0 0.0
        %3672 = vmatpush1.msra.mxu0 0.0
        %3673 = vmatprep.subr.mxu0 0.0
        %3674 = vmatpush1.msra.mxu0 0.0
        %3675 = vmatprep.subr.mxu0 0.0
        %3676 = vmatpush1.msra.mxu0 0.0
        %3677 = vmatprep.subr.mxu0 0.0
        %3678 = vmatpush1.msra.mxu0 0.0
        %3679 = vmatprep.subr.mxu0 0.0
        %3680 = vmatpush1.msra.mxu0 0.0
        %3681 = vmatprep.subr.mxu0 0.0
        %3682 = vmatpush1.msra.mxu0 0.0
        %3683 = vmatprep.subr.mxu0 0.0
        %3684 = vmatpush1.msra.mxu0 0.0
        %3685 = vmatprep.subr.mxu0 0.0
        %3686 = vmatpush1.msra.mxu0 0.0
        %3687 = vmatprep.subr.mxu0 0.0
        %3688 = vmatpush1.msra.mxu0 0.0
        %3689 = vmatprep.subr.mxu0 0.0
        %3690 = vmatpush1.msra.mxu0 0.0
        %3691 = vmatprep.subr.mxu0 0.0
        %3692 = vmatpush1.msra.mxu0 0.0
        %3693 = vmatprep.subr.mxu0 0.0
        %3694 = vmatpush1.msra.mxu0 0.0
        %3695 = vmatprep.subr.mxu0 0.0
        %3696 = vmatpush1.msra.mxu0 %v626
        %3697 = vmatprep.subr.mxu0 0.0
        %3698 = vmatpush1.msra.mxu0 %v625
        %3699 = vmatprep.subr.mxu0 0.0
        %3700 = vmatpush2.msra.mxu0 0.0
        %3701 = vmatprep.subr.mxu0 0.0
        %3702 = vmatpush2.msra.mxu0 0.0
        %3703 = vmatprep.subr.mxu0 0.0
        %3704 = vmatpush2.msra.mxu0 0.0
        %3705 = vmatprep.subr.mxu0 0.0
        %3706 = vmatpush2.msra.mxu0 0.0
        %3707 = vmatprep.subr.mxu0 0.0
        %3708 = vmatpush2.msra.mxu0 0.0
        %3709 = vmatprep.subr.mxu0 0.0
        %3710 = vmatpush2.msra.mxu0 0.0
        %3711 = vmatprep.subr.mxu0 0.0
        %3712 = vmatpush2.msra.mxu0 0.0
        %3713 = vmatprep.subr.mxu0 0.0
        %3714 = vmatpush2.msra.mxu0 0.0
        %3715 = vmatprep.subr.mxu0 0.0
        %3716 = vmatpush2.msra.mxu0 0.0
        %3717 = vmatprep.subr.mxu0 0.0
        %3718 = vmatpush2.msra.mxu0 0.0
        %3719 = vmatprep.subr.mxu0 0.0
        %3720 = vmatpush2.msra.mxu0 0.0
        %3721 = vmatprep.subr.mxu0 0.0
        %3722 = vmatpush2.msra.mxu0 0.0
        %3723 = vmatprep.subr.mxu0 0.0
        %3724 = vmatpush2.msra.mxu0 0.0
        %3725 = vmatprep.subr.mxu0 0.0
        %3726 = vmatpush2.msra.mxu0 0.0
        %3727 = vmatprep.subr.mxu0 0.0
        %3728 = vmatpush2.msra.mxu0 0.0
        %3729 = vmatprep.subr.mxu0 0.0
        %3730 = vmatpush2.msra.mxu0 0.0
        %3731 = vmatprep.mubr.f32.mxu0 0.0
        %3732 = vmatmul.mubr.f32.gmra.mxu0 %v3665
        %v3733 = vpop.f32.mrf.mxu0
        %v3734 = vadd.f32 0.0, %v3733
        %v3735 = vpop.f32.mrf.mxu0
        %3736 = vdwg.mxu0
        %v3737 = vmul.f32 %v3734, %v624
        %3739 = vrot.lane.b32.xlu0 %v3737, 32
        %v3740 = vpop.permute.xlu0 %3739
        %v3742 = vadd.f32 %v3662, %v3740
        %3744 = vrot.lane.b32.xlu0 %v3661, 112
        %v3745 = vpop.permute.xlu0 %3744
        %3747 = vrot.lane.b32.xlu0 %v3742, 96
        %v3748 = vpop.permute.xlu0 %3747
        %v3749 = vsel %vm761, %v3745, 0
        %v3751 = vsel %vm761, %v3748, 0
        %3753 = vmatprep.subr.mxu0 0.0
        %3754 = vmatpush1.xpose.msra.mxu0 0.0
        %3755 = vmatprep.subr.mxu0 0.0
        %3756 = vmatpush1.xpose.msra.mxu0 0.0
        %3757 = vmatprep.subr.mxu0 0.0
        %3758 = vmatpush1.xpose.msra.mxu0 0.0
        %3759 = vmatprep.subr.mxu0 0.0
        %3760 = vmatpush1.xpose.msra.mxu0 0.0
        %3761 = vmatprep.subr.mxu0 0.0
        %3762 = vmatpush1.xpose.msra.mxu0 0.0
        %3763 = vmatprep.subr.mxu0 0.0
        %3764 = vmatpush1.xpose.msra.mxu0 0.0
        %3765 = vmatprep.subr.mxu0 0.0
        %3766 = vmatpush1.xpose.msra.mxu0 0.0
        %3767 = vmatprep.subr.mxu0 0.0
        %3768 = vmatpush1.xpose.msra.mxu0 0.0
        %3769 = vmatprep.subr.mxu0 0.0
        %3770 = vmatpush1.xpose.msra.mxu0 0.0
        %3771 = vmatprep.subr.mxu0 0.0
        %3772 = vmatpush1.xpose.msra.mxu0 0.0
        %3773 = vmatprep.subr.mxu0 0.0
        %3774 = vmatpush1.xpose.msra.mxu0 0.0
        %3775 = vmatprep.subr.mxu0 0.0
        %3776 = vmatpush1.xpose.msra.mxu0 0.0
        %3777 = vmatprep.subr.mxu0 0.0
        %3778 = vmatpush1.xpose.msra.mxu0 0.0
        %3779 = vmatprep.subr.mxu0 0.0
        %3780 = vmatpush1.xpose.msra.mxu0 0.0
        %3781 = vmatprep.subr.mxu0 0.0
        %3782 = vmatpush1.xpose.msra.mxu0 0.0
        %3783 = vmatprep.subr.mxu0 0.0
        %3784 = vmatpush1.xpose.msra.mxu0 %v3751
        %3785 = vmatprep.subr.mxu0 0.0
        %3786 = vmatpush2.xpose.msra.mxu0 0.0
        %3787 = vmatprep.subr.mxu0 0.0
        %3788 = vmatpush2.xpose.msra.mxu0 0.0
        %3789 = vmatprep.subr.mxu0 0.0
        %3790 = vmatpush2.xpose.msra.mxu0 0.0
        %3791 = vmatprep.subr.mxu0 0.0
        %3792 = vmatpush2.xpose.msra.mxu0 0.0
        %3793 = vmatprep.subr.mxu0 0.0
        %3794 = vmatpush2.xpose.msra.mxu0 0.0
        %3795 = vmatprep.subr.mxu0 0.0
        %3796 = vmatpush2.xpose.msra.mxu0 0.0
        %3797 = vmatprep.subr.mxu0 0.0
        %3798 = vmatpush2.xpose.msra.mxu0 0.0
        %3799 = vmatprep.subr.mxu0 0.0
        %3800 = vmatpush2.xpose.msra.mxu0 0.0
        %3801 = vmatprep.subr.mxu0 0.0
        %3802 = vmatpush2.xpose.msra.mxu0 0.0
        %3803 = vmatprep.subr.mxu0 0.0
        %3804 = vmatpush2.xpose.msra.mxu0 0.0
        %3805 = vmatprep.subr.mxu0 0.0
        %3806 = vmatpush2.xpose.msra.mxu0 0.0
        %3807 = vmatprep.subr.mxu0 0.0
        %3808 = vmatpush2.xpose.msra.mxu0 0.0
        %3809 = vmatprep.subr.mxu0 0.0
        %3810 = vmatpush2.xpose.msra.mxu0 0.0
        %3811 = vmatprep.subr.mxu0 0.0
        %3812 = vmatpush2.xpose.msra.mxu0 0.0
        %3813 = vmatprep.subr.mxu0 0.0
        %3814 = vmatpush2.xpose.msra.mxu0 0.0
        %3815 = vmatprep.subr.mxu0 0.0
        %3816 = vmatpush2.xpose.msra.mxu0 0.0
        %3817 = vmatprep.mubr.f32.mxu0 0.0
        %3818 = vmatmul.mubr.f32.gmra.mxu0 %v3749
        %v3819 = vpop.f32.mrf.mxu0
        %v3820 = vadd.f32 0.0, %v3819
        %v3821 = vpop.f32.mrf.mxu0
        %3822 = vdwg.mxu0
        %v3823 = vmul.f32 %v3820, 0.25
        %v3824 = vadd.f32 %v3823, %v622
        %v3825 = vsel %vm1002, %v3824, -inf
        %3826 = vmax.xlane.f32.xlu0 %v3825
        %v3827 = vpop.xlane.xlu0 %3826
        %v3828 = vsub.f32 %v3824, %v3827
        %v3829 = vmul.f32 %v3828, 1.442695
        %v3830 = vpow.pop %v3829
        %v3831 = vsel %vm1002, %v3830, 0.0
        %3832 = vadd.xlane.f32.xlu0 %v3831
        %v3833 = vpop.xlane.xlu0 %3832
        %v3834 = vrcp.pop %v3833
        %v3835 = vmul.f32 %v3830, %v3834
        %3836 = vrot.lane.b32.xlu0 %v2584, 80
        %v3837 = vpop.permute.xlu0 %3836
        %v3840 = vsel %vm1002, %v3835, 0
        %3842 = vmatprep.subr.mxu0 0.0
        %3843 = vmatpush1.msra.mxu0 0.0
        %3844 = vmatprep.subr.mxu0 0.0
        %3845 = vmatpush1.msra.mxu0 0.0
        %3846 = vmatprep.subr.mxu0 0.0
        %3847 = vmatpush1.msra.mxu0 0.0
        %3848 = vmatprep.subr.mxu0 0.0
        %3849 = vmatpush1.msra.mxu0 0.0
        %3850 = vmatprep.subr.mxu0 0.0
        %3851 = vmatpush1.msra.mxu0 0.0
        %3852 = vmatprep.subr.mxu0 0.0
        %3853 = vmatpush1.msra.mxu0 0.0
        %3854 = vmatprep.subr.mxu0 0.0
        %3855 = vmatpush1.msra.mxu0 0.0
        %3856 = vmatprep.subr.mxu0 0.0
        %3857 = vmatpush1.msra.mxu0 0.0
        %3858 = vmatprep.subr.mxu0 0.0
        %3859 = vmatpush1.msra.mxu0 0.0
        %3860 = vmatprep.subr.mxu0 0.0
        %3861 = vmatpush1.msra.mxu0 0.0
        %3862 = vmatprep.subr.mxu0 0.0
        %3863 = vmatpush1.msra.mxu0 0.0
        %3864 = vmatprep.subr.mxu0 0.0
        %3865 = vmatpush1.msra.mxu0 0.0
        %3866 = vmatprep.subr.mxu0 0.0
        %3867 = vmatpush1.msra.mxu0 0.0
        %3868 = vmatprep.subr.mxu0 0.0
        %3869 = vmatpush1.msra.mxu0 0.0
        %3870 = vmatprep.subr.mxu0 0.0
        %3871 = vmatpush1.msra.mxu0 0.0
        %3872 = vmatprep.subr.mxu0 0.0
        %3873 = vmatpush1.msra.mxu0 %v3837
        %3874 = vmatprep.subr.mxu0 0.0
        %3875 = vmatpush2.msra.mxu0 0.0
        %3876 = vmatprep.subr.mxu0 0.0
        %3877 = vmatpush2.msra.mxu0 0.0
        %3878 = vmatprep.subr.mxu0 0.0
        %3879 = vmatpush2.msra.mxu0 0.0
        %3880 = vmatprep.subr.mxu0 0.0
        %3881 = vmatpush2.msra.mxu0 0.0
        %3882 = vmatprep.subr.mxu0 0.0
        %3883 = vmatpush2.msra.mxu0 0.0
        %3884 = vmatprep.subr.mxu0 0.0
        %3885 = vmatpush2.msra.mxu0 0.0
        %3886 = vmatprep.subr.mxu0 0.0
        %3887 = vmatpush2.msra.mxu0 0.0
        %3888 = vmatprep.subr.mxu0 0.0
        %3889 = vmatpush2.msra.mxu0 0.0
        %3890 = vmatprep.subr.mxu0 0.0
        %3891 = vmatpush2.msra.mxu0 0.0
        %3892 = vmatprep.subr.mxu0 0.0
        %3893 = vmatpush2.msra.mxu0 0.0
        %3894 = vmatprep.subr.mxu0 0.0
        %3895 = vmatpush2.msra.mxu0 0.0
        %3896 = vmatprep.subr.mxu0 0.0
        %3897 = vmatpush2.msra.mxu0 0.0
        %3898 = vmatprep.subr.mxu0 0.0
        %3899 = vmatpush2.msra.mxu0 0.0
        %3900 = vmatprep.subr.mxu0 0.0
        %3901 = vmatpush2.msra.mxu0 0.0
        %3902 = vmatprep.subr.mxu0 0.0
        %3903 = vmatpush2.msra.mxu0 0.0
        %3904 = vmatprep.subr.mxu0 0.0
        %3905 = vmatpush2.msra.mxu0 0.0
        %3906 = vmatprep.mubr.f32.mxu0 0.0
        %3907 = vmatmul.mubr.f32.gmra.mxu0 %v3840
        %v3908 = vpop.f32.mrf.mxu0
        %v3909 = vadd.f32 0.0, %v3908
        %v3910 = vpop.f32.mrf.mxu0
        %3911 = vdwg.mxu0
        %3913 = vrot.lane.b32.xlu0 %v3909, 48
        %v3914 = vpop.permute.xlu0 %3913
        %3916 = vst.msk [vmem:[#allocation2] sm:$0xff] %vm2113, %v3914
        %v3917 = vld [vmem:[#allocation2] sm:$0xff]
        %s3918 = scalar_lea.vmem %s12, 64
        %v3919 = vld [vmem:[%s3918] sm:$0xff]
        %v3920 = vld [vmem:[%s3918 + $0x8] sm:$0xff]
        %v3921 = vld [vmem:[%s3918 + $0x10] sm:$0xff]
        %v3922 = vld [vmem:[%s3918 + $0x18] sm:$0xff]
        %v3923 = vld [vmem:[%s3918 + $0x20] sm:$0xff]
        %v3924 = vld [vmem:[%s3918 + $0x28] sm:$0xff]
        %v3925 = vld [vmem:[%s3918 + $0x30] sm:$0xff]
        %v3926 = vld [vmem:[%s3918 + $0x38] sm:$0xff]
        %s3927 = scalar_lea.vmem %s13, 1
        %v3928 = vld [vmem:[%s3927] sm:$0x1]
        %v3930 = vlaneseq
        %v3931 = vshrl.u32 %v3930, 7
        %v3932 = vsub.s32 0, %v3931
        %v3933 = vrot.slane %v3928, %v3932
        %v3936 = vsel %vm629, %v3917, 0
        %3938 = vmatprep.subr.mxu0 0.0
        %3939 = vmatpush1.msra.mxu0 0.0
        %3940 = vmatprep.subr.mxu0 0.0
        %3941 = vmatpush1.msra.mxu0 0.0
        %3942 = vmatprep.subr.mxu0 0.0
        %3943 = vmatpush1.msra.mxu0 0.0
        %3944 = vmatprep.subr.mxu0 0.0
        %3945 = vmatpush1.msra.mxu0 0.0
        %3946 = vmatprep.subr.mxu0 0.0
        %3947 = vmatpush1.msra.mxu0 0.0
        %3948 = vmatprep.subr.mxu0 0.0
        %3949 = vmatpush1.msra.mxu0 0.0
        %3950 = vmatprep.subr.mxu0 0.0
        %3951 = vmatpush1.msra.mxu0 0.0
        %3952 = vmatprep.subr.mxu0 0.0
        %3953 = vmatpush1.msra.mxu0 0.0
        %3954 = vmatprep.subr.mxu0 0.0
        %3955 = vmatpush1.msra.mxu0 %v3926
        %3956 = vmatprep.subr.mxu0 0.0
        %3957 = vmatpush1.msra.mxu0 %v3925
        %3958 = vmatprep.subr.mxu0 0.0
        %3959 = vmatpush1.msra.mxu0 %v3924
        %3960 = vmatprep.subr.mxu0 0.0
        %3961 = vmatpush1.msra.mxu0 %v3923
        %3962 = vmatprep.subr.mxu0 0.0
        %3963 = vmatpush1.msra.mxu0 %v3922
        %3964 = vmatprep.subr.mxu0 0.0
        %3965 = vmatpush1.msra.mxu0 %v3921
        %3966 = vmatprep.subr.mxu0 0.0
        %3967 = vmatpush1.msra.mxu0 %v3920
        %3968 = vmatprep.subr.mxu0 0.0
        %3969 = vmatpush1.msra.mxu0 %v3919
        %3970 = vmatprep.subr.mxu0 0.0
        %3971 = vmatpush2.msra.mxu0 0.0
        %3972 = vmatprep.subr.mxu0 0.0
        %3973 = vmatpush2.msra.mxu0 0.0
        %3974 = vmatprep.subr.mxu0 0.0
        %3975 = vmatpush2.msra.mxu0 0.0
        %3976 = vmatprep.subr.mxu0 0.0
        %3977 = vmatpush2.msra.mxu0 0.0
        %3978 = vmatprep.subr.mxu0 0.0
        %3979 = vmatpush2.msra.mxu0 0.0
        %3980 = vmatprep.subr.mxu0 0.0
        %3981 = vmatpush2.msra.mxu0 0.0
        %3982 = vmatprep.subr.mxu0 0.0
        %3983 = vmatpush2.msra.mxu0 0.0
        %3984 = vmatprep.subr.mxu0 0.0
        %3985 = vmatpush2.msra.mxu0 0.0
        %3986 = vmatprep.subr.mxu0 0.0
        %3987 = vmatpush2.msra.mxu0 0.0
        %3988 = vmatprep.subr.mxu0 0.0
        %3989 = vmatpush2.msra.mxu0 0.0
        %3990 = vmatprep.subr.mxu0 0.0
        %3991 = vmatpush2.msra.mxu0 0.0
        %3992 = vmatprep.subr.mxu0 0.0
        %3993 = vmatpush2.msra.mxu0 0.0
        %3994 = vmatprep.subr.mxu0 0.0
        %3995 = vmatpush2.msra.mxu0 0.0
        %3996 = vmatprep.subr.mxu0 0.0
        %3997 = vmatpush2.msra.mxu0 0.0
        %3998 = vmatprep.subr.mxu0 0.0
        %3999 = vmatpush2.msra.mxu0 0.0
        %4000 = vmatprep.subr.mxu0 0.0
        %4001 = vmatpush2.msra.mxu0 0.0
        %4002 = vmatprep.mubr.f32.mxu0 0.0
        %4003 = vmatmul.mubr.f32.gmra.mxu0 %v3936
        %v4004 = vpop.f32.mrf.mxu0
        %v4005 = vadd.f32 %v3933, %v4004
        %v4006 = vpop.f32.mrf.mxu0
        %4007 = vdwg.mxu0
        %s4008 = scalar_lea.vmem %s8, 1
        %v4009 = vld [vmem:[%s4008] sm:$0x1]
        %s4010 = scalar_lea.vmem %s9, 1
        %v4011 = vld [vmem:[%s4010] sm:$0x1]
        %v4013 = vlaneseq
        %v4014 = vshrl.u32 %v4013, 7
        %v4015 = vsub.s32 0, %v4014
        %v4016 = vrot.slane %v4009, %v4015
        %v4018 = vmul.f32 %v2467, %v4016
        %v4020 = vlaneseq
        %v4021 = vshrl.u32 %v4020, 7
        %v4022 = vsub.s32 0, %v4021
        %v4023 = vrot.slane %v4011, %v4022
        %v4025 = vadd.f32 %v4018, %v4023
        %s4026 = scalar_lea.vmem %s14, 128
        %v4027 = vld [vmem:[%s4026] sm:$0xff]
        %v4028 = vld [vmem:[%s4026 + $0x8] sm:$0xff]
        %v4029 = vld [vmem:[%s4026 + $0x10] sm:$0xff]
        %v4030 = vld [vmem:[%s4026 + $0x18] sm:$0xff]
        %v4031 = vld [vmem:[%s4026 + $0x20] sm:$0xff]
        %v4032 = vld [vmem:[%s4026 + $0x28] sm:$0xff]
        %v4033 = vld [vmem:[%s4026 + $0x30] sm:$0xff]
        %v4034 = vld [vmem:[%s4026 + $0x38] sm:$0xff]
        %v4035 = vld [vmem:[%s4026 + $0x40] sm:$0xff]
        %v4036 = vld [vmem:[%s4026 + $0x48] sm:$0xff]
        %v4037 = vld [vmem:[%s4026 + $0x50] sm:$0xff]
        %v4038 = vld [vmem:[%s4026 + $0x58] sm:$0xff]
        %v4039 = vld [vmem:[%s4026 + $0x60] sm:$0xff]
        %v4040 = vld [vmem:[%s4026 + $0x68] sm:$0xff]
        %v4041 = vld [vmem:[%s4026 + $0x70] sm:$0xff]
        %v4042 = vld [vmem:[%s4026 + $0x78] sm:$0xff]
        %s4043 = scalar_lea.vmem %s15, 2
        %v4044 = vld [vmem:[%s4043] sm:$0x3]
        %v4046 = vlaneseq
        %v4047 = vshrl.u32 %v4046, 7
        %v4048 = vsub.s32 0, %v4047
        %v4049 = vrot.slane %v4044, %v4048
        %v4050 = vlaneseq
        %v4051 = vshrl.u32 %v4050, 7
        %v4052 = vsub.s32 1, %v4051
        %v4053 = vrot.slane %v4044, %v4052
        %v4057 = vsel %vm629, %v4025, 0
        %4059 = vmatprep.subr.mxu0 0.0
        %4060 = vmatpush1.msra.mxu0 0.0
        %4061 = vmatprep.subr.mxu0 0.0
        %4062 = vmatpush1.msra.mxu0 0.0
        %4063 = vmatprep.subr.mxu0 0.0
        %4064 = vmatpush1.msra.mxu0 0.0
        %4065 = vmatprep.subr.mxu0 0.0
        %4066 = vmatpush1.msra.mxu0 0.0
        %4067 = vmatprep.subr.mxu0 0.0
        %4068 = vmatpush1.msra.mxu0 0.0
        %4069 = vmatprep.subr.mxu0 0.0
        %4070 = vmatpush1.msra.mxu0 0.0
        %4071 = vmatprep.subr.mxu0 0.0
        %4072 = vmatpush1.msra.mxu0 0.0
        %4073 = vmatprep.subr.mxu0 0.0
        %4074 = vmatpush1.msra.mxu0 0.0
        %4075 = vmatprep.subr.mxu0 %v4042
        %4076 = vmatpush1.msra.mxu0 %v4041
        %4077 = vmatprep.subr.mxu0 %v4040
        %4078 = vmatpush1.msra.mxu0 %v4039
        %4079 = vmatprep.subr.mxu0 %v4038
        %4080 = vmatpush1.msra.mxu0 %v4037
        %4081 = vmatprep.subr.mxu0 %v4036
        %4082 = vmatpush1.msra.mxu0 %v4035
        %4083 = vmatprep.subr.mxu0 %v4034
        %4084 = vmatpush1.msra.mxu0 %v4033
        %4085 = vmatprep.subr.mxu0 %v4032
        %4086 = vmatpush1.msra.mxu0 %v4031
        %4087 = vmatprep.subr.mxu0 %v4030
        %4088 = vmatpush1.msra.mxu0 %v4029
        %4089 = vmatprep.subr.mxu0 %v4028
        %4090 = vmatpush1.msra.mxu0 %v4027
        %4091 = vmatprep.subr.mxu0 0.0
        %4092 = vmatpush2.msra.mxu0 0.0
        %4093 = vmatprep.subr.mxu0 0.0
        %4094 = vmatpush2.msra.mxu0 0.0
        %4095 = vmatprep.subr.mxu0 0.0
        %4096 = vmatpush2.msra.mxu0 0.0
        %4097 = vmatprep.subr.mxu0 0.0
        %4098 = vmatpush2.msra.mxu0 0.0
        %4099 = vmatprep.subr.mxu0 0.0
        %4100 = vmatpush2.msra.mxu0 0.0
        %4101 = vmatprep.subr.mxu0 0.0
        %4102 = vmatpush2.msra.mxu0 0.0
        %4103 = vmatprep.subr.mxu0 0.0
        %4104 = vmatpush2.msra.mxu0 0.0
        %4105 = vmatprep.subr.mxu0 0.0
        %4106 = vmatpush2.msra.mxu0 0.0
        %4107 = vmatprep.subr.mxu0 0.0
        %4108 = vmatpush2.msra.mxu0 0.0
        %4109 = vmatprep.subr.mxu0 0.0
        %4110 = vmatpush2.msra.mxu0 0.0
        %4111 = vmatprep.subr.mxu0 0.0
        %4112 = vmatpush2.msra.mxu0 0.0
        %4113 = vmatprep.subr.mxu0 0.0
        %4114 = vmatpush2.msra.mxu0 0.0
        %4115 = vmatprep.subr.mxu0 0.0
        %4116 = vmatpush2.msra.mxu0 0.0
        %4117 = vmatprep.subr.mxu0 0.0
        %4118 = vmatpush2.msra.mxu0 0.0
        %4119 = vmatprep.subr.mxu0 0.0
        %4120 = vmatpush2.msra.mxu0 0.0
        %4121 = vmatprep.subr.mxu0 0.0
        %4122 = vmatpush2.msra.mxu0 0.0
        %4123 = vmatprep.mubr.f32.mxu0 0.0
        %4124 = vmatmul.mubr.f32.gmra.mxu0 %v4057
        %v4125 = vpop.f32.mrf.mxu0
        %v4126 = vadd.f32 %v4049, %v4125
        %v4127 = vpop.f32.mrf.mxu0
        %v4128 = vadd.f32 %v4053, %v4127
        %4129 = vdwg.mxu0
        %v4130 = vmul.f32 %v4126, 0.5
        %v4131 = vmul.f32 %v4128, 0.5
        %v4132 = vmul.f32 %v4126, 0.044715
        %v4133 = vmul.f32 %v4128, 0.044715
        %v4134 = vmul.f32 %v4132, %v4126
        %v4135 = vmul.f32 %v4133, %v4128
        %v4136 = vmul.f32 %v4134, %v4126
        %v4137 = vmul.f32 %v4135, %v4128
        %v4138 = vadd.f32 %v4126, %v4136
        %v4139 = vadd.f32 %v4128, %v4137
        %v4140 = vmul.f32 %v4138, 0.7978846
        %v4141 = vmul.f32 %v4139, 0.7978846
        %v4142 = vtanh.pop %v4140
        %v4143 = vtanh.pop %v4141
        %v4144 = vadd.f32 %v4142, 1.0
        %v4145 = vadd.f32 %v4143, 1.0
        %v4146 = vmul.f32 %v4130, %v4144
        %v4147 = vmul.f32 %v4131, %v4145
        %s4148 = scalar_lea.vmem %s16, 256
        %v4149 = vld [vmem:[%s4148] sm:$0xff]
        %v4150 = vld [vmem:[%s4148 + $0x8] sm:$0xff]
        %v4151 = vld [vmem:[%s4148 + $0x10] sm:$0xff]
        %v4152 = vld [vmem:[%s4148 + $0x18] sm:$0xff]
        %v4153 = vld [vmem:[%s4148 + $0x20] sm:$0xff]
        %v4154 = vld [vmem:[%s4148 + $0x28] sm:$0xff]
        %v4155 = vld [vmem:[%s4148 + $0x30] sm:$0xff]
        %v4156 = vld [vmem:[%s4148 + $0x38] sm:$0xff]
        %v4157 = vld [vmem:[%s4148 + $0x40] sm:$0xff]
        %v4158 = vld [vmem:[%s4148 + $0x48] sm:$0xff]
        %v4159 = vld [vmem:[%s4148 + $0x50] sm:$0xff]
        %v4160 = vld [vmem:[%s4148 + $0x58] sm:$0xff]
        %v4161 = vld [vmem:[%s4148 + $0x60] sm:$0xff]
        %v4162 = vld [vmem:[%s4148 + $0x68] sm:$0xff]
        %v4163 = vld [vmem:[%s4148 + $0x70] sm:$0xff]
        %v4164 = vld [vmem:[%s4148 + $0x78] sm:$0xff]
        %v4165 = vld [vmem:[%s4148 + $0x80] sm:$0xff]
        %v4166 = vld [vmem:[%s4148 + $0x88] sm:$0xff]
        %v4167 = vld [vmem:[%s4148 + $0x90] sm:$0xff]
        %v4168 = vld [vmem:[%s4148 + $0x98] sm:$0xff]
        %v4169 = vld [vmem:[%s4148 + $0xa0] sm:$0xff]
        %v4170 = vld [vmem:[%s4148 + $0xa8] sm:$0xff]
        %v4171 = vld [vmem:[%s4148 + $0xb0] sm:$0xff]
        %v4172 = vld [vmem:[%s4148 + $0xb8] sm:$0xff]
        %v4173 = vld [vmem:[%s4148 + $0xc0] sm:$0xff]
        %v4174 = vld [vmem:[%s4148 + $0xc8] sm:$0xff]
        %v4175 = vld [vmem:[%s4148 + $0xd0] sm:$0xff]
        %v4176 = vld [vmem:[%s4148 + $0xd8] sm:$0xff]
        %v4177 = vld [vmem:[%s4148 + $0xe0] sm:$0xff]
        %v4178 = vld [vmem:[%s4148 + $0xe8] sm:$0xff]
        %v4179 = vld [vmem:[%s4148 + $0xf0] sm:$0xff]
        %v4180 = vld [vmem:[%s4148 + $0xf8] sm:$0xff]
        %s4181 = scalar_lea.vmem %s17, 1
        %v4182 = vld [vmem:[%s4181] sm:$0x1]
        %v4184 = vlaneseq
        %v4185 = vshrl.u32 %v4184, 7
        %v4186 = vsub.s32 0, %v4185
        %v4187 = vrot.slane %v4182, %v4186
        %4189 = vmatprep.subr.mxu0 0.0
        %4190 = vmatpush1.msra.mxu0 %v4164
        %4191 = vmatprep.subr.mxu0 0.0
        %4192 = vmatpush1.msra.mxu0 %v4163
        %4193 = vmatprep.subr.mxu0 0.0
        %4194 = vmatpush1.msra.mxu0 %v4162
        %4195 = vmatprep.subr.mxu0 0.0
        %4196 = vmatpush1.msra.mxu0 %v4161
        %4197 = vmatprep.subr.mxu0 0.0
        %4198 = vmatpush1.msra.mxu0 %v4160
        %4199 = vmatprep.subr.mxu0 0.0
        %4200 = vmatpush1.msra.mxu0 %v4159
        %4201 = vmatprep.subr.mxu0 0.0
        %4202 = vmatpush1.msra.mxu0 %v4158
        %4203 = vmatprep.subr.mxu0 0.0
        %4204 = vmatpush1.msra.mxu0 %v4157
        %4205 = vmatprep.subr.mxu0 0.0
        %4206 = vmatpush1.msra.mxu0 %v4156
        %4207 = vmatprep.subr.mxu0 0.0
        %4208 = vmatpush1.msra.mxu0 %v4155
        %4209 = vmatprep.subr.mxu0 0.0
        %4210 = vmatpush1.msra.mxu0 %v4154
        %4211 = vmatprep.subr.mxu0 0.0
        %4212 = vmatpush1.msra.mxu0 %v4153
        %4213 = vmatprep.subr.mxu0 0.0
        %4214 = vmatpush1.msra.mxu0 %v4152
        %4215 = vmatprep.subr.mxu0 0.0
        %4216 = vmatpush1.msra.mxu0 %v4151
        %4217 = vmatprep.subr.mxu0 0.0
        %4218 = vmatpush1.msra.mxu0 %v4150
        %4219 = vmatprep.subr.mxu0 0.0
        %4220 = vmatpush1.msra.mxu0 %v4149
        %4221 = vmatprep.subr.mxu0 0.0
        %4222 = vmatpush2.msra.mxu0 %v4180
        %4223 = vmatprep.subr.mxu0 0.0
        %4224 = vmatpush2.msra.mxu0 %v4179
        %4225 = vmatprep.subr.mxu0 0.0
        %4226 = vmatpush2.msra.mxu0 %v4178
        %4227 = vmatprep.subr.mxu0 0.0
        %4228 = vmatpush2.msra.mxu0 %v4177
        %4229 = vmatprep.subr.mxu0 0.0
        %4230 = vmatpush2.msra.mxu0 %v4176
        %4231 = vmatprep.subr.mxu0 0.0
        %4232 = vmatpush2.msra.mxu0 %v4175
        %4233 = vmatprep.subr.mxu0 0.0
        %4234 = vmatpush2.msra.mxu0 %v4174
        %4235 = vmatprep.subr.mxu0 0.0
        %4236 = vmatpush2.msra.mxu0 %v4173
        %4237 = vmatprep.subr.mxu0 0.0
        %4238 = vmatpush2.msra.mxu0 %v4172
        %4239 = vmatprep.subr.mxu0 0.0
        %4240 = vmatpush2.msra.mxu0 %v4171
        %4241 = vmatprep.subr.mxu0 0.0
        %4242 = vmatpush2.msra.mxu0 %v4170
        %4243 = vmatprep.subr.mxu0 0.0
        %4244 = vmatpush2.msra.mxu0 %v4169
        %4245 = vmatprep.subr.mxu0 0.0
        %4246 = vmatpush2.msra.mxu0 %v4168
        %4247 = vmatprep.subr.mxu0 0.0
        %4248 = vmatpush2.msra.mxu0 %v4167
        %4249 = vmatprep.subr.mxu0 0.0
        %4250 = vmatpush2.msra.mxu0 %v4166
        %4251 = vmatprep.subr.mxu0 0.0
        %4252 = vmatpush2.msra.mxu0 %v4165
        %4253 = vmatprep.mubr.f32.mxu0 %v4147
        %4254 = vmatmul.mubr.f32.gmra.mxu0 %v4146
        %v4255 = vpop.f32.mrf.mxu0
        %v4256 = vadd.f32 %v4187, %v4255
        %v4257 = vpop.f32.mrf.mxu0
        %4258 = vdwg.mxu0
        %v4259 = vadd.f32 %v2450, %v4005
        %v4260 = vadd.f32 %v4259, %v4256
        %v4261 = vld [vmem:[%s18] sm:$0x1]
        %v4262 = vld [vmem:[%s19] sm:$0x1]
        %v4263 = vsel %vm629, %v4260, 0.0
        %4264 = vadd.xlane.f32.xlu0 %v4263
        %v4265 = vpop.xlane.xlu0 %4264
        %v4266 = vmul.f32 %v4265, %v633
        %v4267 = vsub.f32 %v4260, %v4266
        %v4268 = vmul.f32 %v4267, %v4267
        %v4269 = vsel %vm629, %v4268, 0.0
        %4270 = vadd.xlane.f32.xlu0 %v4269
        %v4271 = vpop.xlane.xlu0 %4270
        %v4272 = vmul.f32 %v4271, %v633
        %v4273 = vadd.f32 %v4272, 1e-05
        %v4274 = vrsqrt.pop %v4273
        %v4275 = vmul.f32 %v4267, %v4274
        %v4277 = vlaneseq
        %v4278 = vshrl.u32 %v4277, 7
        %v4279 = vsub.s32 0, %v4278
        %v4280 = vrot.slane %v4261, %v4279
        %v4282 = vmul.f32 %v4275, %v4280
        %v4284 = vlaneseq
        %v4285 = vshrl.u32 %v4284, 7
        %v4286 = vsub.s32 0, %v4285
        %v4287 = vrot.slane %v4262, %v4286
        %v4289 = vadd.f32 %v4282, %v4287
        %4290 = vst.msk [vmem:[#allocation2] sm:$0xff] %vm629, %v4289
        %s4291 = sld [smem:[#allocation4 + %s40]]
        %s4292 = scalar_lea.vmem [#allocation2], %s4291
        %v4293 = vld [vmem:[%s4292] sm:$0x1]
        %vm4294 = vcmask 516096
        %4295 = vst.msk [vmem:[%s612] sm:$0x1] %vm4294, %v4293
        %s4296 = sand.u32 %s457, 1
        %s4297 = scalar_lea.sflag [#allocation6], %s4296
        %s4298 = sand.u32 %s457, 1
        %s4299 = scalar_lea.vmem [#allocation5], %s4298
        // Predicated region
        $region97: #{_lambda_.1} parent=95 // pred_check
          %p4300 = pneg %p467
        $region98: #{_lambda_.1} parent=95 // pred_check_branch
          %4302 = sbr.rel (%p4300) target = $region100
        $region99: #{_lambda_.1} parent=95 // pred_region
          %s4304 = ssub.s32 16, 16
          %4305 = vsyncadd %s4297, %s4304
          %s4306 = smul.addr %s40, 16
          %s4307 = scalar_lea.hbm %s20, %s4306
          %s4309 = sshll.u32 %s4299, 4
          %s4310 = int_to_ptr.vmem [resolvable:$true] %s4309
          %4312 = dma.vmem_to_hbm [thread:$0]  %s4310, 16, %s4307, %s4297
        $region100: #{_lambda_.1} parent=95 // pred_fallthru
          _
      $region96: #{_lambda_.1} parent=5 // pred_fallthru
        _
      %p4313 = scmp.le.s32.totalorder 2, %s35
      // Predicated region
      $region101: #{_lambda_.1} parent=5 // pred_check
        %p4314 = pneg %p4313
      $region102: #{_lambda_.1} parent=5 // pred_check_branch
        %4316 = sbr.rel (%p4314) target = $region104
      $region103: #{_lambda_.1} parent=5 // pred_region
        %s4317 = ssub.s32 %s35, 2
        // Predicated region
        $region105: #{_lambda_.1} parent=103 // pred_check
          %p4318 = pneg %p473
        $region106: #{_lambda_.1} parent=103 // pred_check_branch
          %4320 = sbr.rel (%p4318) target = $region108
        $region107: #{_lambda_.1} parent=103 // pred_region
          %s4321 = sand.u32 %s458, 1
          %s4322 = scalar_lea.sflag [#allocation6], %s4321
          %s4323 = sand.u32 %s458, 1
          %s4324 = scalar_lea.vmem [#allocation5], %s4323
          %4325 = dma.done %s4322, 16
        $region108: #{_lambda_.1} parent=103 // pred_fallthru
          _
      $region104: #{_lambda_.1} parent=5 // pred_fallthru
        _
    $region6: #{_lambda_.1} parent=1 // loop_footer
      %s39 = sadd.s32 1, %s35
    $region7: #{_lambda_.1} parent=1 // loop_footer_branch
      %34 = sbr.rel target = $region3
    $region8: #{_lambda_.1} parent=1 // loop_exit
      _
    %4326 = vsyncpa [#allocation6], 1
    %s4327 = scalar_lea.sflag [#allocation6], 1
    %4328 = vsyncpa %s4327, 1

</llo_original>
